<compile_context>
chip_gen: v7x
topology: tpu7x:2x2x1
jax: 0.10.0
libtpu: 0.0.40
codegen_flags: <defaults>
</compile_context>

<pallas_src>
import functools
import math

import jax
import jax.numpy as jnp
from jax import lax
from jax.experimental import pallas as pl
from jax.experimental.pallas import tpu as pltpu

INF = 10000000000.0


def _mm_wT(x, w):
    """y = x @ W.T (PyTorch nn.Linear), bf16 operands, f32 accumulation."""
    return lax.dot_general(
        x.astype(jnp.bfloat16), w.astype(jnp.bfloat16),
        (((1,), (1,)), ((), ())), preferred_element_type=jnp.float32)


def _heads_first(t, nh, dh):
    """(rows, nh*dh) -> (nh, rows, dh)."""
    t3 = t.reshape(t.shape[0], nh, dh)
    return pltpu.einshape("she->hse", t3)


def _multihead(xq, xkv, w_ref, wo_hr, n_heads, causal, q_offset, mask_value):
    """One MultiHead block.

    xq:    (Sq, D)  queries (bf16 or f32)
    xkv:   (Sk, D)  keys/values source (bf16)
    w_ref: (3D, D)  stacked [wq*inv_scale ; wk ; wv]  (ref, bf16)
    wo_hr: (H, D, dh) output projection, head-major  (bf16)
    """
    Sq, D = xq.shape
    Sk = xkv.shape[0]
    dh = D // n_heads

    wq = w_ref[0:D]                 # (D, D)   1/sqrt(d_key) pre-folded
    wkv = w_ref[D:3 * D]            # (2D, D)  fused K+V projection

    q2 = _mm_wT(xq, wq)             # (Sq, D)  f32
    kv2 = _mm_wT(xkv, wkv)          # (Sk, 2D) f32

    qh = _heads_first(q2, n_heads, dh)          # (H,  Sq, dh)
    kvh = _heads_first(kv2, 2 * n_heads, dh)    # (2H, Sk, dh)
    kh = kvh[:n_heads]
    vh = kvh[n_heads:]

    # Scores (scale already folded into Q).
    s = jnp.einsum('hqe,hke->hqk',
                   qh.astype(jnp.bfloat16), kh.astype(jnp.bfloat16),
                   preferred_element_type=jnp.float32)      # (H, Sq, Sk) f32
    if causal:
        rows = lax.broadcasted_iota(jnp.int32, (Sq, Sk), 0) + q_offset
        cols = lax.broadcasted_iota(jnp.int32, (Sq, Sk), 1)
        s = jnp.where((cols > rows)[None, :, :], jnp.float32(mask_value), s)

    m = jnp.max(s, axis=-1, keepdims=True)
    p = jnp.exp(s - m)
    p = p * pl.reciprocal(jnp.sum(p, axis=-1, keepdims=True), approx=True)

    o = jnp.einsum('hqk,hke->hqe',
                   p.astype(jnp.bfloat16), vh.astype(jnp.bfloat16),
                   preferred_element_type=jnp.float32)      # (H, Sq, dh)

    # Output projection without a head-merge transpose: batched per-head
    # matmul against (H, D, dh) then sum over heads (cheap outer-dim VPU add).
    per_head = jnp.einsum('hqe,hde->hqd',
                          o.astype(jnp.bfloat16), wo_hr,
                          preferred_element_type=jnp.float32)  # (H, Sq, D)
    return jnp.sum(per_head, axis=0)                            # (Sq, D)


# ---------------------------------------------------------------------------
# Fused decoder-layer kernel (grid = (batch, query_tiles))
# ---------------------------------------------------------------------------
def _decoder_layer_kernel(xq_ref, xfull_ref, enc_ref,
                          sa_w_ref, sa_wo_ref, ca_w_ref, ca_wo_ref,
                          w1_ref, b1_ref, w2_ref, b2_ref,
                          g_ref, bt_ref, o_ref,
                          *, n_heads, mask_value, eps):
    xq_bf = xq_ref[0]                        # (TQ, D) bf16 -- query-tile rows
    x_all = xfull_ref[0]                     # (S,  D) bf16 -- full seq (K/V)
    enc = enc_ref[0]                         # (Se, D) bf16
    x = xq_bf.astype(jnp.float32)            # residual stream in f32
    TQ, D = x.shape
    g = g_ref[...]                           # (3, D) LayerNorm gammas (f32)
    bt = bt_ref[...]                         # (3, D) LayerNorm betas  (f32)

    def residual_layernorm(res, y, idx):
        z = res + y
        mean = jnp.mean(z, axis=-1, keepdims=True)
        d = z - mean
        # torch.Tensor.std default: unbiased (ddof = 1); eps added to std,
        # matching the reference LayerNorm exactly (do not "fix").
        var = jnp.sum(d * d, axis=-1, keepdims=True) * (1.0 / (D - 1))
        inv = pl.reciprocal(jnp.sqrt(var) + eps, approx=True)   # EUP slot
        return g[idx:idx + 1, :] * (d * inv) + bt[idx:idx + 1, :]

    q_offset = pl.program_id(1) * TQ         # global row index of this Q tile

    # --- self-attention (causal) residual block ---
    a1 = _multihead(xq_bf, x_all, sa_w_ref, sa_wo_ref[...], n_heads,
                    causal=True, q_offset=q_offset, mask_value=mask_value)
    x1 = residual_layernorm(x, a1, 0)

    # --- cross-attention over the encoder output ---
    a2 = _multihead(x1, enc, ca_w_ref, ca_wo_ref[...], n_heads,
                    causal=False, q_offset=0, mask_value=mask_value)
    x2 = residual_layernorm(x1, a2, 1)

    # --- feed-forward residual block ---
    h = jnp.maximum(_mm_wT(x2, w1_ref[...]) + b1_ref[...], 0.0)   # (TQ, Dh)
    f = _mm_wT(h, w2_ref[...]) + b2_ref[...]                      # (TQ, D)
    o_ref[0] = residual_layernorm(x2, f, 2)


# ---------------------------------------------------------------------------
# Wrapper
# ---------------------------------------------------------------------------
def decoder_layer(x, encoding, params, *, n_heads, eps=1e-6, q_block=None):
    """Fused DecoderLayer forward (drop_ratio = 0)."""
    B, S, D = x.shape
    Se = encoding.shape[1]
    Dh = params['ff_w1'].shape[0]
    assert D % n_heads == 0
    dh = D // n_heads
    if q_block is None:
        q_block = S if S <= 128 else 128
    assert S % q_block == 0, "sequence length must divide by q_block"
    n_qt = S // q_block

    inv_scale = 1.0 / math.sqrt(D)       # Attention is built with d_key = d_model
    mask_value = -INF * inv_scale        # reference subtracts tri(INF) pre-scale

    bf16 = jnp.bfloat16
    x_bf = x.astype(bf16)
    enc_bf = encoding.astype(bf16)

    def wo_heads(w):                     # (D, D) -> (H, D, dh) head-major
        return jnp.transpose(w.reshape(D, n_heads, dh), (1, 0, 2)).astype(bf16)

    # Stacked [wq*inv_scale ; wk ; wv] -> one operand / one DMA per block.
    sa_w = jnp.concatenate([params['sa_wq'] * inv_scale,
                            params['sa_wk'], params['sa_wv']], axis=0).astype(bf16)
    ca_w = jnp.concatenate([params['ca_wq'] * inv_scale,
                            params['ca_wk'], params['ca_wv']], axis=0).astype(bf16)
    sa_wo = wo_heads(params['sa_wo'])
    ca_wo = wo_heads(params['ca_wo'])

    w1 = params['ff_w1'].astype(bf16)
    w2 = params['ff_w2'].astype(bf16)
    b1 = params['ff_b1'].reshape(1, Dh).astype(jnp.float32)
    b2 = params['ff_b2'].reshape(1, D).astype(jnp.float32)
    g = jnp.stack([params['ln1_g'], params['ln2_g'], params['ln3_g']]).astype(jnp.float32)
    bt = jnp.stack([params['ln1_b'], params['ln2_b'], params['ln3_b']]).astype(jnp.float32)

    # Advisory cost model so XLA schedules neighbours around this fused call.
    flops_per_b = (2 * S * 3 * D * D          # self-attn q + fused kv proj
                   + 2 * S * D * D            # cross-attn q proj
                   + 2 * Se * 2 * D * D       # cross-attn fused kv proj
                   + 4 * n_heads * S * S * dh      # self scores + AV
                   + 4 * n_heads * S * Se * dh     # cross scores + AV
                   + 4 * S * D * D            # two output projections
                   + 4 * S * D * Dh)          # FFN
    weight_arrays = (sa_w, sa_wo, ca_w, ca_wo, w1, b1, w2, b2, g, bt)
    bytes_accessed = (sum(int(a.size) * a.dtype.itemsize for a in weight_arrays)
                      + 2 * int(x_bf.size) * 2 + int(enc_bf.size) * 2
                      + B * S * D * 4)
    cost = pl.CostEstimate(flops=int(B * flops_per_b),
                           transcendentals=int(B * n_heads * S * (S + Se)),
                           bytes_accessed=int(bytes_accessed))

    kern = functools.partial(_decoder_layer_kernel, n_heads=n_heads,
                             mask_value=mask_value, eps=eps)
    const2 = lambda b, q: (0, 0)
    const3 = lambda b, q: (0, 0, 0)
    return pl.pallas_call(
        kern,
        out_shape=jax.ShapeDtypeStruct((B, S, D), jnp.float32),
        grid=(B, n_qt),
        in_specs=[
            pl.BlockSpec((1, q_block, D), lambda b, q: (b, q, 0)),  # x (Q tile)
            pl.BlockSpec((1, S, D), lambda b, q: (b, 0, 0)),        # x (full, K/V)
            pl.BlockSpec((1, Se, D), lambda b, q: (b, 0, 0)),       # encoding
            pl.BlockSpec((3 * D, D), const2),                       # self-attn wq|wk|wv
            pl.BlockSpec((n_heads, D, dh), const3),                 # self-attn wo (head-major)
            pl.BlockSpec((3 * D, D), const2),                       # cross-attn wq|wk|wv
            pl.BlockSpec((n_heads, D, dh), const3),                 # cross-attn wo
            pl.BlockSpec((Dh, D), const2),                          # ff w1
            pl.BlockSpec((1, Dh), const2),                          # ff b1
            pl.BlockSpec((D, Dh), const2),                          # ff w2
            pl.BlockSpec((1, D), const2),                           # ff b2
            pl.BlockSpec((3, D), const2),                           # LN gammas
            pl.BlockSpec((3, D), const2),                           # LN betas
        ],
        out_specs=pl.BlockSpec((1, q_block, D), lambda b, q: (b, q, 0)),
        compiler_params=pltpu.CompilerParams(
            dimension_semantics=("parallel", "parallel"),   # batch x Q-tiles across TCs
            vmem_limit_bytes=64 * 1024 * 1024),
        cost_estimate=cost,
    )(x_bf, x_bf, enc_bf, sa_w, sa_wo, ca_w, ca_wo, w1, b1, w2, b2, g, bt)


# ---------------------------------------------------------------------------
# Pure-JAX reference (f32 everywhere) for a tolerance check
# ---------------------------------------------------------------------------
def _reference_decoder_layer(x, enc, p, *, n_heads, eps=1e-6):
    D = x.shape[-1]
    scale = math.sqrt(D)

    def linear(t, w, b=None):
        y = jnp.einsum('...i,oi->...o', t, w)
        return y if b is None else y + b

    def layer_norm(t, g, b):
        mean = t.mean(-1, keepdims=True)
        d = t - mean
        std = jnp.sqrt((d * d).sum(-1, keepdims=True) / (D - 1))
        return g * d / (std + eps) + b

    def mha(xq, xkv, wq, wk, wv, wo, causal):
        Sk = xkv.shape[1]
        q, k, v = linear(xq, wq), linear(xkv, wk), linear(xkv, wv)
        dh = D // n_heads
        outs = []
        for h in range(n_heads):
            sl = slice(h * dh, (h + 1) * dh)
            s = jnp.einsum('bqd,bkd->bqk', q[..., sl], k[..., sl])
            if causal:
                s = s - (jnp.triu(jnp.ones((Sk, Sk), jnp.float32), 1) * INF)[None]
            outs.append(jnp.einsum('bqk,bkd->bqd',
                                   jax.nn.softmax(s / scale, axis=-1), v[..., sl]))
        return linear(jnp.concatenate(outs, -1), wo)

    a = mha(x, x, p['sa_wq'], p['sa_wk'], p['sa_wv'], p['sa_wo'], True)
    x = layer_norm(x + a, p['ln1_g'], p['ln1_b'])
    a = mha(x, enc, p['ca_wq'], p['ca_wk'], p['ca_wv'], p['ca_wo'], False)
    x = layer_norm(x + a, p['ln2_g'], p['ln2_b'])
    f = linear(jax.nn.relu(linear(x, p['ff_w1'], p['ff_b1'])),
               p['ff_w2'], p['ff_b2'])
    return layer_norm(x + f, p['ln3_g'], p['ln3_b'])


# ---------------------------------------------------------------------------
# Demo
# ---------------------------------------------------------------------------
if __name__ == "__main__":
    # Small but lane-dense shapes: D a multiple of 128, S a multiple of 8.
    B, S, S_ENC = 2, 16, 8
    D_MODEL, D_HIDDEN, N_HEADS = 128, 256, 4

    ks = jax.random.split(jax.random.PRNGKey(0), 14)

    def lin(k, dout, din):
        return jax.random.normal(k, (dout, din), jnp.float32) / math.sqrt(din)

    params = {
        'sa_wq': lin(ks[0], D_MODEL, D_MODEL), 'sa_wk': lin(ks[1], D_MODEL, D_MODEL),
        'sa_wv': lin(ks[2], D_MODEL, D_MODEL), 'sa_wo': lin(ks[3], D_MODEL, D_MODEL),
        'ca_wq': lin(ks[4], D_MODEL, D_MODEL), 'ca_wk': lin(ks[5], D_MODEL, D_MODEL),
        'ca_wv': lin(ks[6], D_MODEL, D_MODEL), 'ca_wo': lin(ks[7], D_MODEL, D_MODEL),
        'ff_w1': lin(ks[8], D_HIDDEN, D_MODEL),
        'ff_b1': 0.1 * jax.random.normal(ks[10], (D_HIDDEN,), jnp.float32),
        'ff_w2': lin(ks[9], D_MODEL, D_HIDDEN),
        'ff_b2': 0.1 * jax.random.normal(ks[11], (D_MODEL,), jnp.float32),
        'ln1_g': jnp.ones((D_MODEL,), jnp.float32), 'ln1_b': jnp.zeros((D_MODEL,), jnp.float32),
        'ln2_g': jnp.ones((D_MODEL,), jnp.float32), 'ln2_b': jnp.zeros((D_MODEL,), jnp.float32),
        'ln3_g': jnp.ones((D_MODEL,), jnp.float32), 'ln3_b': jnp.zeros((D_MODEL,), jnp.float32),
    }

    x = jax.random.normal(ks[12], (B, S, D_MODEL), jnp.float32)
    encoding = jax.random.normal(ks[13], (B, S_ENC, D_MODEL), jnp.float32)

    # q_block=8 -> two query tiles per batch element (exercises the 2nd grid axis).
    fwd = jax.jit(functools.partial(decoder_layer, n_heads=N_HEADS, q_block=8))
    out = fwd(x, encoding, params)
    out = jax.block_until_ready(out)

    assert out.shape == (B, S, D_MODEL)
    assert bool(jnp.all(jnp.isfinite(out)))
    ref = _reference_decoder_layer(x, encoding, params, n_heads=N_HEADS)
    # Loose tolerance: kernel matmuls use bf16 operands (f32 accumulate) and
    # bf16 input activations; reference is pure f32.
    assert bool(jnp.allclose(out, ref, rtol=5e-2, atol=2e-1)), \
        float(jnp.max(jnp.abs(out - ref)))
    print("KERNEL_OK")
</pallas_src>

<mosaic_0001>
module attributes {stable_mosaic.version = 11 : i64} {
  func.func @_decoder_layer_kernel(%arg0: i32, %arg1: i32, %arg2: memref<1x8x128xbf16, #tpu.memory_space<vmem>>, %arg3: memref<1x16x128xbf16, #tpu.memory_space<vmem>>, %arg4: memref<1x8x128xbf16, #tpu.memory_space<vmem>>, %arg5: memref<384x128xbf16, #tpu.memory_space<vmem>>, %arg6: memref<4x128x32xbf16, #tpu.memory_space<vmem>>, %arg7: memref<384x128xbf16, #tpu.memory_space<vmem>>, %arg8: memref<4x128x32xbf16, #tpu.memory_space<vmem>>, %arg9: memref<256x128xbf16, #tpu.memory_space<vmem>>, %arg10: memref<1x256xf32, #tpu.memory_space<vmem>>, %arg11: memref<128x256xbf16, #tpu.memory_space<vmem>>, %arg12: memref<1x128xf32, #tpu.memory_space<vmem>>, %arg13: memref<3x128xf32, #tpu.memory_space<vmem>>, %arg14: memref<3x128xf32, #tpu.memory_space<vmem>>, %arg15: memref<1x8x128xf32, #tpu.memory_space<vmem>>) attributes {dimension_semantics = [#tpu.dimension_semantics<parallel>, #tpu.dimension_semantics<parallel>], iteration_bounds = array<i64: 2, 2>, scalar_prefetch = 0 : i64, scratch_operands = 0 : i64, tpu.core_type = #tpu.core_type<tc>, window_params = [{transform_indices = @transform_0, window_bounds = array<i64: 1, 8, 128>}, {transform_indices = @transform_1, window_bounds = array<i64: 1, 16, 128>}, {transform_indices = @transform_2, window_bounds = array<i64: 1, 8, 128>}, {pipeline_mode = #tpu.pipeline_mode<synchronous>, transform_indices = @transform_3, window_bounds = array<i64: 384, 128>}, {pipeline_mode = #tpu.pipeline_mode<synchronous>, transform_indices = @transform_4, window_bounds = array<i64: 4, 128, 32>}, {pipeline_mode = #tpu.pipeline_mode<synchronous>, transform_indices = @transform_5, window_bounds = array<i64: 384, 128>}, {pipeline_mode = #tpu.pipeline_mode<synchronous>, transform_indices = @transform_6, window_bounds = array<i64: 4, 128, 32>}, {pipeline_mode = #tpu.pipeline_mode<synchronous>, transform_indices = @transform_7, window_bounds = array<i64: 256, 128>}, {pipeline_mode = #tpu.pipeline_mode<synchronous>, transform_indices = @transform_8, window_bounds = array<i64: 1, 256>}, {pipeline_mode = #tpu.pipeline_mode<synchronous>, transform_indices = @transform_9, window_bounds = array<i64: 128, 256>}, {pipeline_mode = #tpu.pipeline_mode<synchronous>, transform_indices = @transform_10, window_bounds = array<i64: 1, 128>}, {pipeline_mode = #tpu.pipeline_mode<synchronous>, transform_indices = @transform_11, window_bounds = array<i64: 3, 128>}, {pipeline_mode = #tpu.pipeline_mode<synchronous>, transform_indices = @transform_12, window_bounds = array<i64: 3, 128>}, {transform_indices = @transform_13, window_bounds = array<i64: 1, 8, 128>}]} {
    %c0 = arith.constant 0 : index
    %c0_0 = arith.constant 0 : index
    %c0_1 = arith.constant 0 : index
    %0 = vector.load %arg2[%c0, %c0_0, %c0_1] : memref<1x8x128xbf16, #tpu.memory_space<vmem>>, vector<1x8x128xbf16>
    %1 = vector.shape_cast %0 : vector<1x8x128xbf16> to vector<8x128xbf16>
    %c0_2 = arith.constant 0 : index
    %c0_3 = arith.constant 0 : index
    %c0_4 = arith.constant 0 : index
    %2 = vector.load %arg3[%c0_2, %c0_3, %c0_4] : memref<1x16x128xbf16, #tpu.memory_space<vmem>>, vector<1x16x128xbf16>
    %3 = vector.shape_cast %2 : vector<1x16x128xbf16> to vector<16x128xbf16>
    %c0_5 = arith.constant 0 : index
    %c0_6 = arith.constant 0 : index
    %c0_7 = arith.constant 0 : index
    %4 = vector.load %arg4[%c0_5, %c0_6, %c0_7] : memref<1x8x128xbf16, #tpu.memory_space<vmem>>, vector<1x8x128xbf16>
    %5 = vector.shape_cast %4 : vector<1x8x128xbf16> to vector<8x128xbf16>
    %6 = arith.extf %1 : vector<8x128xbf16> to vector<8x128xf32>
    %c0_8 = arith.constant 0 : index
    %c0_9 = arith.constant 0 : index
    %7 = vector.load %arg13[%c0_8, %c0_9] : memref<3x128xf32, #tpu.memory_space<vmem>>, vector<3x128xf32>
    %c0_10 = arith.constant 0 : index
    %c0_11 = arith.constant 0 : index
    %8 = vector.load %arg14[%c0_10, %c0_11] : memref<3x128xf32, #tpu.memory_space<vmem>>, vector<3x128xf32>
    %c8_i32 = arith.constant 8 : i32
    %9 = arith.muli %arg1, %c8_i32 : i32
    %c0_12 = arith.constant 0 : index
    %c0_13 = arith.constant 0 : index
    %c0_14 = arith.constant 0 : index
    %10 = vector.load %arg6[%c0_12, %c0_13, %c0_14] : memref<4x128x32xbf16, #tpu.memory_space<vmem>>, vector<4x128x32xbf16>
    %c0_15 = arith.constant 0 : index
    %c0_16 = arith.constant 0 : index
    %11 = vector.load %arg5[%c0_15, %c0_16] : memref<384x128xbf16, #tpu.memory_space<vmem>>, vector<128x128xbf16>
    %c128 = arith.constant 128 : index
    %c0_17 = arith.constant 0 : index
    %12 = vector.load %arg5[%c128, %c0_17] : memref<384x128xbf16, #tpu.memory_space<vmem>>, vector<256x128xbf16>
    %cst = arith.constant dense<0.000000e+00> : vector<8x128xf32>
    %13 = tpu.matmul %1, %11, %cst {dimension_numbers = #tpu.dot_dimension_numbers<[1], [1], [0], [0], [0, 0, 1, 0], [], []>} : vector<8x128xbf16>, vector<128x128xbf16>, vector<8x128xf32> -> vector<8x128xf32>
    %cst_18 = arith.constant dense<0.000000e+00> : vector<16x256xf32>
    %14 = tpu.matmul %3, %12, %cst_18 {dimension_numbers = #tpu.dot_dimension_numbers<[1], [1], [0], [0], [0, 0, 1, 0], [], []>} : vector<16x128xbf16>, vector<256x128xbf16>, vector<16x256xf32> -> vector<16x256xf32>
    %15 = vector.shape_cast %13 : vector<8x128xf32> to vector<8x4x32xf32>
    %16 = tpu.transpose %15, [1, 0, 2] : vector<8x4x32xf32> -> vector<4x8x32xf32>
    %17 = vector.shape_cast %14 : vector<16x256xf32> to vector<16x8x32xf32>
    %18 = tpu.transpose %17, [1, 0, 2] : vector<16x8x32xf32> -> vector<8x16x32xf32>
    %19 = vector.extract_strided_slice %18 {offsets = [0, 0, 0], sizes = [4, 16, 32], strides = [1, 1, 1]} : vector<8x16x32xf32> to vector<4x16x32xf32>
    %20 = vector.extract_strided_slice %18 {offsets = [4, 0, 0], sizes = [4, 16, 32], strides = [1, 1, 1]} : vector<8x16x32xf32> to vector<4x16x32xf32>
    %21 = arith.truncf %16 : vector<4x8x32xf32> to vector<4x8x32xbf16>
    %22 = arith.truncf %19 : vector<4x16x32xf32> to vector<4x16x32xbf16>
    "tpu.trace_start"() <{level = 10 : i32, message = "hqe,hke->hqk"}> : () -> ()
    %cst_19 = arith.constant dense<0.000000e+00> : vector<4x8x16xf32>
    %23 = tpu.matmul %21, %22, %cst_19 {dimension_numbers = #tpu.dot_dimension_numbers<[2], [2], [1], [1], [0, 0, 0, 1, 1, 1], [0], [0]>} : vector<4x8x32xbf16>, vector<4x16x32xbf16>, vector<4x8x16xf32> -> vector<4x8x16xf32>
    "tpu.trace_stop"() : () -> ()
    %24 = tpu.iota {dimensions = array<i32: 0>} : vector<8x16xi32>
    %25 = vector.broadcast %9 : i32 to vector<8x16xi32>
    %26 = arith.addi %24, %25 : vector<8x16xi32>
    %27 = tpu.iota {dimensions = array<i32: 1>} : vector<8x16xi32>
    %28 = arith.cmpi sgt, %27, %26 : vector<8x16xi32>
    %29 = vector.shape_cast %28 : vector<8x16xi1> to vector<1x8x16xi1>
    %cst_20 = arith.constant 0xCE52BBF7 : f32
    %30 = vector.shape_cast %29 : vector<1x8x16xi1> to vector<1x8x16xi1>
    %31 = vector.broadcast %30 : vector<1x8x16xi1> to vector<4x8x16xi1>
    %32 = vector.broadcast %cst_20 : f32 to vector<4x8x16xf32>
    %33 = arith.select %31, %32, %23 : vector<4x8x16xi1>, vector<4x8x16xf32>
    %cst_21 = arith.constant dense<0xFF800000> : vector<4x8xf32>
    %34 = vector.multi_reduction <maximumf>, %33, %cst_21 [2] : vector<4x8x16xf32> to vector<4x8xf32>
    %35 = vector.shape_cast %34 : vector<4x8xf32> to vector<4x8x1xf32>
    %36 = vector.broadcast %35 : vector<4x8x1xf32> to vector<4x8x16xf32>
    %37 = arith.subf %33, %36 : vector<4x8x16xf32>
    %38 = math.exp %37 : vector<4x8x16xf32>
    %cst_22 = arith.constant dense<0.000000e+00> : vector<4x8xf32>
    %39 = vector.multi_reduction <add>, %38, %cst_22 [2] : vector<4x8x16xf32> to vector<4x8xf32>
    %40 = vector.shape_cast %39 : vector<4x8xf32> to vector<4x8x1xf32>
    %41 = tpu.reciprocal %40 {approx = true} : vector<4x8x1xf32> -> vector<4x8x1xf32>
    %42 = vector.broadcast %41 : vector<4x8x1xf32> to vector<4x8x16xf32>
    %43 = arith.mulf %38, %42 : vector<4x8x16xf32>
    %44 = arith.truncf %43 : vector<4x8x16xf32> to vector<4x8x16xbf16>
    %45 = arith.truncf %20 : vector<4x16x32xf32> to vector<4x16x32xbf16>
    "tpu.trace_start"() <{level = 10 : i32, message = "hqk,hke->hqe"}> : () -> ()
    %cst_23 = arith.constant dense<0.000000e+00> : vector<4x8x32xf32>
    %46 = tpu.matmul %44, %45, %cst_23 {dimension_numbers = #tpu.dot_dimension_numbers<[2], [1], [1], [2], [0, 0, 0, 1, 1, 2], [0], [0]>} : vector<4x8x16xbf16>, vector<4x16x32xbf16>, vector<4x8x32xf32> -> vector<4x8x32xf32>
    "tpu.trace_stop"() : () -> ()
    %47 = arith.truncf %46 : vector<4x8x32xf32> to vector<4x8x32xbf16>
    "tpu.trace_start"() <{level = 10 : i32, message = "hqe,hde->hqd"}> : () -> ()
    %cst_24 = arith.constant dense<0.000000e+00> : vector<4x8x128xf32>
    %48 = tpu.matmul %47, %10, %cst_24 {dimension_numbers = #tpu.dot_dimension_numbers<[2], [2], [1], [1], [0, 0, 0, 1, 1, 1], [0], [0]>} : vector<4x8x32xbf16>, vector<4x128x32xbf16>, vector<4x8x128xf32> -> vector<4x8x128xf32>
    "tpu.trace_stop"() : () -> ()
    %cst_25 = arith.constant dense<0.000000e+00> : vector<8x128xf32>
    %49 = vector.multi_reduction <add>, %48, %cst_25 [0] : vector<4x8x128xf32> to vector<8x128xf32>
    %50 = arith.addf %6, %49 : vector<8x128xf32>
    %cst_26 = arith.constant dense<0.000000e+00> : vector<8xf32>
    %51 = vector.multi_reduction <add>, %50, %cst_26 [1] : vector<8x128xf32> to vector<8xf32>
    %52 = vector.shape_cast %51 : vector<8xf32> to vector<8x1xf32>
    %cst_27 = arith.constant 1.280000e+02 : f32
    %53 = vector.broadcast %cst_27 : f32 to vector<8x1xf32>
    %54 = arith.divf %52, %53 : vector<8x1xf32>
    %55 = vector.broadcast %54 : vector<8x1xf32> to vector<8x128xf32>
    %56 = arith.subf %50, %55 : vector<8x128xf32>
    %57 = arith.mulf %56, %56 : vector<8x128xf32>
    %cst_28 = arith.constant dense<0.000000e+00> : vector<8xf32>
    %58 = vector.multi_reduction <add>, %57, %cst_28 [1] : vector<8x128xf32> to vector<8xf32>
    %59 = vector.shape_cast %58 : vector<8xf32> to vector<8x1xf32>
    %cst_29 = arith.constant 0.00787401571 : f32
    %60 = vector.broadcast %cst_29 : f32 to vector<8x1xf32>
    %61 = arith.mulf %59, %60 : vector<8x1xf32>
    %62 = math.sqrt %61 : vector<8x1xf32>
    %cst_30 = arith.constant 9.99999997E-7 : f32
    %63 = vector.broadcast %cst_30 : f32 to vector<8x1xf32>
    %64 = arith.addf %62, %63 : vector<8x1xf32>
    %65 = tpu.reciprocal %64 {approx = true} : vector<8x1xf32> -> vector<8x1xf32>
    %66 = vector.extract_strided_slice %7 {offsets = [0, 0], sizes = [1, 128], strides = [1, 1]} : vector<3x128xf32> to vector<1x128xf32>
    %67 = vector.broadcast %65 : vector<8x1xf32> to vector<8x128xf32>
    %68 = arith.mulf %56, %67 : vector<8x128xf32>
    %69 = vector.broadcast %66 : vector<1x128xf32> to vector<8x128xf32>
    %70 = arith.mulf %69, %68 : vector<8x128xf32>
    %71 = vector.extract_strided_slice %8 {offsets = [0, 0], sizes = [1, 128], strides = [1, 1]} : vector<3x128xf32> to vector<1x128xf32>
    %72 = vector.broadcast %71 : vector<1x128xf32> to vector<8x128xf32>
    %73 = arith.addf %70, %72 : vector<8x128xf32>
    %c0_31 = arith.constant 0 : index
    %c0_32 = arith.constant 0 : index
    %c0_33 = arith.constant 0 : index
    %74 = vector.load %arg8[%c0_31, %c0_32, %c0_33] : memref<4x128x32xbf16, #tpu.memory_space<vmem>>, vector<4x128x32xbf16>
    %c0_34 = arith.constant 0 : index
    %c0_35 = arith.constant 0 : index
    %75 = vector.load %arg7[%c0_34, %c0_35] : memref<384x128xbf16, #tpu.memory_space<vmem>>, vector<128x128xbf16>
    %c128_36 = arith.constant 128 : index
    %c0_37 = arith.constant 0 : index
    %76 = vector.load %arg7[%c128_36, %c0_37] : memref<384x128xbf16, #tpu.memory_space<vmem>>, vector<256x128xbf16>
    %77 = arith.truncf %73 : vector<8x128xf32> to vector<8x128xbf16>
    %cst_38 = arith.constant dense<0.000000e+00> : vector<8x128xf32>
    %78 = tpu.matmul %77, %75, %cst_38 {dimension_numbers = #tpu.dot_dimension_numbers<[1], [1], [0], [0], [0, 0, 1, 0], [], []>} : vector<8x128xbf16>, vector<128x128xbf16>, vector<8x128xf32> -> vector<8x128xf32>
    %cst_39 = arith.constant dense<0.000000e+00> : vector<8x256xf32>
    %79 = tpu.matmul %5, %76, %cst_39 {dimension_numbers = #tpu.dot_dimension_numbers<[1], [1], [0], [0], [0, 0, 1, 0], [], []>} : vector<8x128xbf16>, vector<256x128xbf16>, vector<8x256xf32> -> vector<8x256xf32>
    %80 = vector.shape_cast %78 : vector<8x128xf32> to vector<8x4x32xf32>
    %81 = tpu.transpose %80, [1, 0, 2] : vector<8x4x32xf32> -> vector<4x8x32xf32>
    %82 = vector.shape_cast %79 : vector<8x256xf32> to vector<8x8x32xf32>
    %83 = tpu.transpose %82, [1, 0, 2] : vector<8x8x32xf32> -> vector<8x8x32xf32>
    %84 = vector.extract_strided_slice %83 {offsets = [0, 0, 0], sizes = [4, 8, 32], strides = [1, 1, 1]} : vector<8x8x32xf32> to vector<4x8x32xf32>
    %85 = vector.extract_strided_slice %83 {offsets = [4, 0, 0], sizes = [4, 8, 32], strides = [1, 1, 1]} : vector<8x8x32xf32> to vector<4x8x32xf32>
    %86 = arith.truncf %81 : vector<4x8x32xf32> to vector<4x8x32xbf16>
    %87 = arith.truncf %84 : vector<4x8x32xf32> to vector<4x8x32xbf16>
    "tpu.trace_start"() <{level = 10 : i32, message = "hqe,hke->hqk"}> : () -> ()
    %cst_40 = arith.constant dense<0.000000e+00> : vector<4x8x8xf32>
    %88 = tpu.matmul %86, %87, %cst_40 {dimension_numbers = #tpu.dot_dimension_numbers<[2], [2], [1], [1], [0, 0, 0, 1, 1, 1], [0], [0]>} : vector<4x8x32xbf16>, vector<4x8x32xbf16>, vector<4x8x8xf32> -> vector<4x8x8xf32>
    "tpu.trace_stop"() : () -> ()
    %cst_41 = arith.constant dense<0xFF800000> : vector<4x8xf32>
    %89 = vector.multi_reduction <maximumf>, %88, %cst_41 [2] : vector<4x8x8xf32> to vector<4x8xf32>
    %90 = vector.shape_cast %89 : vector<4x8xf32> to vector<4x8x1xf32>
    %91 = vector.broadcast %90 : vector<4x8x1xf32> to vector<4x8x8xf32>
    %92 = arith.subf %88, %91 : vector<4x8x8xf32>
    %93 = math.exp %92 : vector<4x8x8xf32>
    %cst_42 = arith.constant dense<0.000000e+00> : vector<4x8xf32>
    %94 = vector.multi_reduction <add>, %93, %cst_42 [2] : vector<4x8x8xf32> to vector<4x8xf32>
    %95 = vector.shape_cast %94 : vector<4x8xf32> to vector<4x8x1xf32>
    %96 = tpu.reciprocal %95 {approx = true} : vector<4x8x1xf32> -> vector<4x8x1xf32>
    %97 = vector.broadcast %96 : vector<4x8x1xf32> to vector<4x8x8xf32>
    %98 = arith.mulf %93, %97 : vector<4x8x8xf32>
    %99 = arith.truncf %98 : vector<4x8x8xf32> to vector<4x8x8xbf16>
    %100 = arith.truncf %85 : vector<4x8x32xf32> to vector<4x8x32xbf16>
    "tpu.trace_start"() <{level = 10 : i32, message = "hqk,hke->hqe"}> : () -> ()
    %cst_43 = arith.constant dense<0.000000e+00> : vector<4x8x32xf32>
    %101 = tpu.matmul %99, %100, %cst_43 {dimension_numbers = #tpu.dot_dimension_numbers<[2], [1], [1], [2], [0, 0, 0, 1, 1, 2], [0], [0]>} : vector<4x8x8xbf16>, vector<4x8x32xbf16>, vector<4x8x32xf32> -> vector<4x8x32xf32>
    "tpu.trace_stop"() : () -> ()
    %102 = arith.truncf %101 : vector<4x8x32xf32> to vector<4x8x32xbf16>
    "tpu.trace_start"() <{level = 10 : i32, message = "hqe,hde->hqd"}> : () -> ()
    %cst_44 = arith.constant dense<0.000000e+00> : vector<4x8x128xf32>
    %103 = tpu.matmul %102, %74, %cst_44 {dimension_numbers = #tpu.dot_dimension_numbers<[2], [2], [1], [1], [0, 0, 0, 1, 1, 1], [0], [0]>} : vector<4x8x32xbf16>, vector<4x128x32xbf16>, vector<4x8x128xf32> -> vector<4x8x128xf32>
    "tpu.trace_stop"() : () -> ()
    %cst_45 = arith.constant dense<0.000000e+00> : vector<8x128xf32>
    %104 = vector.multi_reduction <add>, %103, %cst_45 [0] : vector<4x8x128xf32> to vector<8x128xf32>
    %105 = arith.addf %73, %104 : vector<8x128xf32>
    %cst_46 = arith.constant dense<0.000000e+00> : vector<8xf32>
    %106 = vector.multi_reduction <add>, %105, %cst_46 [1] : vector<8x128xf32> to vector<8xf32>
    %107 = vector.shape_cast %106 : vector<8xf32> to vector<8x1xf32>
    %cst_47 = arith.constant 1.280000e+02 : f32
    %108 = vector.broadcast %cst_47 : f32 to vector<8x1xf32>
    %109 = arith.divf %107, %108 : vector<8x1xf32>
    %110 = vector.broadcast %109 : vector<8x1xf32> to vector<8x128xf32>
    %111 = arith.subf %105, %110 : vector<8x128xf32>
    %112 = arith.mulf %111, %111 : vector<8x128xf32>
    %cst_48 = arith.constant dense<0.000000e+00> : vector<8xf32>
    %113 = vector.multi_reduction <add>, %112, %cst_48 [1] : vector<8x128xf32> to vector<8xf32>
    %114 = vector.shape_cast %113 : vector<8xf32> to vector<8x1xf32>
    %cst_49 = arith.constant 0.00787401571 : f32
    %115 = vector.broadcast %cst_49 : f32 to vector<8x1xf32>
    %116 = arith.mulf %114, %115 : vector<8x1xf32>
    %117 = math.sqrt %116 : vector<8x1xf32>
    %cst_50 = arith.constant 9.99999997E-7 : f32
    %118 = vector.broadcast %cst_50 : f32 to vector<8x1xf32>
    %119 = arith.addf %117, %118 : vector<8x1xf32>
    %120 = tpu.reciprocal %119 {approx = true} : vector<8x1xf32> -> vector<8x1xf32>
    %121 = vector.extract_strided_slice %7 {offsets = [1, 0], sizes = [1, 128], strides = [1, 1]} : vector<3x128xf32> to vector<1x128xf32>
    %122 = vector.broadcast %120 : vector<8x1xf32> to vector<8x128xf32>
    %123 = arith.mulf %111, %122 : vector<8x128xf32>
    %124 = vector.broadcast %121 : vector<1x128xf32> to vector<8x128xf32>
    %125 = arith.mulf %124, %123 : vector<8x128xf32>
    %126 = vector.extract_strided_slice %8 {offsets = [1, 0], sizes = [1, 128], strides = [1, 1]} : vector<3x128xf32> to vector<1x128xf32>
    %127 = vector.broadcast %126 : vector<1x128xf32> to vector<8x128xf32>
    %128 = arith.addf %125, %127 : vector<8x128xf32>
    %c0_51 = arith.constant 0 : index
    %c0_52 = arith.constant 0 : index
    %129 = vector.load %arg9[%c0_51, %c0_52] : memref<256x128xbf16, #tpu.memory_space<vmem>>, vector<256x128xbf16>
    %130 = arith.truncf %128 : vector<8x128xf32> to vector<8x128xbf16>
    %cst_53 = arith.constant dense<0.000000e+00> : vector<8x256xf32>
    %131 = tpu.matmul %130, %129, %cst_53 {dimension_numbers = #tpu.dot_dimension_numbers<[1], [1], [0], [0], [0, 0, 1, 0], [], []>} : vector<8x128xbf16>, vector<256x128xbf16>, vector<8x256xf32> -> vector<8x256xf32>
    %c0_54 = arith.constant 0 : index
    %c0_55 = arith.constant 0 : index
    %132 = vector.load %arg10[%c0_54, %c0_55] : memref<1x256xf32, #tpu.memory_space<vmem>>, vector<1x256xf32>
    %133 = vector.broadcast %132 : vector<1x256xf32> to vector<8x256xf32>
    %134 = arith.addf %131, %133 : vector<8x256xf32>
    %cst_56 = arith.constant 0.000000e+00 : f32
    %135 = vector.broadcast %cst_56 : f32 to vector<8x256xf32>
    %136 = arith.maximumf %134, %135 : vector<8x256xf32>
    %c0_57 = arith.constant 0 : index
    %c0_58 = arith.constant 0 : index
    %137 = vector.load %arg11[%c0_57, %c0_58] : memref<128x256xbf16, #tpu.memory_space<vmem>>, vector<128x256xbf16>
    %138 = arith.truncf %136 : vector<8x256xf32> to vector<8x256xbf16>
    %cst_59 = arith.constant dense<0.000000e+00> : vector<8x128xf32>
    %139 = tpu.matmul %138, %137, %cst_59 {dimension_numbers = #tpu.dot_dimension_numbers<[1], [1], [0], [0], [0, 0, 1, 0], [], []>} : vector<8x256xbf16>, vector<128x256xbf16>, vector<8x128xf32> -> vector<8x128xf32>
    %c0_60 = arith.constant 0 : index
    %c0_61 = arith.constant 0 : index
    %140 = vector.load %arg12[%c0_60, %c0_61] : memref<1x128xf32, #tpu.memory_space<vmem>>, vector<1x128xf32>
    %141 = vector.broadcast %140 : vector<1x128xf32> to vector<8x128xf32>
    %142 = arith.addf %139, %141 : vector<8x128xf32>
    %143 = arith.addf %128, %142 : vector<8x128xf32>
    %cst_62 = arith.constant dense<0.000000e+00> : vector<8xf32>
    %144 = vector.multi_reduction <add>, %143, %cst_62 [1] : vector<8x128xf32> to vector<8xf32>
    %145 = vector.shape_cast %144 : vector<8xf32> to vector<8x1xf32>
    %cst_63 = arith.constant 1.280000e+02 : f32
    %146 = vector.broadcast %cst_63 : f32 to vector<8x1xf32>
    %147 = arith.divf %145, %146 : vector<8x1xf32>
    %148 = vector.broadcast %147 : vector<8x1xf32> to vector<8x128xf32>
    %149 = arith.subf %143, %148 : vector<8x128xf32>
    %150 = arith.mulf %149, %149 : vector<8x128xf32>
    %cst_64 = arith.constant dense<0.000000e+00> : vector<8xf32>
    %151 = vector.multi_reduction <add>, %150, %cst_64 [1] : vector<8x128xf32> to vector<8xf32>
    %152 = vector.shape_cast %151 : vector<8xf32> to vector<8x1xf32>
    %cst_65 = arith.constant 0.00787401571 : f32
    %153 = vector.broadcast %cst_65 : f32 to vector<8x1xf32>
    %154 = arith.mulf %152, %153 : vector<8x1xf32>
    %155 = math.sqrt %154 : vector<8x1xf32>
    %cst_66 = arith.constant 9.99999997E-7 : f32
    %156 = vector.broadcast %cst_66 : f32 to vector<8x1xf32>
    %157 = arith.addf %155, %156 : vector<8x1xf32>
    %158 = tpu.reciprocal %157 {approx = true} : vector<8x1xf32> -> vector<8x1xf32>
    %159 = vector.extract_strided_slice %7 {offsets = [2, 0], sizes = [1, 128], strides = [1, 1]} : vector<3x128xf32> to vector<1x128xf32>
    %160 = vector.broadcast %158 : vector<8x1xf32> to vector<8x128xf32>
    %161 = arith.mulf %149, %160 : vector<8x128xf32>
    %162 = vector.broadcast %159 : vector<1x128xf32> to vector<8x128xf32>
    %163 = arith.mulf %162, %161 : vector<8x128xf32>
    %164 = vector.extract_strided_slice %8 {offsets = [2, 0], sizes = [1, 128], strides = [1, 1]} : vector<3x128xf32> to vector<1x128xf32>
    %165 = vector.broadcast %164 : vector<1x128xf32> to vector<8x128xf32>
    %166 = arith.addf %163, %165 : vector<8x128xf32>
    %c0_67 = arith.constant 0 : index
    %c0_68 = arith.constant 0 : index
    %c0_69 = arith.constant 0 : index
    %167 = vector.load %arg15[%c0_67, %c0_68, %c0_69] : memref<1x8x128xf32, #tpu.memory_space<vmem>>, vector<1x8x128xf32>
    %168 = vector.shape_cast %167 : vector<1x8x128xf32> to vector<8x128xf32>
    %169 = vector.shape_cast %166 : vector<8x128xf32> to vector<1x8x128xf32>
    tpu.vector_store %arg15[%c0_67, %c0_68, %c0_69], %169 {strides = array<i32>} : memref<1x8x128xf32, #tpu.memory_space<vmem>>, vector<1x8x128xf32>,
    return
  }
  func.func @transform_0(%arg0: i32, %arg1: i32) -> (i32, i32, i32) {
    %c0_i32 = arith.constant 0 : i32
    %c0_i32_0 = arith.constant 0 : i32
    return %arg0, %arg1, %c0_i32 : i32, i32, i32
  }
  func.func @transform_1(%arg0: i32, %arg1: i32) -> (i32, i32, i32) {
    %c0_i32 = arith.constant 0 : i32
    %c0_i32_0 = arith.constant 0 : i32
    %c0_i32_1 = arith.constant 0 : i32
    return %arg0, %c0_i32, %c0_i32_0 : i32, i32, i32
  }
  func.func @transform_2(%arg0: i32, %arg1: i32) -> (i32, i32, i32) {
    %c0_i32 = arith.constant 0 : i32
    %c0_i32_0 = arith.constant 0 : i32
    %c0_i32_1 = arith.constant 0 : i32
    return %arg0, %c0_i32, %c0_i32_0 : i32, i32, i32
  }
  func.func @transform_3(%arg0: i32, %arg1: i32) -> (i32, i32) {
    %c0_i32 = arith.constant 0 : i32
    %c0_i32_0 = arith.constant 0 : i32
    %c0_i32_1 = arith.constant 0 : i32
    return %c0_i32, %c0_i32_0 : i32, i32
  }
  func.func @transform_4(%arg0: i32, %arg1: i32) -> (i32, i32, i32) {
    %c0_i32 = arith.constant 0 : i32
    %c0_i32_0 = arith.constant 0 : i32
    %c0_i32_1 = arith.constant 0 : i32
    %c0_i32_2 = arith.constant 0 : i32
    return %c0_i32, %c0_i32_0, %c0_i32_1 : i32, i32, i32
  }
  func.func @transform_5(%arg0: i32, %arg1: i32) -> (i32, i32) {
    %c0_i32 = arith.constant 0 : i32
    %c0_i32_0 = arith.constant 0 : i32
    %c0_i32_1 = arith.constant 0 : i32
    return %c0_i32, %c0_i32_0 : i32, i32
  }
  func.func @transform_6(%arg0: i32, %arg1: i32) -> (i32, i32, i32) {
    %c0_i32 = arith.constant 0 : i32
    %c0_i32_0 = arith.constant 0 : i32
    %c0_i32_1 = arith.constant 0 : i32
    %c0_i32_2 = arith.constant 0 : i32
    return %c0_i32, %c0_i32_0, %c0_i32_1 : i32, i32, i32
  }
  func.func @transform_7(%arg0: i32, %arg1: i32) -> (i32, i32) {
    %c0_i32 = arith.constant 0 : i32
    %c0_i32_0 = arith.constant 0 : i32
    %c0_i32_1 = arith.constant 0 : i32
    return %c0_i32, %c0_i32_0 : i32, i32
  }
  func.func @transform_8(%arg0: i32, %arg1: i32) -> (i32, i32) {
    %c0_i32 = arith.constant 0 : i32
    %c0_i32_0 = arith.constant 0 : i32
    %c0_i32_1 = arith.constant 0 : i32
    return %c0_i32, %c0_i32_0 : i32, i32
  }
  func.func @transform_9(%arg0: i32, %arg1: i32) -> (i32, i32) {
    %c0_i32 = arith.constant 0 : i32
    %c0_i32_0 = arith.constant 0 : i32
    %c0_i32_1 = arith.constant 0 : i32
    return %c0_i32, %c0_i32_0 : i32, i32
  }
  func.func @transform_10(%arg0: i32, %arg1: i32) -> (i32, i32) {
    %c0_i32 = arith.constant 0 : i32
    %c0_i32_0 = arith.constant 0 : i32
    %c0_i32_1 = arith.constant 0 : i32
    return %c0_i32, %c0_i32_0 : i32, i32
  }
  func.func @transform_11(%arg0: i32, %arg1: i32) -> (i32, i32) {
    %c0_i32 = arith.constant 0 : i32
    %c0_i32_0 = arith.constant 0 : i32
    %c0_i32_1 = arith.constant 0 : i32
    return %c0_i32, %c0_i32_0 : i32, i32
  }
  func.func @transform_12(%arg0: i32, %arg1: i32) -> (i32, i32) {
    %c0_i32 = arith.constant 0 : i32
    %c0_i32_0 = arith.constant 0 : i32
    %c0_i32_1 = arith.constant 0 : i32
    return %c0_i32, %c0_i32_0 : i32, i32
  }
  func.func @transform_13(%arg0: i32, %arg1: i32) -> (i32, i32, i32) {
    %c0_i32 = arith.constant 0 : i32
    %c0_i32_0 = arith.constant 0 : i32
    return %arg0, %arg1, %c0_i32 : i32, i32, i32
  }
}

</mosaic_0001>

<llo_original>
// kernel: decoder_layer.1
$region0: #{decoder_layer.1}
  #allocation0 [shape = 'u32[]', space=smem, size = 0x4, offset = 0x4, fixed_abs, tag = 'smem constant byte address 0x4 - core index']
  #allocation1 [shape = 'u32[144,128]{1,0:T(1,128)}', space=vmem, size = 0x12000, scoped, tag = 'internal scratch']
  %s0 = inlined_call_operand.hbm [shape: bf16[2,16,128], index: 0, kind: input, shape index: {}, may-alias: {0,1}]
  %s1 = inlined_call_operand.hbm [shape: bf16[2,16,128], index: 1, kind: input, shape index: {}, may-alias: {0,1}]
  %s2 = inlined_call_operand.hbm [shape: bf16[2,8,128], index: 2, kind: input, shape index: {}]
  %s3 = inlined_call_operand.hbm [shape: bf16[384,128], index: 3, kind: input, shape index: {}]
  %s4 = inlined_call_operand.hbm [shape: bf16[4,128,32], index: 4, kind: input, shape index: {}]
  %s5 = inlined_call_operand.hbm [shape: bf16[384,128], index: 5, kind: input, shape index: {}]
  %s6 = inlined_call_operand.hbm [shape: bf16[4,128,32], index: 6, kind: input, shape index: {}]
  %s7 = inlined_call_operand.hbm [shape: bf16[256,128], index: 7, kind: input, shape index: {}]
  %s8 = inlined_call_operand.hbm [shape: f32[1,256], index: 8, kind: input, shape index: {}]
  %s9 = inlined_call_operand.hbm [shape: bf16[128,256], index: 9, kind: input, shape index: {}]
  %s10 = inlined_call_operand.hbm [shape: f32[1,128], index: 10, kind: input, shape index: {}]
  %s11 = inlined_call_operand.hbm [shape: f32[3,128], index: 11, kind: input, shape index: {}]
  %s12 = inlined_call_operand.hbm [shape: f32[3,128], index: 12, kind: input, shape index: {}]
  %s13 = inlined_call_operand.hbm [shape: f32[2,16,128], index: 13, kind: output, shape index: {}]
  %s14 = sld [smem:[#allocation0]]
  $region137: #{decoder_layer.1} parent=0
    _
  %s16 = ssub.s32 1, %s14
  %s17 = scalar_select 0, %s16, %s14
  $region1: #{decoder_layer.1} parent=0
    #allocation2 [shape = 'u8[4096]{0}', space=vmem, size = 0x1000, scoped, tag = 'input window, operand 0']
    #allocation3 [shape = 's32[2]{0}', space=sflag, size = 0x8, scoped, tag = 'scoped memory for decoder_layer.1']
    #allocation4 [shape = 's32[2]{0}', space=sflag, size = 0x8, scoped, tag = 'scoped memory for decoder_layer.1']
    #allocation5 [shape = 'u8[8192]{0}', space=vmem, size = 0x2000, scoped, tag = 'input window, operand 1']
    #allocation6 [shape = 's32[2]{0}', space=sflag, size = 0x8, scoped, tag = 'scoped memory for decoder_layer.1']
    #allocation7 [shape = 'u8[4096]{0}', space=vmem, size = 0x1000, scoped, tag = 'input window, operand 2']
    #allocation8 [shape = 'u8[98304]{0}', space=vmem, size = 0x18000, scoped, tag = 'input window, operand 3, single buffered']
    #allocation9 [shape = 's32[1]{0}', space=sflag, size = 0x4, scoped, tag = 'scoped memory for decoder_layer.1']
    #allocation10 [shape = 'u8[131072]{0}', space=vmem, size = 0x20000, scoped, tag = 'input window, operand 4, single buffered']
    #allocation11 [shape = 'u8[98304]{0}', space=vmem, size = 0x18000, scoped, tag = 'input window, operand 5, single buffered']
    #allocation12 [shape = 's32[1]{0}', space=sflag, size = 0x4, scoped, tag = 'scoped memory for decoder_layer.1']
    #allocation13 [shape = 'u8[131072]{0}', space=vmem, size = 0x20000, scoped, tag = 'input window, operand 6, single buffered']
    #allocation14 [shape = 'u8[65536]{0}', space=vmem, size = 0x10000, scoped, tag = 'input window, operand 7, single buffered']
    #allocation15 [shape = 's32[1]{0}', space=sflag, size = 0x4, scoped, tag = 'scoped memory for decoder_layer.1']
    #allocation16 [shape = 'u8[1024]{0}', space=vmem, size = 0x400, scoped, tag = 'input window, operand 8, single buffered']
    #allocation17 [shape = 'u8[65536]{0}', space=vmem, size = 0x10000, scoped, tag = 'input window, operand 9, single buffered']
    #allocation18 [shape = 's32[1]{0}', space=sflag, size = 0x4, scoped, tag = 'scoped memory for decoder_layer.1']
    #allocation19 [shape = 'u8[512]{0}', space=vmem, size = 0x400, scoped, tag = 'input window, operand 10, single buffered']
    #allocation20 [shape = 'u8[2048]{0}', space=vmem, size = 0x800, scoped, tag = 'input window, operand 11, single buffered']
    #allocation21 [shape = 's32[1]{0}', space=sflag, size = 0x4, scoped, tag = 'scoped memory for decoder_layer.1']
    #allocation22 [shape = 'u8[2048]{0}', space=vmem, size = 0x800, scoped, tag = 'input window, operand 12, single buffered']
    #allocation23 [shape = 'u8[8192]{0}', space=vmem, size = 0x2000, scoped, tag = 'output window, operand 0']
    %18 = vsyncpa [#allocation3], 0
    %s19 = scalar_lea.sflag [#allocation3], 1
    %20 = vsyncpa %s19, 0
    %21 = vsyncpa [#allocation6], 0
    %s22 = scalar_lea.sflag [#allocation6], 1
    %23 = vsyncpa %s22, 0
    %24 = vsyncpa [#allocation9], 0
    %25 = vsyncpa [#allocation12], 0
    %26 = vsyncpa [#allocation15], 0
    %27 = vsyncpa [#allocation18], 0
    %28 = vsyncpa [#allocation21], 0
    %29 = vsyncpa [#allocation4], 0
    %s30 = scalar_lea.sflag [#allocation4], 1
    %31 = vsyncpa %s30, 0
    loop: start=0, step=1, limit=6
    $region2: #{decoder_layer.1} parent=1 // loop_pre_header
      _
    $region3: #{decoder_layer.1} parent=1 // loop_header
      %s33 = sphi 0, %s37
      %p34 = scmp.ge.s32.totalorder %s33, 6
      %s40 = sphi 0, %s52
      %s41 = sphi 0, %s48
      %s42 = sphi 0, %s40
      %s43 = sphi 0, %s41
      %s44 = sphi 0, %s42
      %s45 = sphi 0, %s43
      %s57 = sphi 0, %s59
      %s60 = sphi 0, %s57
      %s61 = sphi 0, %s60
      %s77 = sphi 0, %s61
      %s83 = sphi 0, %s85
      %s86 = sphi 0, %s83
      %s87 = sphi 0, %s86
      %s103 = sphi 0, %s87
      %s109 = sphi 0, %s111
      %s112 = sphi 0, %s109
      %s113 = sphi 0, %s112
      %s129 = sphi 0, %s113
      %s133 = sphi 0, %s133
      %s135 = sphi 0, %s133
      %s136 = sphi 0, %s135
      %s150 = sphi 0, %s136
      %s154 = sphi 0, %s154
      %s156 = sphi 0, %s154
      %s157 = sphi 0, %s156
      %s171 = sphi 0, %s157
      %s175 = sphi 0, %s175
      %s177 = sphi 0, %s175
      %s178 = sphi 0, %s177
      %s192 = sphi 0, %s178
      %s196 = sphi 0, %s196
      %s198 = sphi 0, %s196
      %s199 = sphi 0, %s198
      %s213 = sphi 0, %s199
      %s217 = sphi 0, %s217
      %s219 = sphi 0, %s217
      %s220 = sphi 0, %s219
      %s234 = sphi 0, %s220
      %s238 = sphi 0, %s238
      %s240 = sphi 0, %s238
      %s241 = sphi 0, %s240
      %s255 = sphi 0, %s241
      %s259 = sphi 0, %s259
      %s261 = sphi 0, %s259
      %s262 = sphi 0, %s261
      %s276 = sphi 0, %s262
      %s280 = sphi 0, %s280
      %s282 = sphi 0, %s280
      %s283 = sphi 0, %s282
      %s297 = sphi 0, %s283
      %s301 = sphi 0, %s301
      %s303 = sphi 0, %s301
      %s304 = sphi 0, %s303
      %s318 = sphi 0, %s304
      %s322 = sphi 0, %s322
      %s324 = sphi 0, %s322
      %s325 = sphi 0, %s324
      %s339 = sphi 0, %s325
      %s347 = sphi 0, %s349
      %s350 = sphi 0, %s347
      %s351 = sphi 0, %s350
      %s367 = sphi 0, %s351
    $region4: #{decoder_layer.1} parent=1 // loop_header_branch
      %36 = sbr.rel (%p34) target = $region8
    $region5: #{decoder_layer.1} parent=1 // loop_body
      %s38 = ssub.s32 %s33, 1
      %s39 = ssub.s32 %s33, 2
      %s46 = sadd.s32 1, %s41
      %p47 = scmp.ge.s32.totalorder %s46, 2
      %s48 = scalar_select %p47, 0, %s46
      %s49 = sadd.s32 1, %s40
      %s50 = scalar_select %p47, %s49, %s40
      %p51 = scmp.ge.s32.totalorder %s50, 2
      %s52 = scalar_select %p51, 0, %s50
      %s53 = ssub.s32 %s40, %s52
      %s54 = ssub.s32 %s41, %s48
      %s55 = sor.u32 %s53, %s54
      %p56 = scmp.eq.s32.totalorder %s55, 0
      %s58 = sadd.s32 %s57, 1
      %s59 = scalar_select %p56, %s57, %s58
      %p62 = pneg %p56
      %p63 = scmp.eq.s32.totalorder %s33, 3
      %p64 = por %p62, %p63
      %p65 = scmp.ne.s32.totalorder %s57, %s60
      %p66 = scmp.eq.s32.totalorder %s33, 0
      %p67 = por %p65, %p66
      %p68 = scmp.ne.s32.totalorder %s57, %s60
      %p69 = scmp.eq.s32.totalorder %s38, 3
      %p70 = por %p68, %p69
      %p71 = scmp.ne.s32.totalorder %s60, %s61
      %p72 = scmp.eq.s32.totalorder %s38, 0
      %p73 = por %p71, %p72
      %p74 = scmp.ne.s32.totalorder %s60, %s61
      %p75 = scmp.eq.s32.totalorder %s39, 3
      %p76 = por %p74, %p75
      %p78 = scmp.ne.s32.totalorder %s61, %s77
      %p79 = scmp.eq.s32.totalorder %s39, 0
      %p80 = por %p78, %p79
      %s81 = ssub.s32 %s40, %s52
      %p82 = scmp.eq.s32.totalorder %s81, 0
      %s84 = sadd.s32 %s83, 1
      %s85 = scalar_select %p82, %s83, %s84
      %p88 = pneg %p82
      %p89 = scmp.eq.s32.totalorder %s33, 3
      %p90 = por %p88, %p89
      %p91 = scmp.ne.s32.totalorder %s83, %s86
      %p92 = scmp.eq.s32.totalorder %s33, 0
      %p93 = por %p91, %p92
      %p94 = scmp.ne.s32.totalorder %s83, %s86
      %p95 = scmp.eq.s32.totalorder %s38, 3
      %p96 = por %p94, %p95
      %p97 = scmp.ne.s32.totalorder %s86, %s87
      %p98 = scmp.eq.s32.totalorder %s38, 0
      %p99 = por %p97, %p98
      %p100 = scmp.ne.s32.totalorder %s86, %s87
      %p101 = scmp.eq.s32.totalorder %s39, 3
      %p102 = por %p100, %p101
      %p104 = scmp.ne.s32.totalorder %s87, %s103
      %p105 = scmp.eq.s32.totalorder %s39, 0
      %p106 = por %p104, %p105
      %s107 = ssub.s32 %s40, %s52
      %p108 = scmp.eq.s32.totalorder %s107, 0
      %s110 = sadd.s32 %s109, 1
      %s111 = scalar_select %p108, %s109, %s110
      %p114 = pneg %p108
      %p115 = scmp.eq.s32.totalorder %s33, 3
      %p116 = por %p114, %p115
      %p117 = scmp.ne.s32.totalorder %s109, %s112
      %p118 = scmp.eq.s32.totalorder %s33, 0
      %p119 = por %p117, %p118
      %p120 = scmp.ne.s32.totalorder %s109, %s112
      %p121 = scmp.eq.s32.totalorder %s38, 3
      %p122 = por %p120, %p121
      %p123 = scmp.ne.s32.totalorder %s112, %s113
      %p124 = scmp.eq.s32.totalorder %s38, 0
      %p125 = por %p123, %p124
      %p126 = scmp.ne.s32.totalorder %s112, %s113
      %p127 = scmp.eq.s32.totalorder %s39, 3
      %p128 = por %p126, %p127
      %p130 = scmp.ne.s32.totalorder %s113, %s129
      %p131 = scmp.eq.s32.totalorder %s39, 0
      %p132 = por %p130, %p131
      %s134 = sadd.s32 %s133, 1
      %p137 = scmp.eq.s32.totalorder %s33, 3
      %p138 = scmp.ne.s32.totalorder %s133, %s135
      %p139 = scmp.eq.s32.totalorder %s33, 0
      %p140 = por %p138, %p139
      %p141 = scmp.ne.s32.totalorder %s133, %s135
      %p142 = scmp.eq.s32.totalorder %s38, 3
      %p143 = por %p141, %p142
      %p144 = scmp.ne.s32.totalorder %s135, %s136
      %p145 = scmp.eq.s32.totalorder %s38, 0
      %p146 = por %p144, %p145
      %p147 = scmp.ne.s32.totalorder %s135, %s136
      %p148 = scmp.eq.s32.totalorder %s39, 3
      %p149 = por %p147, %p148
      %p151 = scmp.ne.s32.totalorder %s136, %s150
      %p152 = scmp.eq.s32.totalorder %s39, 0
      %p153 = por %p151, %p152
      %s155 = sadd.s32 %s154, 1
      %p158 = scmp.eq.s32.totalorder %s33, 3
      %p159 = scmp.ne.s32.totalorder %s154, %s156
      %p160 = scmp.eq.s32.totalorder %s33, 0
      %p161 = por %p159, %p160
      %p162 = scmp.ne.s32.totalorder %s154, %s156
      %p163 = scmp.eq.s32.totalorder %s38, 3
      %p164 = por %p162, %p163
      %p165 = scmp.ne.s32.totalorder %s156, %s157
      %p166 = scmp.eq.s32.totalorder %s38, 0
      %p167 = por %p165, %p166
      %p168 = scmp.ne.s32.totalorder %s156, %s157
      %p169 = scmp.eq.s32.totalorder %s39, 3
      %p170 = por %p168, %p169
      %p172 = scmp.ne.s32.totalorder %s157, %s171
      %p173 = scmp.eq.s32.totalorder %s39, 0
      %p174 = por %p172, %p173
      %s176 = sadd.s32 %s175, 1
      %p179 = scmp.eq.s32.totalorder %s33, 3
      %p180 = scmp.ne.s32.totalorder %s175, %s177
      %p181 = scmp.eq.s32.totalorder %s33, 0
      %p182 = por %p180, %p181
      %p183 = scmp.ne.s32.totalorder %s175, %s177
      %p184 = scmp.eq.s32.totalorder %s38, 3
      %p185 = por %p183, %p184
      %p186 = scmp.ne.s32.totalorder %s177, %s178
      %p187 = scmp.eq.s32.totalorder %s38, 0
      %p188 = por %p186, %p187
      %p189 = scmp.ne.s32.totalorder %s177, %s178
      %p190 = scmp.eq.s32.totalorder %s39, 3
      %p191 = por %p189, %p190
      %p193 = scmp.ne.s32.totalorder %s178, %s192
      %p194 = scmp.eq.s32.totalorder %s39, 0
      %p195 = por %p193, %p194
      %s197 = sadd.s32 %s196, 1
      %p200 = scmp.eq.s32.totalorder %s33, 3
      %p201 = scmp.ne.s32.totalorder %s196, %s198
      %p202 = scmp.eq.s32.totalorder %s33, 0
      %p203 = por %p201, %p202
      %p204 = scmp.ne.s32.totalorder %s196, %s198
      %p205 = scmp.eq.s32.totalorder %s38, 3
      %p206 = por %p204, %p205
      %p207 = scmp.ne.s32.totalorder %s198, %s199
      %p208 = scmp.eq.s32.totalorder %s38, 0
      %p209 = por %p207, %p208
      %p210 = scmp.ne.s32.totalorder %s198, %s199
      %p211 = scmp.eq.s32.totalorder %s39, 3
      %p212 = por %p210, %p211
      %p214 = scmp.ne.s32.totalorder %s199, %s213
      %p215 = scmp.eq.s32.totalorder %s39, 0
      %p216 = por %p214, %p215
      %s218 = sadd.s32 %s217, 1
      %p221 = scmp.eq.s32.totalorder %s33, 3
      %p222 = scmp.ne.s32.totalorder %s217, %s219
      %p223 = scmp.eq.s32.totalorder %s33, 0
      %p224 = por %p222, %p223
      %p225 = scmp.ne.s32.totalorder %s217, %s219
      %p226 = scmp.eq.s32.totalorder %s38, 3
      %p227 = por %p225, %p226
      %p228 = scmp.ne.s32.totalorder %s219, %s220
      %p229 = scmp.eq.s32.totalorder %s38, 0
      %p230 = por %p228, %p229
      %p231 = scmp.ne.s32.totalorder %s219, %s220
      %p232 = scmp.eq.s32.totalorder %s39, 3
      %p233 = por %p231, %p232
      %p235 = scmp.ne.s32.totalorder %s220, %s234
      %p236 = scmp.eq.s32.totalorder %s39, 0
      %p237 = por %p235, %p236
      %s239 = sadd.s32 %s238, 1
      %p242 = scmp.eq.s32.totalorder %s33, 3
      %p243 = scmp.ne.s32.totalorder %s238, %s240
      %p244 = scmp.eq.s32.totalorder %s33, 0
      %p245 = por %p243, %p244
      %p246 = scmp.ne.s32.totalorder %s238, %s240
      %p247 = scmp.eq.s32.totalorder %s38, 3
      %p248 = por %p246, %p247
      %p249 = scmp.ne.s32.totalorder %s240, %s241
      %p250 = scmp.eq.s32.totalorder %s38, 0
      %p251 = por %p249, %p250
      %p252 = scmp.ne.s32.totalorder %s240, %s241
      %p253 = scmp.eq.s32.totalorder %s39, 3
      %p254 = por %p252, %p253
      %p256 = scmp.ne.s32.totalorder %s241, %s255
      %p257 = scmp.eq.s32.totalorder %s39, 0
      %p258 = por %p256, %p257
      %s260 = sadd.s32 %s259, 1
      %p263 = scmp.eq.s32.totalorder %s33, 3
      %p264 = scmp.ne.s32.totalorder %s259, %s261
      %p265 = scmp.eq.s32.totalorder %s33, 0
      %p266 = por %p264, %p265
      %p267 = scmp.ne.s32.totalorder %s259, %s261
      %p268 = scmp.eq.s32.totalorder %s38, 3
      %p269 = por %p267, %p268
      %p270 = scmp.ne.s32.totalorder %s261, %s262
      %p271 = scmp.eq.s32.totalorder %s38, 0
      %p272 = por %p270, %p271
      %p273 = scmp.ne.s32.totalorder %s261, %s262
      %p274 = scmp.eq.s32.totalorder %s39, 3
      %p275 = por %p273, %p274
      %p277 = scmp.ne.s32.totalorder %s262, %s276
      %p278 = scmp.eq.s32.totalorder %s39, 0
      %p279 = por %p277, %p278
      %s281 = sadd.s32 %s280, 1
      %p284 = scmp.eq.s32.totalorder %s33, 3
      %p285 = scmp.ne.s32.totalorder %s280, %s282
      %p286 = scmp.eq.s32.totalorder %s33, 0
      %p287 = por %p285, %p286
      %p288 = scmp.ne.s32.totalorder %s280, %s282
      %p289 = scmp.eq.s32.totalorder %s38, 3
      %p290 = por %p288, %p289
      %p291 = scmp.ne.s32.totalorder %s282, %s283
      %p292 = scmp.eq.s32.totalorder %s38, 0
      %p293 = por %p291, %p292
      %p294 = scmp.ne.s32.totalorder %s282, %s283
      %p295 = scmp.eq.s32.totalorder %s39, 3
      %p296 = por %p294, %p295
      %p298 = scmp.ne.s32.totalorder %s283, %s297
      %p299 = scmp.eq.s32.totalorder %s39, 0
      %p300 = por %p298, %p299
      %s302 = sadd.s32 %s301, 1
      %p305 = scmp.eq.s32.totalorder %s33, 3
      %p306 = scmp.ne.s32.totalorder %s301, %s303
      %p307 = scmp.eq.s32.totalorder %s33, 0
      %p308 = por %p306, %p307
      %p309 = scmp.ne.s32.totalorder %s301, %s303
      %p310 = scmp.eq.s32.totalorder %s38, 3
      %p311 = por %p309, %p310
      %p312 = scmp.ne.s32.totalorder %s303, %s304
      %p313 = scmp.eq.s32.totalorder %s38, 0
      %p314 = por %p312, %p313
      %p315 = scmp.ne.s32.totalorder %s303, %s304
      %p316 = scmp.eq.s32.totalorder %s39, 3
      %p317 = por %p315, %p316
      %p319 = scmp.ne.s32.totalorder %s304, %s318
      %p320 = scmp.eq.s32.totalorder %s39, 0
      %p321 = por %p319, %p320
      %s323 = sadd.s32 %s322, 1
      %p326 = scmp.eq.s32.totalorder %s33, 3
      %p327 = scmp.ne.s32.totalorder %s322, %s324
      %p328 = scmp.eq.s32.totalorder %s33, 0
      %p329 = por %p327, %p328
      %p330 = scmp.ne.s32.totalorder %s322, %s324
      %p331 = scmp.eq.s32.totalorder %s38, 3
      %p332 = por %p330, %p331
      %p333 = scmp.ne.s32.totalorder %s324, %s325
      %p334 = scmp.eq.s32.totalorder %s38, 0
      %p335 = por %p333, %p334
      %p336 = scmp.ne.s32.totalorder %s324, %s325
      %p337 = scmp.eq.s32.totalorder %s39, 3
      %p338 = por %p336, %p337
      %p340 = scmp.ne.s32.totalorder %s325, %s339
      %p341 = scmp.eq.s32.totalorder %s39, 0
      %p342 = por %p340, %p341
      %s343 = ssub.s32 %s40, %s52
      %s344 = ssub.s32 %s41, %s48
      %s345 = sor.u32 %s343, %s344
      %p346 = scmp.eq.s32.totalorder %s345, 0
      %s348 = sadd.s32 %s347, 1
      %s349 = scalar_select %p346, %s347, %s348
      %p352 = pneg %p346
      %p353 = scmp.eq.s32.totalorder %s33, 3
      %p354 = por %p352, %p353
      %p355 = scmp.ne.s32.totalorder %s347, %s350
      %p356 = scmp.eq.s32.totalorder %s33, 0
      %p357 = por %p355, %p356
      %p358 = scmp.ne.s32.totalorder %s347, %s350
      %p359 = scmp.eq.s32.totalorder %s38, 3
      %p360 = por %p358, %p359
      %p361 = scmp.ne.s32.totalorder %s350, %s351
      %p362 = scmp.eq.s32.totalorder %s38, 0
      %p363 = por %p361, %p362
      %p364 = scmp.ne.s32.totalorder %s350, %s351
      %p365 = scmp.eq.s32.totalorder %s39, 3
      %p366 = por %p364, %p365
      %p368 = scmp.ne.s32.totalorder %s351, %s367
      %p369 = scmp.eq.s32.totalorder %s39, 0
      %p370 = por %p368, %p369
      %p371 = scmp.le.s32.totalorder 1, %s33
      %p372 = scmp.lt.s32.totalorder %s33, 5
      %p373 = pnand %p371, %p372
      %p374 = pneg %p373
      // Predicated region
      $region9: #{decoder_layer.1} parent=5 // pred_check
        _
      $region10: #{decoder_layer.1} parent=5 // pred_check_branch
        %376 = sbr.rel (%p373) target = $region12
      $region11: #{decoder_layer.1} parent=5 // pred_region
        %s377 = ssub.s32 %s33, 1
        // Predicated region
        $region13: #{decoder_layer.1} parent=11 // pred_check
          %p378 = pneg %p146
        $region14: #{decoder_layer.1} parent=11 // pred_check_branch
          %380 = sbr.rel (%p378) target = $region16
        $region15: #{decoder_layer.1} parent=11 // pred_region
          %s382 = ssub.s32 3072, 3072
          %383 = vsyncadd [#allocation9], %s382
          %s384 = sshll.u32 [#allocation8], 4
          %s385 = int_to_ptr.vmem [resolvable:$true] %s384
          %390 = dma.hbm_to_vmem [thread:$0]  %s3, 3072, %s385, [#allocation9], 64, 64, 4
        $region16: #{decoder_layer.1} parent=11 // pred_fallthru
          _
        // Predicated region
        $region17: #{decoder_layer.1} parent=11 // pred_check
          %p391 = pneg %p167
        $region18: #{decoder_layer.1} parent=11 // pred_check_branch
          %393 = sbr.rel (%p391) target = $region20
        $region19: #{decoder_layer.1} parent=11 // pred_region
          %s395 = ssub.s32 4096, 4096
          %396 = vsyncadd [#allocation9], %s395
          %s397 = sshll.u32 [#allocation10], 4
          %s398 = int_to_ptr.vmem [resolvable:$true] %s397
          %403 = dma.hbm_to_vmem [thread:$0]  %s4, 4096, %s398, [#allocation9], 64, 64, 4
        $region20: #{decoder_layer.1} parent=11 // pred_fallthru
          _
        // Predicated region
        $region21: #{decoder_layer.1} parent=11 // pred_check
          %p404 = pneg %p188
        $region22: #{decoder_layer.1} parent=11 // pred_check_branch
          %406 = sbr.rel (%p404) target = $region24
        $region23: #{decoder_layer.1} parent=11 // pred_region
          %s408 = ssub.s32 3072, 3072
          %409 = vsyncadd [#allocation12], %s408
          %s410 = sshll.u32 [#allocation11], 4
          %s411 = int_to_ptr.vmem [resolvable:$true] %s410
          %416 = dma.hbm_to_vmem [thread:$0]  %s5, 3072, %s411, [#allocation12], 64, 64, 4
        $region24: #{decoder_layer.1} parent=11 // pred_fallthru
          _
        // Predicated region
        $region25: #{decoder_layer.1} parent=11 // pred_check
          %p417 = pneg %p209
        $region26: #{decoder_layer.1} parent=11 // pred_check_branch
          %419 = sbr.rel (%p417) target = $region28
        $region27: #{decoder_layer.1} parent=11 // pred_region
          %s421 = ssub.s32 4096, 4096
          %422 = vsyncadd [#allocation12], %s421
          %s423 = sshll.u32 [#allocation13], 4
          %s424 = int_to_ptr.vmem [resolvable:$true] %s423
          %429 = dma.hbm_to_vmem [thread:$0]  %s6, 4096, %s424, [#allocation12], 64, 64, 4
        $region28: #{decoder_layer.1} parent=11 // pred_fallthru
          _
        // Predicated region
        $region29: #{decoder_layer.1} parent=11 // pred_check
          %p430 = pneg %p230
        $region30: #{decoder_layer.1} parent=11 // pred_check_branch
          %432 = sbr.rel (%p430) target = $region32
        $region31: #{decoder_layer.1} parent=11 // pred_region
          %s434 = ssub.s32 2048, 2048
          %435 = vsyncadd [#allocation15], %s434
          %s436 = sshll.u32 [#allocation14], 4
          %s437 = int_to_ptr.vmem [resolvable:$true] %s436
          %442 = dma.hbm_to_vmem [thread:$0]  %s7, 2048, %s437, [#allocation15], 64, 64, 4
        $region32: #{decoder_layer.1} parent=11 // pred_fallthru
          _
        // Predicated region
        $region33: #{decoder_layer.1} parent=11 // pred_check
          %p443 = pneg %p251
        $region34: #{decoder_layer.1} parent=11 // pred_check_branch
          %445 = sbr.rel (%p443) target = $region36
        $region35: #{decoder_layer.1} parent=11 // pred_region
          %s447 = ssub.s32 32, 32
          %448 = vsyncadd [#allocation15], %s447
          %s450 = sshll.u32 [#allocation16], 4
          %s451 = int_to_ptr.vmem [resolvable:$true] %s450
          %453 = dma.hbm_to_vmem [thread:$0]  %s8, 32, %s451, [#allocation15]
        $region36: #{decoder_layer.1} parent=11 // pred_fallthru
          _
        // Predicated region
        $region37: #{decoder_layer.1} parent=11 // pred_check
          %p454 = pneg %p272
        $region38: #{decoder_layer.1} parent=11 // pred_check_branch
          %456 = sbr.rel (%p454) target = $region40
        $region39: #{decoder_layer.1} parent=11 // pred_region
          %s458 = ssub.s32 2048, 2048
          %459 = vsyncadd [#allocation18], %s458
          %s460 = sshll.u32 [#allocation17], 4
          %s461 = int_to_ptr.vmem [resolvable:$true] %s460
          %466 = dma.hbm_to_vmem [thread:$0]  %s9, 2048, %s461, [#allocation18], 128, 128, 8
        $region40: #{decoder_layer.1} parent=11 // pred_fallthru
          _
        // Predicated region
        $region41: #{decoder_layer.1} parent=11 // pred_check
          %p467 = pneg %p293
        $region42: #{decoder_layer.1} parent=11 // pred_check_branch
          %469 = sbr.rel (%p467) target = $region44
        $region43: #{decoder_layer.1} parent=11 // pred_region
          %s471 = ssub.s32 16, 16
          %472 = vsyncadd [#allocation18], %s471
          %s474 = sshll.u32 [#allocation19], 4
          %s475 = int_to_ptr.vmem [resolvable:$true] %s474
          %477 = dma.hbm_to_vmem [thread:$0]  %s10, 16, %s475, [#allocation18]
        $region44: #{decoder_layer.1} parent=11 // pred_fallthru
          _
        // Predicated region
        $region45: #{decoder_layer.1} parent=11 // pred_check
          %p478 = pneg %p314
        $region46: #{decoder_layer.1} parent=11 // pred_check_branch
          %480 = sbr.rel (%p478) target = $region48
        $region47: #{decoder_layer.1} parent=11 // pred_region
          %s482 = ssub.s32 64, 64
          %483 = vsyncadd [#allocation21], %s482
          %s485 = sshll.u32 [#allocation20], 4
          %s486 = int_to_ptr.vmem [resolvable:$true] %s485
          %488 = dma.hbm_to_vmem [thread:$0]  %s11, 64, %s486, [#allocation21]
        $region48: #{decoder_layer.1} parent=11 // pred_fallthru
          _
        // Predicated region
        $region49: #{decoder_layer.1} parent=11 // pred_check
          %p489 = pneg %p335
        $region50: #{decoder_layer.1} parent=11 // pred_check_branch
          %491 = sbr.rel (%p489) target = $region52
        $region51: #{decoder_layer.1} parent=11 // pred_region
          %s493 = ssub.s32 64, 64
          %494 = vsyncadd [#allocation21], %s493
          %s496 = sshll.u32 [#allocation22], 4
          %s497 = int_to_ptr.vmem [resolvable:$true] %s496
          %499 = dma.hbm_to_vmem [thread:$0]  %s12, 64, %s497, [#allocation21]
        $region52: #{decoder_layer.1} parent=11 // pred_fallthru
          _
      $region12: #{decoder_layer.1} parent=5 // pred_fallthru
        _
      %p500 = scmp.lt.s32.totalorder %s33, 4
      // Predicated region
      $region53: #{decoder_layer.1} parent=5 // pred_check
        %p501 = pneg %p500
      $region54: #{decoder_layer.1} parent=5 // pred_check_branch
        %503 = sbr.rel (%p501) target = $region56
      $region55: #{decoder_layer.1} parent=5 // pred_region
        // Predicated region
        $region57: #{decoder_layer.1} parent=55 // pred_check
          %p504 = pneg %p67
        $region58: #{decoder_layer.1} parent=55 // pred_check_branch
          %506 = sbr.rel (%p504) target = $region60
        $region59: #{decoder_layer.1} parent=55 // pred_region
          %s507 = sand.u32 %s57, 1
          %s508 = scalar_lea.sflag [#allocation3], %s507
          %s509 = sand.u32 %s57, 1
          %s510 = smul.addr %s509, 4
          %s511 = scalar_lea.vmem [#allocation2], %s510
          %s513 = ssub.s32 64, 64
          %514 = vsyncadd %s508, %s513
          %s515 = smul.addr %s40, 2
          %s516 = sadd.s32 %s41, %s515
          %s517 = smul.addr %s516, 64
          %s518 = scalar_lea.hbm %s0, %s517
          %s520 = sshll.u32 %s511, 4
          %s521 = int_to_ptr.vmem [resolvable:$true] %s520
          %523 = dma.hbm_to_vmem [thread:$0]  %s518, 64, %s521, %s508
        $region60: #{decoder_layer.1} parent=55 // pred_fallthru
          _
        // Predicated region
        $region61: #{decoder_layer.1} parent=55 // pred_check
          %p524 = pneg %p93
        $region62: #{decoder_layer.1} parent=55 // pred_check_branch
          %526 = sbr.rel (%p524) target = $region64
        $region63: #{decoder_layer.1} parent=55 // pred_region
          %s527 = sand.u32 %s33, 1
          %s528 = scalar_lea.sflag [#allocation6], %s527
          %s529 = sand.u32 %s83, 1
          %s530 = smul.addr %s529, 8
          %s531 = scalar_lea.vmem [#allocation5], %s530
          %s533 = ssub.s32 128, 128
          %534 = vsyncadd %s528, %s533
          %s535 = smul.addr %s40, 2
          %s536 = smul.addr %s535, 64
          %s537 = scalar_lea.hbm %s1, %s536
          %s538 = sshll.u32 %s531, 4
          %s539 = int_to_ptr.vmem [resolvable:$true] %s538
          %544 = dma.hbm_to_vmem [thread:$0]  %s537, 128, %s539, %s528, 64, 64, 4
        $region64: #{decoder_layer.1} parent=55 // pred_fallthru
          _
        // Predicated region
        $region65: #{decoder_layer.1} parent=55 // pred_check
          %p545 = pneg %p119
        $region66: #{decoder_layer.1} parent=55 // pred_check_branch
          %547 = sbr.rel (%p545) target = $region68
        $region67: #{decoder_layer.1} parent=55 // pred_region
          %s548 = sand.u32 %s33, 1
          %s549 = scalar_lea.sflag [#allocation6], %s548
          %s550 = sand.u32 %s109, 1
          %s551 = smul.addr %s550, 4
          %s552 = scalar_lea.vmem [#allocation7], %s551
          %s554 = ssub.s32 64, 64
          %555 = vsyncadd %s549, %s554
          %s556 = smul.addr %s40, 64
          %s557 = scalar_lea.hbm %s2, %s556
          %s559 = sshll.u32 %s552, 4
          %s560 = int_to_ptr.vmem [resolvable:$true] %s559
          %562 = dma.hbm_to_vmem [thread:$0]  %s557, 64, %s560, %s549
        $region68: #{decoder_layer.1} parent=55 // pred_fallthru
          _
      $region56: #{decoder_layer.1} parent=5 // pred_fallthru
        _
      %p563 = scmp.le.s32.totalorder 1, %s33
      %p564 = scmp.lt.s32.totalorder %s33, 5
      %p565 = pnand %p563, %p564
      %p566 = pneg %p565
      // Predicated region
      $region69: #{decoder_layer.1} parent=5 // pred_check
        _
      $region70: #{decoder_layer.1} parent=5 // pred_check_branch
        %568 = sbr.rel (%p565) target = $region72
      $region71: #{decoder_layer.1} parent=5 // pred_region
        %s569 = ssub.s32 %s33, 1
        %s570 = sand.u32 %s60, 1
        %s571 = scalar_lea.sflag [#allocation3], %s570
        %s572 = sand.u32 %s60, 1
        %s573 = smul.addr %s572, 4
        %s574 = scalar_lea.vmem [#allocation2], %s573
        // Predicated region
        $region73: #{decoder_layer.1} parent=71 // pred_check
          %p575 = pneg %p73
        $region74: #{decoder_layer.1} parent=71 // pred_check_branch
          %577 = sbr.rel (%p575) target = $region76
        $region75: #{decoder_layer.1} parent=71 // pred_region
          %578 = dma.done %s571, 64
        $region76: #{decoder_layer.1} parent=71 // pred_fallthru
          _
        %s579 = sand.u32 %s38, 1
        %s580 = scalar_lea.sflag [#allocation6], %s579
        %s581 = sand.u32 %s86, 1
        %s582 = smul.addr %s581, 8
        %s583 = scalar_lea.vmem [#allocation5], %s582
        // Predicated region
        $region77: #{decoder_layer.1} parent=71 // pred_check
          %p584 = pneg %p99
        $region78: #{decoder_layer.1} parent=71 // pred_check_branch
          %586 = sbr.rel (%p584) target = $region80
        $region79: #{decoder_layer.1} parent=71 // pred_region
          %587 = dma.done %s580, 128
        $region80: #{decoder_layer.1} parent=71 // pred_fallthru
          _
        %s588 = sand.u32 %s38, 1
        %s589 = scalar_lea.sflag [#allocation6], %s588
        %s590 = sand.u32 %s112, 1
        %s591 = smul.addr %s590, 4
        %s592 = scalar_lea.vmem [#allocation7], %s591
        // Predicated region
        $region81: #{decoder_layer.1} parent=71 // pred_check
          %p593 = pneg %p125
        $region82: #{decoder_layer.1} parent=71 // pred_check_branch
          %595 = sbr.rel (%p593) target = $region84
        $region83: #{decoder_layer.1} parent=71 // pred_region
          %596 = dma.done %s589, 64
        $region84: #{decoder_layer.1} parent=71 // pred_fallthru
          _
        // Predicated region
        $region85: #{decoder_layer.1} parent=71 // pred_check
          %p597 = pneg %p146
        $region86: #{decoder_layer.1} parent=71 // pred_check_branch
          %599 = sbr.rel (%p597) target = $region88
        $region87: #{decoder_layer.1} parent=71 // pred_region
          %600 = dma.done [#allocation9], 3072
        $region88: #{decoder_layer.1} parent=71 // pred_fallthru
          _
        // Predicated region
        $region89: #{decoder_layer.1} parent=71 // pred_check
          %p601 = pneg %p167
        $region90: #{decoder_layer.1} parent=71 // pred_check_branch
          %603 = sbr.rel (%p601) target = $region92
        $region91: #{decoder_layer.1} parent=71 // pred_region
          %604 = dma.done [#allocation9], 4096
        $region92: #{decoder_layer.1} parent=71 // pred_fallthru
          _
        // Predicated region
        $region93: #{decoder_layer.1} parent=71 // pred_check
          %p605 = pneg %p188
        $region94: #{decoder_layer.1} parent=71 // pred_check_branch
          %607 = sbr.rel (%p605) target = $region96
        $region95: #{decoder_layer.1} parent=71 // pred_region
          %608 = dma.done [#allocation12], 3072
        $region96: #{decoder_layer.1} parent=71 // pred_fallthru
          _
        // Predicated region
        $region97: #{decoder_layer.1} parent=71 // pred_check
          %p609 = pneg %p209
        $region98: #{decoder_layer.1} parent=71 // pred_check_branch
          %611 = sbr.rel (%p609) target = $region100
        $region99: #{decoder_layer.1} parent=71 // pred_region
          %612 = dma.done [#allocation12], 4096
        $region100: #{decoder_layer.1} parent=71 // pred_fallthru
          _
        // Predicated region
        $region101: #{decoder_layer.1} parent=71 // pred_check
          %p613 = pneg %p230
        $region102: #{decoder_layer.1} parent=71 // pred_check_branch
          %615 = sbr.rel (%p613) target = $region104
        $region103: #{decoder_layer.1} parent=71 // pred_region
          %616 = dma.done [#allocation15], 2048
        $region104: #{decoder_layer.1} parent=71 // pred_fallthru
          _
        // Predicated region
        $region105: #{decoder_layer.1} parent=71 // pred_check
          %p617 = pneg %p251
        $region106: #{decoder_layer.1} parent=71 // pred_check_branch
          %619 = sbr.rel (%p617) target = $region108
        $region107: #{decoder_layer.1} parent=71 // pred_region
          %620 = dma.done [#allocation15], 32
        $region108: #{decoder_layer.1} parent=71 // pred_fallthru
          _
        // Predicated region
        $region109: #{decoder_layer.1} parent=71 // pred_check
          %p621 = pneg %p272
        $region110: #{decoder_layer.1} parent=71 // pred_check_branch
          %623 = sbr.rel (%p621) target = $region112
        $region111: #{decoder_layer.1} parent=71 // pred_region
          %624 = dma.done [#allocation18], 2048
        $region112: #{decoder_layer.1} parent=71 // pred_fallthru
          _
        // Predicated region
        $region113: #{decoder_layer.1} parent=71 // pred_check
          %p625 = pneg %p293
        $region114: #{decoder_layer.1} parent=71 // pred_check_branch
          %627 = sbr.rel (%p625) target = $region116
        $region115: #{decoder_layer.1} parent=71 // pred_region
          %628 = dma.done [#allocation18], 16
        $region116: #{decoder_layer.1} parent=71 // pred_fallthru
          _
        // Predicated region
        $region117: #{decoder_layer.1} parent=71 // pred_check
          %p629 = pneg %p314
        $region118: #{decoder_layer.1} parent=71 // pred_check_branch
          %631 = sbr.rel (%p629) target = $region120
        $region119: #{decoder_layer.1} parent=71 // pred_region
          %632 = dma.done [#allocation21], 64
        $region120: #{decoder_layer.1} parent=71 // pred_fallthru
          _
        // Predicated region
        $region121: #{decoder_layer.1} parent=71 // pred_check
          %p633 = pneg %p335
        $region122: #{decoder_layer.1} parent=71 // pred_check_branch
          %635 = sbr.rel (%p633) target = $region124
        $region123: #{decoder_layer.1} parent=71 // pred_region
          %636 = dma.done [#allocation21], 64
        $region124: #{decoder_layer.1} parent=71 // pred_fallthru
          _
        %s637 = sand.u32 %s60, 1
        %s638 = scalar_lea.sflag [#allocation3], %s637
        %s639 = sand.u32 %s60, 1
        %s640 = smul.addr %s639, 4
        %s641 = scalar_lea.vmem [#allocation2], %s640
        %p642 = pneg %p73
        %p643 = pneg %p70
        %s644 = sand.u32 %s38, 1
        %s645 = scalar_lea.sflag [#allocation6], %s644
        %s646 = sand.u32 %s86, 1
        %s647 = smul.addr %s646, 8
        %s648 = scalar_lea.vmem [#allocation5], %s647
        %p649 = pneg %p99
        %p650 = pneg %p96
        %s651 = sand.u32 %s38, 1
        %s652 = scalar_lea.sflag [#allocation6], %s651
        %s653 = sand.u32 %s112, 1
        %s654 = smul.addr %s653, 4
        %s655 = scalar_lea.vmem [#allocation7], %s654
        %p656 = pneg %p125
        %p657 = pneg %p122
        %p658 = pneg %p146
        %p659 = pneg %p143
        %p660 = pneg %p167
        %p661 = pneg %p164
        %p662 = pneg %p188
        %p663 = pneg %p185
        %p664 = pneg %p209
        %p665 = pneg %p206
        %p666 = pneg %p230
        %p667 = pneg %p227
        %p668 = pneg %p251
        %p669 = pneg %p248
        %p670 = pneg %p272
        %p671 = pneg %p269
        %p672 = pneg %p293
        %p673 = pneg %p290
        %p674 = pneg %p314
        %p675 = pneg %p311
        %p676 = pneg %p335
        %p677 = pneg %p332
        %p678 = pneg %p363
        %p679 = pneg %p360
        %s680 = sand.u32 %s350, 1
        %s681 = scalar_lea.sflag [#allocation4], %s680
        %s682 = sand.u32 %s350, 1
        %s683 = smul.addr %s682, 8
        %s684 = scalar_lea.vmem [#allocation23], %s683
        %v686 = vld [vmem:[%s574] sm:$0xf]
        %v687 = vld [vmem:[%s583] sm:$0xf]
        %v688 = vld [vmem:[%s583 + $0x4] sm:$0xf]
        %v689 = vld [vmem:[%s592] sm:$0xf]
        %v690 = vunpack.c.l.bf16 %v686
        %v691 = vld [vmem:[#allocation20] sm:$0x7]
        %v692 = vld [vmem:[#allocation22] sm:$0x7]
        %s693 = smul.u32 %s43, 8
        %v694 = vld [vmem:[#allocation10] sm:$0xf]
        %v695 = vld [vmem:[#allocation10 + $0x4] sm:$0xf]
        %v696 = vld [vmem:[#allocation10 + $0x8] sm:$0xf]
        %v697 = vld [vmem:[#allocation10 + $0xc] sm:$0xf]
        %v698 = vld [vmem:[#allocation10 + $0x10] sm:$0xf]
        %v699 = vld [vmem:[#allocation10 + $0x14] sm:$0xf]
        %v700 = vld [vmem:[#allocation10 + $0x18] sm:$0xf]
        %v701 = vld [vmem:[#allocation10 + $0x1c] sm:$0xf]
        %v702 = vld [vmem:[#allocation10 + $0x20] sm:$0xf]
        %v703 = vld [vmem:[#allocation10 + $0x24] sm:$0xf]
        %v704 = vld [vmem:[#allocation10 + $0x28] sm:$0xf]
        %v705 = vld [vmem:[#allocation10 + $0x2c] sm:$0xf]
        %v706 = vld [vmem:[#allocation10 + $0x30] sm:$0xf]
        %v707 = vld [vmem:[#allocation10 + $0x34] sm:$0xf]
        %v708 = vld [vmem:[#allocation10 + $0x38] sm:$0xf]
        %v709 = vld [vmem:[#allocation10 + $0x3c] sm:$0xf]
        %v710 = vld [vmem:[#allocation10 + $0x40] sm:$0xf]
        %v711 = vld [vmem:[#allocation10 + $0x44] sm:$0xf]
        %v712 = vld [vmem:[#allocation10 + $0x48] sm:$0xf]
        %v713 = vld [vmem:[#allocation10 + $0x4c] sm:$0xf]
        %v714 = vld [vmem:[#allocation10 + $0x50] sm:$0xf]
        %v715 = vld [vmem:[#allocation10 + $0x54] sm:$0xf]
        %v716 = vld [vmem:[#allocation10 + $0x58] sm:$0xf]
        %v717 = vld [vmem:[#allocation10 + $0x5c] sm:$0xf]
        %v718 = vld [vmem:[#allocation10 + $0x60] sm:$0xf]
        %v719 = vld [vmem:[#allocation10 + $0x64] sm:$0xf]
        %v720 = vld [vmem:[#allocation10 + $0x68] sm:$0xf]
        %v721 = vld [vmem:[#allocation10 + $0x6c] sm:$0xf]
        %v722 = vld [vmem:[#allocation10 + $0x70] sm:$0xf]
        %v723 = vld [vmem:[#allocation10 + $0x74] sm:$0xf]
        %v724 = vld [vmem:[#allocation10 + $0x78] sm:$0xf]
        %v725 = vld [vmem:[#allocation10 + $0x7c] sm:$0xf]
        %v726 = vld [vmem:[#allocation10 + $0x80] sm:$0xf]
        %v727 = vld [vmem:[#allocation10 + $0x84] sm:$0xf]
        %v728 = vld [vmem:[#allocation10 + $0x88] sm:$0xf]
        %v729 = vld [vmem:[#allocation10 + $0x8c] sm:$0xf]
        %v730 = vld [vmem:[#allocation10 + $0x90] sm:$0xf]
        %v731 = vld [vmem:[#allocation10 + $0x94] sm:$0xf]
        %v732 = vld [vmem:[#allocation10 + $0x98] sm:$0xf]
        %v733 = vld [vmem:[#allocation10 + $0x9c] sm:$0xf]
        %v734 = vld [vmem:[#allocation10 + $0xa0] sm:$0xf]
        %v735 = vld [vmem:[#allocation10 + $0xa4] sm:$0xf]
        %v736 = vld [vmem:[#allocation10 + $0xa8] sm:$0xf]
        %v737 = vld [vmem:[#allocation10 + $0xac] sm:$0xf]
        %v738 = vld [vmem:[#allocation10 + $0xb0] sm:$0xf]
        %v739 = vld [vmem:[#allocation10 + $0xb4] sm:$0xf]
        %v740 = vld [vmem:[#allocation10 + $0xb8] sm:$0xf]
        %v741 = vld [vmem:[#allocation10 + $0xbc] sm:$0xf]
        %v742 = vld [vmem:[#allocation10 + $0xc0] sm:$0xf]
        %v743 = vld [vmem:[#allocation10 + $0xc4] sm:$0xf]
        %v744 = vld [vmem:[#allocation10 + $0xc8] sm:$0xf]
        %v745 = vld [vmem:[#allocation10 + $0xcc] sm:$0xf]
        %v746 = vld [vmem:[#allocation10 + $0xd0] sm:$0xf]
        %v747 = vld [vmem:[#allocation10 + $0xd4] sm:$0xf]
        %v748 = vld [vmem:[#allocation10 + $0xd8] sm:$0xf]
        %v749 = vld [vmem:[#allocation10 + $0xdc] sm:$0xf]
        %v750 = vld [vmem:[#allocation10 + $0xe0] sm:$0xf]
        %v751 = vld [vmem:[#allocation10 + $0xe4] sm:$0xf]
        %v752 = vld [vmem:[#allocation10 + $0xe8] sm:$0xf]
        %v753 = vld [vmem:[#allocation10 + $0xec] sm:$0xf]
        %v754 = vld [vmem:[#allocation10 + $0xf0] sm:$0xf]
        %v755 = vld [vmem:[#allocation10 + $0xf4] sm:$0xf]
        %v756 = vld [vmem:[#allocation10 + $0xf8] sm:$0xf]
        %v757 = vld [vmem:[#allocation10 + $0xfc] sm:$0xf]
        %v758 = vld [vmem:[#allocation8] sm:$0xf]
        %v759 = vld [vmem:[#allocation8 + $0x4] sm:$0xf]
        %v760 = vld [vmem:[#allocation8 + $0x8] sm:$0xf]
        %v761 = vld [vmem:[#allocation8 + $0xc] sm:$0xf]
        %v762 = vld [vmem:[#allocation8 + $0x10] sm:$0xf]
        %v763 = vld [vmem:[#allocation8 + $0x14] sm:$0xf]
        %v764 = vld [vmem:[#allocation8 + $0x18] sm:$0xf]
        %v765 = vld [vmem:[#allocation8 + $0x1c] sm:$0xf]
        %v766 = vld [vmem:[#allocation8 + $0x20] sm:$0xf]
        %v767 = vld [vmem:[#allocation8 + $0x24] sm:$0xf]
        %v768 = vld [vmem:[#allocation8 + $0x28] sm:$0xf]
        %v769 = vld [vmem:[#allocation8 + $0x2c] sm:$0xf]
        %v770 = vld [vmem:[#allocation8 + $0x30] sm:$0xf]
        %v771 = vld [vmem:[#allocation8 + $0x34] sm:$0xf]
        %v772 = vld [vmem:[#allocation8 + $0x38] sm:$0xf]
        %v773 = vld [vmem:[#allocation8 + $0x3c] sm:$0xf]
        %v774 = vld [vmem:[#allocation8 + $0x40] sm:$0xf]
        %v775 = vld [vmem:[#allocation8 + $0x44] sm:$0xf]
        %v776 = vld [vmem:[#allocation8 + $0x48] sm:$0xf]
        %v777 = vld [vmem:[#allocation8 + $0x4c] sm:$0xf]
        %v778 = vld [vmem:[#allocation8 + $0x50] sm:$0xf]
        %v779 = vld [vmem:[#allocation8 + $0x54] sm:$0xf]
        %v780 = vld [vmem:[#allocation8 + $0x58] sm:$0xf]
        %v781 = vld [vmem:[#allocation8 + $0x5c] sm:$0xf]
        %v782 = vld [vmem:[#allocation8 + $0x60] sm:$0xf]
        %v783 = vld [vmem:[#allocation8 + $0x64] sm:$0xf]
        %v784 = vld [vmem:[#allocation8 + $0x68] sm:$0xf]
        %v785 = vld [vmem:[#allocation8 + $0x6c] sm:$0xf]
        %v786 = vld [vmem:[#allocation8 + $0x70] sm:$0xf]
        %v787 = vld [vmem:[#allocation8 + $0x74] sm:$0xf]
        %v788 = vld [vmem:[#allocation8 + $0x78] sm:$0xf]
        %v789 = vld [vmem:[#allocation8 + $0x7c] sm:$0xf]
        %v790 = vld [vmem:[#allocation8 + $0x80] sm:$0xf]
        %v791 = vld [vmem:[#allocation8 + $0x84] sm:$0xf]
        %v792 = vld [vmem:[#allocation8 + $0x88] sm:$0xf]
        %v793 = vld [vmem:[#allocation8 + $0x8c] sm:$0xf]
        %v794 = vld [vmem:[#allocation8 + $0x90] sm:$0xf]
        %v795 = vld [vmem:[#allocation8 + $0x94] sm:$0xf]
        %v796 = vld [vmem:[#allocation8 + $0x98] sm:$0xf]
        %v797 = vld [vmem:[#allocation8 + $0x9c] sm:$0xf]
        %v798 = vld [vmem:[#allocation8 + $0xa0] sm:$0xf]
        %v799 = vld [vmem:[#allocation8 + $0xa4] sm:$0xf]
        %v800 = vld [vmem:[#allocation8 + $0xa8] sm:$0xf]
        %v801 = vld [vmem:[#allocation8 + $0xac] sm:$0xf]
        %v802 = vld [vmem:[#allocation8 + $0xb0] sm:$0xf]
        %v803 = vld [vmem:[#allocation8 + $0xb4] sm:$0xf]
        %v804 = vld [vmem:[#allocation8 + $0xb8] sm:$0xf]
        %v805 = vld [vmem:[#allocation8 + $0xbc] sm:$0xf]
        %v822 = vunpack.c.l.b16 %v758
        %v823 = vunpack.c.l.b16 %v759
        %v824 = vunpack.c.l.b16 %v760
        %v825 = vunpack.c.l.b16 %v761
        %v826 = vunpack.c.l.b16 %v762
        %v827 = vunpack.c.l.b16 %v763
        %v828 = vunpack.c.l.b16 %v764
        %v829 = vunpack.c.l.b16 %v765
        %v830 = vunpack.c.l.b16 %v766
        %v831 = vunpack.c.l.b16 %v767
        %v832 = vunpack.c.l.b16 %v768
        %v833 = vunpack.c.l.b16 %v769
        %v834 = vunpack.c.l.b16 %v770
        %v835 = vunpack.c.l.b16 %v771
        %v836 = vunpack.c.l.b16 %v772
        %v837 = vunpack.c.l.b16 %v773
        %v838 = vpack.c.b16 %v823, %v822
        %v839 = vpack.c.b16 %v825, %v824
        %v840 = vpack.c.b16 %v827, %v826
        %v841 = vpack.c.b16 %v829, %v828
        %v842 = vpack.c.b16 %v831, %v830
        %v843 = vpack.c.b16 %v833, %v832
        %v844 = vpack.c.b16 %v835, %v834
        %v845 = vpack.c.b16 %v837, %v836
        %854 = vmatprep.subr.bf16.mxu0 0
        %855 = vmatpush1.bf16.xpose.msra.mxu0 %v838
        %856 = vmatprep.subr.bf16.mxu0 0
        %857 = vmatpush1.bf16.xpose.msra.mxu0 %v839
        %858 = vmatprep.subr.bf16.mxu0 0
        %859 = vmatpush1.bf16.xpose.msra.mxu0 %v840
        %860 = vmatprep.subr.bf16.mxu0 0
        %861 = vmatpush1.bf16.xpose.msra.mxu0 %v841
        %862 = vmatprep.subr.bf16.mxu0 0
        %863 = vmatpush1.bf16.xpose.msra.mxu0 %v842
        %864 = vmatprep.subr.bf16.mxu0 0
        %865 = vmatpush1.bf16.xpose.msra.mxu0 %v843
        %866 = vmatprep.subr.bf16.mxu0 0
        %867 = vmatpush1.bf16.xpose.msra.mxu0 %v844
        %868 = vmatprep.subr.bf16.mxu0 0
        %869 = vmatpush1.bf16.xpose.msra.mxu0 %v845
        %870 = vmatprep.subr.bf16.mxu0 0
        %871 = vmatpush1.bf16.xpose.msra.mxu0 0
        %872 = vmatprep.subr.bf16.mxu0 0
        %873 = vmatpush1.bf16.xpose.msra.mxu0 0
        %874 = vmatprep.subr.bf16.mxu0 0
        %875 = vmatpush1.bf16.xpose.msra.mxu0 0
        %876 = vmatprep.subr.bf16.mxu0 0
        %877 = vmatpush1.bf16.xpose.msra.mxu0 0
        %878 = vmatprep.subr.bf16.mxu0 0
        %879 = vmatpush1.bf16.xpose.msra.mxu0 0
        %880 = vmatprep.subr.bf16.mxu0 0
        %881 = vmatpush1.bf16.xpose.msra.mxu0 0
        %882 = vmatprep.subr.bf16.mxu0 0
        %883 = vmatpush1.bf16.xpose.msra.mxu0 0
        %884 = vmatprep.subr.bf16.mxu0 0
        %885 = vmatpush1.bf16.xpose.msra.mxu0 0
        %886 = vmatprep.mubr.bf16.mxu0 0
        %887 = vmatmul.mubr.bf16.gmra.mrb[0].mxu0 %v686
        %v888 = vpop.f32.mrb[0].mxu0
        %v889 = vadd.f32 0.0, %v888
        %v890 = vpop.f32.mrb[0].mxu0
        %v891 = vpop.f32.mrb[0].mxu0
        %v892 = vpop.f32.mrb[0].mxu0
        %893 = vdwg.mxu0
        %v896 = vunpack.c.l.b16 %v687
        %v897 = vunpack.c.l.b16 %v688
        %v898 = vpack.c.b16 %v897, %v896
        %v932 = vunpack.c.l.b16 %v774
        %v933 = vunpack.c.l.b16 %v775
        %v934 = vunpack.c.l.b16 %v776
        %v935 = vunpack.c.l.b16 %v777
        %v936 = vunpack.c.l.b16 %v778
        %v937 = vunpack.c.l.b16 %v779
        %v938 = vunpack.c.l.b16 %v780
        %v939 = vunpack.c.l.b16 %v781
        %v940 = vunpack.c.l.b16 %v782
        %v941 = vunpack.c.l.b16 %v783
        %v942 = vunpack.c.l.b16 %v784
        %v943 = vunpack.c.l.b16 %v785
        %v944 = vunpack.c.l.b16 %v786
        %v945 = vunpack.c.l.b16 %v787
        %v946 = vunpack.c.l.b16 %v788
        %v947 = vunpack.c.l.b16 %v789
        %v948 = vunpack.c.l.b16 %v790
        %v949 = vunpack.c.l.b16 %v791
        %v950 = vunpack.c.l.b16 %v792
        %v951 = vunpack.c.l.b16 %v793
        %v952 = vunpack.c.l.b16 %v794
        %v953 = vunpack.c.l.b16 %v795
        %v954 = vunpack.c.l.b16 %v796
        %v955 = vunpack.c.l.b16 %v797
        %v956 = vunpack.c.l.b16 %v798
        %v957 = vunpack.c.l.b16 %v799
        %v958 = vunpack.c.l.b16 %v800
        %v959 = vunpack.c.l.b16 %v801
        %v960 = vunpack.c.l.b16 %v802
        %v961 = vunpack.c.l.b16 %v803
        %v962 = vunpack.c.l.b16 %v804
        %v963 = vunpack.c.l.b16 %v805
        %v964 = vpack.c.b16 %v933, %v932
        %v965 = vpack.c.b16 %v935, %v934
        %v966 = vpack.c.b16 %v937, %v936
        %v967 = vpack.c.b16 %v939, %v938
        %v968 = vpack.c.b16 %v941, %v940
        %v969 = vpack.c.b16 %v943, %v942
        %v970 = vpack.c.b16 %v945, %v944
        %v971 = vpack.c.b16 %v947, %v946
        %v972 = vpack.c.b16 %v949, %v948
        %v973 = vpack.c.b16 %v951, %v950
        %v974 = vpack.c.b16 %v953, %v952
        %v975 = vpack.c.b16 %v955, %v954
        %v976 = vpack.c.b16 %v957, %v956
        %v977 = vpack.c.b16 %v959, %v958
        %v978 = vpack.c.b16 %v961, %v960
        %v979 = vpack.c.b16 %v963, %v962
        %996 = vmatprep.subr.bf16.mxu0 0
        %997 = vmatpush1.bf16.xpose.msra.mxu0 %v964
        %998 = vmatprep.subr.bf16.mxu0 0
        %999 = vmatpush1.bf16.xpose.msra.mxu0 %v965
        %1000 = vmatprep.subr.bf16.mxu0 0
        %1001 = vmatpush1.bf16.xpose.msra.mxu0 %v966
        %1002 = vmatprep.subr.bf16.mxu0 0
        %1003 = vmatpush1.bf16.xpose.msra.mxu0 %v967
        %1004 = vmatprep.subr.bf16.mxu0 0
        %1005 = vmatpush1.bf16.xpose.msra.mxu0 %v968
        %1006 = vmatprep.subr.bf16.mxu0 0
        %1007 = vmatpush1.bf16.xpose.msra.mxu0 %v969
        %1008 = vmatprep.subr.bf16.mxu0 0
        %1009 = vmatpush1.bf16.xpose.msra.mxu0 %v970
        %1010 = vmatprep.subr.bf16.mxu0 0
        %1011 = vmatpush1.bf16.xpose.msra.mxu0 %v971
        %1012 = vmatprep.subr.bf16.mxu0 0
        %1013 = vmatpush1.bf16.xpose.msra.mxu0 %v972
        %1014 = vmatprep.subr.bf16.mxu0 0
        %1015 = vmatpush1.bf16.xpose.msra.mxu0 %v973
        %1016 = vmatprep.subr.bf16.mxu0 0
        %1017 = vmatpush1.bf16.xpose.msra.mxu0 %v974
        %1018 = vmatprep.subr.bf16.mxu0 0
        %1019 = vmatpush1.bf16.xpose.msra.mxu0 %v975
        %1020 = vmatprep.subr.bf16.mxu0 0
        %1021 = vmatpush1.bf16.xpose.msra.mxu0 %v976
        %1022 = vmatprep.subr.bf16.mxu0 0
        %1023 = vmatpush1.bf16.xpose.msra.mxu0 %v977
        %1024 = vmatprep.subr.bf16.mxu0 0
        %1025 = vmatpush1.bf16.xpose.msra.mxu0 %v978
        %1026 = vmatprep.subr.bf16.mxu0 0
        %1027 = vmatpush1.bf16.xpose.msra.mxu0 %v979
        %1028 = vmatprep.mubr.bf16.mxu0 0
        %1029 = vmatmul.mubr.bf16.gmra.mrb[0].mxu0 %v898
        %v1030 = vpop.f32.mrb[0].mxu0
        %v1031 = vadd.f32 0.0, %v1030
        %v1032 = vpop.f32.mrb[0].mxu0
        %v1033 = vadd.f32 0.0, %v1032
        %v1034 = vpop.f32.mrb[0].mxu0
        %v1035 = vadd.f32 0.0, %v1034
        %v1036 = vpop.f32.mrb[0].mxu0
        %v1037 = vadd.f32 0.0, %v1036
        %1038 = vdwg.mxu0
        %1040 = vrot.lane.b32.xlu0 %v889, 96
        %v1041 = vpop.permute.xlu0 %1040
        %1043 = vrot.lane.b32.xlu0 %v889, 64
        %v1044 = vpop.permute.xlu0 %1043
        %1046 = vrot.lane.b32.xlu0 %v889, 32
        %v1047 = vpop.permute.xlu0 %1046
        %v1049 = vcombine.low %v889, %v1044
        %v1050 = vcombine.high %v889, %v1044
        %v1052 = vunpack.c.l.s4 1983009808
        %v1053 = vunpack.c.0.s8 %v1052
        %v1054 = vlaneseq
        %v1055 = vshrl.u32 %v1054, 7
        %v1056 = vsub.s32 %v1053, %v1055
        %v1057 = vrot.slane %v1049, %v1056
        %v1059 = vunpack.c.l.s4 1983009808
        %v1060 = vunpack.c.0.s8 %v1059
        %v1061 = vlaneseq
        %v1062 = vshrl.u32 %v1061, 7
        %v1063 = vsub.s32 %v1060, %v1062
        %v1064 = vrot.slane %v1050, %v1063
        %v1065 = vcombine.low %v1041, %v1047
        %v1066 = vcombine.high %v1041, %v1047
        %v1068 = vunpack.c.l.s4 1983009808
        %v1069 = vunpack.c.0.s8 %v1068
        %v1070 = vlaneseq
        %v1071 = vshrl.u32 %v1070, 7
        %v1072 = vsub.s32 %v1069, %v1071
        %v1073 = vrot.slane %v1065, %v1072
        %v1075 = vunpack.c.l.s4 1983009808
        %v1076 = vunpack.c.0.s8 %v1075
        %v1077 = vlaneseq
        %v1078 = vshrl.u32 %v1077, 7
        %v1079 = vsub.s32 %v1076, %v1078
        %v1080 = vrot.slane %v1066, %v1079
        %v1081 = vcombine.low %v1057, %v1073
        %v1082 = vcombine.high %v1057, %v1073
        %v1084 = vunpack.c.l.s4 1934713408
        %v1085 = vunpack.c.0.s8 %v1084
        %v1086 = vlaneseq
        %v1087 = vshrl.u32 %v1086, 7
        %v1088 = vsub.s32 %v1085, %v1087
        %v1089 = vrot.slane %v1081, %v1088
        %v1091 = vunpack.c.l.s4 1934713408
        %v1092 = vunpack.c.0.s8 %v1091
        %v1093 = vlaneseq
        %v1094 = vshrl.u32 %v1093, 7
        %v1095 = vsub.s32 %v1092, %v1094
        %v1096 = vrot.slane %v1082, %v1095
        %v1097 = vcombine.low %v1064, %v1080
        %v1098 = vcombine.high %v1064, %v1080
        %v1100 = vunpack.c.l.s4 1934713408
        %v1101 = vunpack.c.0.s8 %v1100
        %v1102 = vlaneseq
        %v1103 = vshrl.u32 %v1102, 7
        %v1104 = vsub.s32 %v1101, %v1103
        %v1105 = vrot.slane %v1097, %v1104
        %v1107 = vunpack.c.l.s4 1934713408
        %v1108 = vunpack.c.0.s8 %v1107
        %v1109 = vlaneseq
        %v1110 = vshrl.u32 %v1109, 7
        %v1111 = vsub.s32 %v1108, %v1110
        %v1112 = vrot.slane %v1098, %v1111
        %v1113 = vcombine.high %v1089, 0.0
        %v1114 = vcombine.high %v1096, 0.0
        %v1115 = vcombine.high %v1105, 0.0
        %v1116 = vcombine.high %v1112, 0.0
        %v1117 = vcombine.low %v1089, %v1096
        %v1119 = vunpack.c.l.s4 1983009808
        %v1120 = vunpack.c.0.s8 %v1119
        %v1121 = vlaneseq
        %v1122 = vshrl.u32 %v1121, 7
        %v1123 = vsub.s32 %v1120, %v1122
        %v1124 = vrot.slane %v1117, %v1123
        %v1125 = vcombine.low %v1113, %v1114
        %v1127 = vunpack.c.l.s4 1983009808
        %v1128 = vunpack.c.0.s8 %v1127
        %v1129 = vlaneseq
        %v1130 = vshrl.u32 %v1129, 7
        %v1131 = vsub.s32 %v1128, %v1130
        %v1132 = vrot.slane %v1125, %v1131
        %v1133 = vcombine.low %v1105, %v1112
        %v1135 = vunpack.c.l.s4 1983009808
        %v1136 = vunpack.c.0.s8 %v1135
        %v1137 = vlaneseq
        %v1138 = vshrl.u32 %v1137, 7
        %v1139 = vsub.s32 %v1136, %v1138
        %v1140 = vrot.slane %v1133, %v1139
        %v1141 = vcombine.low %v1115, %v1116
        %v1143 = vunpack.c.l.s4 1983009808
        %v1144 = vunpack.c.0.s8 %v1143
        %v1145 = vlaneseq
        %v1146 = vshrl.u32 %v1145, 7
        %v1147 = vsub.s32 %v1144, %v1146
        %v1148 = vrot.slane %v1141, %v1147
        %v1149 = vcombine.low %v1124, %v1132
        %v1150 = vcombine.high %v1124, %v1132
        %v1152 = vunpack.c.l.s4 1934713408
        %v1153 = vunpack.c.0.s8 %v1152
        %v1154 = vlaneseq
        %v1155 = vshrl.u32 %v1154, 7
        %v1156 = vsub.s32 %v1153, %v1155
        %v1157 = vrot.slane %v1149, %v1156
        %v1159 = vunpack.c.l.s4 1934713408
        %v1160 = vunpack.c.0.s8 %v1159
        %v1161 = vlaneseq
        %v1162 = vshrl.u32 %v1161, 7
        %v1163 = vsub.s32 %v1160, %v1162
        %v1164 = vrot.slane %v1150, %v1163
        %v1165 = vcombine.low %v1140, %v1148
        %v1166 = vcombine.high %v1140, %v1148
        %v1168 = vunpack.c.l.s4 1934713408
        %v1169 = vunpack.c.0.s8 %v1168
        %v1170 = vlaneseq
        %v1171 = vshrl.u32 %v1170, 7
        %v1172 = vsub.s32 %v1169, %v1171
        %v1173 = vrot.slane %v1165, %v1172
        %v1175 = vunpack.c.l.s4 1934713408
        %v1176 = vunpack.c.0.s8 %v1175
        %v1177 = vlaneseq
        %v1178 = vshrl.u32 %v1177, 7
        %v1179 = vsub.s32 %v1176, %v1178
        %v1180 = vrot.slane %v1166, %v1179
        %v1181 = vcombine.low %v1157, %v1173
        %v1182 = vcombine.high %v1157, %v1173
        %v1183 = vcombine.low %v1164, %v1180
        %v1184 = vcombine.high %v1164, %v1180
        %1187 = vrot.lane.b32.xlu0 %v1031, 96
        %v1188 = vpop.permute.xlu0 %1187
        %1189 = vrot.lane.b32.xlu0 %v1035, 96
        %v1190 = vpop.permute.xlu0 %1189
        %1193 = vrot.lane.b32.xlu0 %v1031, 64
        %v1194 = vpop.permute.xlu0 %1193
        %1195 = vrot.lane.b32.xlu0 %v1035, 64
        %v1196 = vpop.permute.xlu0 %1195
        %1199 = vrot.lane.b32.xlu0 %v1031, 32
        %v1200 = vpop.permute.xlu0 %1199
        %1201 = vrot.lane.b32.xlu0 %v1035, 32
        %v1202 = vpop.permute.xlu0 %1201
        %1207 = vrot.lane.b32.xlu0 %v1033, 96
        %v1208 = vpop.permute.xlu0 %1207
        %1209 = vrot.lane.b32.xlu0 %v1037, 96
        %v1210 = vpop.permute.xlu0 %1209
        %1213 = vrot.lane.b32.xlu0 %v1033, 64
        %v1214 = vpop.permute.xlu0 %1213
        %1215 = vrot.lane.b32.xlu0 %v1037, 64
        %v1216 = vpop.permute.xlu0 %1215
        %1219 = vrot.lane.b32.xlu0 %v1033, 32
        %v1220 = vpop.permute.xlu0 %1219
        %1221 = vrot.lane.b32.xlu0 %v1037, 32
        %v1222 = vpop.permute.xlu0 %1221
        %v1225 = vcombine.low %v1031, %v1194
        %v1226 = vcombine.high %v1031, %v1194
        %v1228 = vunpack.c.l.s4 1983009808
        %v1229 = vunpack.c.0.s8 %v1228
        %v1230 = vlaneseq
        %v1231 = vshrl.u32 %v1230, 7
        %v1232 = vsub.s32 %v1229, %v1231
        %v1233 = vrot.slane %v1225, %v1232
        %v1235 = vunpack.c.l.s4 1983009808
        %v1236 = vunpack.c.0.s8 %v1235
        %v1237 = vlaneseq
        %v1238 = vshrl.u32 %v1237, 7
        %v1239 = vsub.s32 %v1236, %v1238
        %v1240 = vrot.slane %v1226, %v1239
        %v1241 = vcombine.low %v1188, %v1200
        %v1242 = vcombine.high %v1188, %v1200
        %v1244 = vunpack.c.l.s4 1983009808
        %v1245 = vunpack.c.0.s8 %v1244
        %v1246 = vlaneseq
        %v1247 = vshrl.u32 %v1246, 7
        %v1248 = vsub.s32 %v1245, %v1247
        %v1249 = vrot.slane %v1241, %v1248
        %v1251 = vunpack.c.l.s4 1983009808
        %v1252 = vunpack.c.0.s8 %v1251
        %v1253 = vlaneseq
        %v1254 = vshrl.u32 %v1253, 7
        %v1255 = vsub.s32 %v1252, %v1254
        %v1256 = vrot.slane %v1242, %v1255
        %v1257 = vcombine.low %v1033, %v1214
        %v1258 = vcombine.high %v1033, %v1214
        %v1260 = vunpack.c.l.s4 1983009808
        %v1261 = vunpack.c.0.s8 %v1260
        %v1262 = vlaneseq
        %v1263 = vshrl.u32 %v1262, 7
        %v1264 = vsub.s32 %v1261, %v1263
        %v1265 = vrot.slane %v1257, %v1264
        %v1267 = vunpack.c.l.s4 1983009808
        %v1268 = vunpack.c.0.s8 %v1267
        %v1269 = vlaneseq
        %v1270 = vshrl.u32 %v1269, 7
        %v1271 = vsub.s32 %v1268, %v1270
        %v1272 = vrot.slane %v1258, %v1271
        %v1273 = vcombine.low %v1208, %v1220
        %v1274 = vcombine.high %v1208, %v1220
        %v1276 = vunpack.c.l.s4 1983009808
        %v1277 = vunpack.c.0.s8 %v1276
        %v1278 = vlaneseq
        %v1279 = vshrl.u32 %v1278, 7
        %v1280 = vsub.s32 %v1277, %v1279
        %v1281 = vrot.slane %v1273, %v1280
        %v1283 = vunpack.c.l.s4 1983009808
        %v1284 = vunpack.c.0.s8 %v1283
        %v1285 = vlaneseq
        %v1286 = vshrl.u32 %v1285, 7
        %v1287 = vsub.s32 %v1284, %v1286
        %v1288 = vrot.slane %v1274, %v1287
        %v1289 = vcombine.low %v1233, %v1249
        %v1290 = vcombine.high %v1233, %v1249
        %v1292 = vunpack.c.l.s4 1934713408
        %v1293 = vunpack.c.0.s8 %v1292
        %v1294 = vlaneseq
        %v1295 = vshrl.u32 %v1294, 7
        %v1296 = vsub.s32 %v1293, %v1295
        %v1297 = vrot.slane %v1289, %v1296
        %v1299 = vunpack.c.l.s4 1934713408
        %v1300 = vunpack.c.0.s8 %v1299
        %v1301 = vlaneseq
        %v1302 = vshrl.u32 %v1301, 7
        %v1303 = vsub.s32 %v1300, %v1302
        %v1304 = vrot.slane %v1290, %v1303
        %v1305 = vcombine.low %v1240, %v1256
        %v1306 = vcombine.high %v1240, %v1256
        %v1308 = vunpack.c.l.s4 1934713408
        %v1309 = vunpack.c.0.s8 %v1308
        %v1310 = vlaneseq
        %v1311 = vshrl.u32 %v1310, 7
        %v1312 = vsub.s32 %v1309, %v1311
        %v1313 = vrot.slane %v1305, %v1312
        %v1315 = vunpack.c.l.s4 1934713408
        %v1316 = vunpack.c.0.s8 %v1315
        %v1317 = vlaneseq
        %v1318 = vshrl.u32 %v1317, 7
        %v1319 = vsub.s32 %v1316, %v1318
        %v1320 = vrot.slane %v1306, %v1319
        %v1321 = vcombine.low %v1265, %v1281
        %v1322 = vcombine.high %v1265, %v1281
        %v1324 = vunpack.c.l.s4 1934713408
        %v1325 = vunpack.c.0.s8 %v1324
        %v1326 = vlaneseq
        %v1327 = vshrl.u32 %v1326, 7
        %v1328 = vsub.s32 %v1325, %v1327
        %v1329 = vrot.slane %v1321, %v1328
        %v1331 = vunpack.c.l.s4 1934713408
        %v1332 = vunpack.c.0.s8 %v1331
        %v1333 = vlaneseq
        %v1334 = vshrl.u32 %v1333, 7
        %v1335 = vsub.s32 %v1332, %v1334
        %v1336 = vrot.slane %v1322, %v1335
        %v1337 = vcombine.low %v1272, %v1288
        %v1338 = vcombine.high %v1272, %v1288
        %v1340 = vunpack.c.l.s4 1934713408
        %v1341 = vunpack.c.0.s8 %v1340
        %v1342 = vlaneseq
        %v1343 = vshrl.u32 %v1342, 7
        %v1344 = vsub.s32 %v1341, %v1343
        %v1345 = vrot.slane %v1337, %v1344
        %v1347 = vunpack.c.l.s4 1934713408
        %v1348 = vunpack.c.0.s8 %v1347
        %v1349 = vlaneseq
        %v1350 = vshrl.u32 %v1349, 7
        %v1351 = vsub.s32 %v1348, %v1350
        %v1352 = vrot.slane %v1338, %v1351
        %v1353 = vcombine.low %v1297, %v1329
        %v1354 = vcombine.high %v1297, %v1329
        %v1355 = vcombine.low %v1304, %v1336
        %v1356 = vcombine.high %v1304, %v1336
        %v1357 = vcombine.low %v1313, %v1345
        %v1358 = vcombine.high %v1313, %v1345
        %v1359 = vcombine.low %v1320, %v1352
        %v1360 = vcombine.high %v1320, %v1352
        %v1361 = vcombine.low %v1035, %v1196
        %v1362 = vcombine.high %v1035, %v1196
        %v1364 = vunpack.c.l.s4 1983009808
        %v1365 = vunpack.c.0.s8 %v1364
        %v1366 = vlaneseq
        %v1367 = vshrl.u32 %v1366, 7
        %v1368 = vsub.s32 %v1365, %v1367
        %v1369 = vrot.slane %v1361, %v1368
        %v1371 = vunpack.c.l.s4 1983009808
        %v1372 = vunpack.c.0.s8 %v1371
        %v1373 = vlaneseq
        %v1374 = vshrl.u32 %v1373, 7
        %v1375 = vsub.s32 %v1372, %v1374
        %v1376 = vrot.slane %v1362, %v1375
        %v1377 = vcombine.low %v1190, %v1202
        %v1378 = vcombine.high %v1190, %v1202
        %v1380 = vunpack.c.l.s4 1983009808
        %v1381 = vunpack.c.0.s8 %v1380
        %v1382 = vlaneseq
        %v1383 = vshrl.u32 %v1382, 7
        %v1384 = vsub.s32 %v1381, %v1383
        %v1385 = vrot.slane %v1377, %v1384
        %v1387 = vunpack.c.l.s4 1983009808
        %v1388 = vunpack.c.0.s8 %v1387
        %v1389 = vlaneseq
        %v1390 = vshrl.u32 %v1389, 7
        %v1391 = vsub.s32 %v1388, %v1390
        %v1392 = vrot.slane %v1378, %v1391
        %v1393 = vcombine.low %v1037, %v1216
        %v1394 = vcombine.high %v1037, %v1216
        %v1396 = vunpack.c.l.s4 1983009808
        %v1397 = vunpack.c.0.s8 %v1396
        %v1398 = vlaneseq
        %v1399 = vshrl.u32 %v1398, 7
        %v1400 = vsub.s32 %v1397, %v1399
        %v1401 = vrot.slane %v1393, %v1400
        %v1403 = vunpack.c.l.s4 1983009808
        %v1404 = vunpack.c.0.s8 %v1403
        %v1405 = vlaneseq
        %v1406 = vshrl.u32 %v1405, 7
        %v1407 = vsub.s32 %v1404, %v1406
        %v1408 = vrot.slane %v1394, %v1407
        %v1409 = vcombine.low %v1210, %v1222
        %v1410 = vcombine.high %v1210, %v1222
        %v1412 = vunpack.c.l.s4 1983009808
        %v1413 = vunpack.c.0.s8 %v1412
        %v1414 = vlaneseq
        %v1415 = vshrl.u32 %v1414, 7
        %v1416 = vsub.s32 %v1413, %v1415
        %v1417 = vrot.slane %v1409, %v1416
        %v1419 = vunpack.c.l.s4 1983009808
        %v1420 = vunpack.c.0.s8 %v1419
        %v1421 = vlaneseq
        %v1422 = vshrl.u32 %v1421, 7
        %v1423 = vsub.s32 %v1420, %v1422
        %v1424 = vrot.slane %v1410, %v1423
        %v1425 = vcombine.low %v1369, %v1385
        %v1426 = vcombine.high %v1369, %v1385
        %v1428 = vunpack.c.l.s4 1934713408
        %v1429 = vunpack.c.0.s8 %v1428
        %v1430 = vlaneseq
        %v1431 = vshrl.u32 %v1430, 7
        %v1432 = vsub.s32 %v1429, %v1431
        %v1433 = vrot.slane %v1425, %v1432
        %v1435 = vunpack.c.l.s4 1934713408
        %v1436 = vunpack.c.0.s8 %v1435
        %v1437 = vlaneseq
        %v1438 = vshrl.u32 %v1437, 7
        %v1439 = vsub.s32 %v1436, %v1438
        %v1440 = vrot.slane %v1426, %v1439
        %v1441 = vcombine.low %v1376, %v1392
        %v1442 = vcombine.high %v1376, %v1392
        %v1444 = vunpack.c.l.s4 1934713408
        %v1445 = vunpack.c.0.s8 %v1444
        %v1446 = vlaneseq
        %v1447 = vshrl.u32 %v1446, 7
        %v1448 = vsub.s32 %v1445, %v1447
        %v1449 = vrot.slane %v1441, %v1448
        %v1451 = vunpack.c.l.s4 1934713408
        %v1452 = vunpack.c.0.s8 %v1451
        %v1453 = vlaneseq
        %v1454 = vshrl.u32 %v1453, 7
        %v1455 = vsub.s32 %v1452, %v1454
        %v1456 = vrot.slane %v1442, %v1455
        %v1457 = vcombine.low %v1401, %v1417
        %v1458 = vcombine.high %v1401, %v1417
        %v1460 = vunpack.c.l.s4 1934713408
        %v1461 = vunpack.c.0.s8 %v1460
        %v1462 = vlaneseq
        %v1463 = vshrl.u32 %v1462, 7
        %v1464 = vsub.s32 %v1461, %v1463
        %v1465 = vrot.slane %v1457, %v1464
        %v1467 = vunpack.c.l.s4 1934713408
        %v1468 = vunpack.c.0.s8 %v1467
        %v1469 = vlaneseq
        %v1470 = vshrl.u32 %v1469, 7
        %v1471 = vsub.s32 %v1468, %v1470
        %v1472 = vrot.slane %v1458, %v1471
        %v1473 = vcombine.low %v1408, %v1424
        %v1474 = vcombine.high %v1408, %v1424
        %v1476 = vunpack.c.l.s4 1934713408
        %v1477 = vunpack.c.0.s8 %v1476
        %v1478 = vlaneseq
        %v1479 = vshrl.u32 %v1478, 7
        %v1480 = vsub.s32 %v1477, %v1479
        %v1481 = vrot.slane %v1473, %v1480
        %v1483 = vunpack.c.l.s4 1934713408
        %v1484 = vunpack.c.0.s8 %v1483
        %v1485 = vlaneseq
        %v1486 = vshrl.u32 %v1485, 7
        %v1487 = vsub.s32 %v1484, %v1486
        %v1488 = vrot.slane %v1474, %v1487
        %v1489 = vcombine.low %v1433, %v1465
        %v1490 = vcombine.high %v1433, %v1465
        %v1491 = vcombine.low %v1440, %v1472
        %v1492 = vcombine.high %v1440, %v1472
        %v1493 = vcombine.low %v1449, %v1481
        %v1494 = vcombine.high %v1449, %v1481
        %v1495 = vcombine.low %v1456, %v1488
        %v1496 = vcombine.high %v1456, %v1488
        %v1497 = vcombine.low %v1353, %v1355
        %v1498 = vcombine.high %v1353, %v1355
        %v1500 = vunpack.c.l.s4 1983009808
        %v1501 = vunpack.c.0.s8 %v1500
        %v1502 = vlaneseq
        %v1503 = vshrl.u32 %v1502, 7
        %v1504 = vsub.s32 %v1501, %v1503
        %v1505 = vrot.slane %v1497, %v1504
        %v1507 = vunpack.c.l.s4 1983009808
        %v1508 = vunpack.c.0.s8 %v1507
        %v1509 = vlaneseq
        %v1510 = vshrl.u32 %v1509, 7
        %v1511 = vsub.s32 %v1508, %v1510
        %v1512 = vrot.slane %v1498, %v1511
        %v1513 = vcombine.low %v1354, %v1356
        %v1514 = vcombine.high %v1354, %v1356
        %v1516 = vunpack.c.l.s4 1983009808
        %v1517 = vunpack.c.0.s8 %v1516
        %v1518 = vlaneseq
        %v1519 = vshrl.u32 %v1518, 7
        %v1520 = vsub.s32 %v1517, %v1519
        %v1521 = vrot.slane %v1513, %v1520
        %v1523 = vunpack.c.l.s4 1983009808
        %v1524 = vunpack.c.0.s8 %v1523
        %v1525 = vlaneseq
        %v1526 = vshrl.u32 %v1525, 7
        %v1527 = vsub.s32 %v1524, %v1526
        %v1528 = vrot.slane %v1514, %v1527
        %v1529 = vcombine.low %v1357, %v1359
        %v1530 = vcombine.high %v1357, %v1359
        %v1532 = vunpack.c.l.s4 1983009808
        %v1533 = vunpack.c.0.s8 %v1532
        %v1534 = vlaneseq
        %v1535 = vshrl.u32 %v1534, 7
        %v1536 = vsub.s32 %v1533, %v1535
        %v1537 = vrot.slane %v1529, %v1536
        %v1539 = vunpack.c.l.s4 1983009808
        %v1540 = vunpack.c.0.s8 %v1539
        %v1541 = vlaneseq
        %v1542 = vshrl.u32 %v1541, 7
        %v1543 = vsub.s32 %v1540, %v1542
        %v1544 = vrot.slane %v1530, %v1543
        %v1545 = vcombine.low %v1358, %v1360
        %v1546 = vcombine.high %v1358, %v1360
        %v1548 = vunpack.c.l.s4 1983009808
        %v1549 = vunpack.c.0.s8 %v1548
        %v1550 = vlaneseq
        %v1551 = vshrl.u32 %v1550, 7
        %v1552 = vsub.s32 %v1549, %v1551
        %v1553 = vrot.slane %v1545, %v1552
        %v1555 = vunpack.c.l.s4 1983009808
        %v1556 = vunpack.c.0.s8 %v1555
        %v1557 = vlaneseq
        %v1558 = vshrl.u32 %v1557, 7
        %v1559 = vsub.s32 %v1556, %v1558
        %v1560 = vrot.slane %v1546, %v1559
        %v1561 = vcombine.low %v1505, %v1521
        %v1562 = vcombine.high %v1505, %v1521
        %v1564 = vunpack.c.l.s4 1934713408
        %v1565 = vunpack.c.0.s8 %v1564
        %v1566 = vlaneseq
        %v1567 = vshrl.u32 %v1566, 7
        %v1568 = vsub.s32 %v1565, %v1567
        %v1569 = vrot.slane %v1561, %v1568
        %v1571 = vunpack.c.l.s4 1934713408
        %v1572 = vunpack.c.0.s8 %v1571
        %v1573 = vlaneseq
        %v1574 = vshrl.u32 %v1573, 7
        %v1575 = vsub.s32 %v1572, %v1574
        %v1576 = vrot.slane %v1562, %v1575
        %v1577 = vcombine.low %v1512, %v1528
        %v1578 = vcombine.high %v1512, %v1528
        %v1580 = vunpack.c.l.s4 1934713408
        %v1581 = vunpack.c.0.s8 %v1580
        %v1582 = vlaneseq
        %v1583 = vshrl.u32 %v1582, 7
        %v1584 = vsub.s32 %v1581, %v1583
        %v1585 = vrot.slane %v1577, %v1584
        %v1587 = vunpack.c.l.s4 1934713408
        %v1588 = vunpack.c.0.s8 %v1587
        %v1589 = vlaneseq
        %v1590 = vshrl.u32 %v1589, 7
        %v1591 = vsub.s32 %v1588, %v1590
        %v1592 = vrot.slane %v1578, %v1591
        %v1593 = vcombine.low %v1537, %v1553
        %v1594 = vcombine.high %v1537, %v1553
        %v1596 = vunpack.c.l.s4 1934713408
        %v1597 = vunpack.c.0.s8 %v1596
        %v1598 = vlaneseq
        %v1599 = vshrl.u32 %v1598, 7
        %v1600 = vsub.s32 %v1597, %v1599
        %v1601 = vrot.slane %v1593, %v1600
        %v1603 = vunpack.c.l.s4 1934713408
        %v1604 = vunpack.c.0.s8 %v1603
        %v1605 = vlaneseq
        %v1606 = vshrl.u32 %v1605, 7
        %v1607 = vsub.s32 %v1604, %v1606
        %v1608 = vrot.slane %v1594, %v1607
        %v1609 = vcombine.low %v1544, %v1560
        %v1610 = vcombine.high %v1544, %v1560
        %v1612 = vunpack.c.l.s4 1934713408
        %v1613 = vunpack.c.0.s8 %v1612
        %v1614 = vlaneseq
        %v1615 = vshrl.u32 %v1614, 7
        %v1616 = vsub.s32 %v1613, %v1615
        %v1617 = vrot.slane %v1609, %v1616
        %v1619 = vunpack.c.l.s4 1934713408
        %v1620 = vunpack.c.0.s8 %v1619
        %v1621 = vlaneseq
        %v1622 = vshrl.u32 %v1621, 7
        %v1623 = vsub.s32 %v1620, %v1622
        %v1624 = vrot.slane %v1610, %v1623
        %v1625 = vcombine.low %v1569, %v1601
        %v1626 = vcombine.high %v1569, %v1601
        %v1627 = vcombine.low %v1576, %v1608
        %v1628 = vcombine.high %v1576, %v1608
        %v1629 = vcombine.low %v1585, %v1617
        %v1630 = vcombine.high %v1585, %v1617
        %v1631 = vcombine.low %v1592, %v1624
        %v1632 = vcombine.high %v1592, %v1624
        %v1633 = vcombine.low %v1489, %v1491
        %v1634 = vcombine.high %v1489, %v1491
        %v1636 = vunpack.c.l.s4 1983009808
        %v1637 = vunpack.c.0.s8 %v1636
        %v1638 = vlaneseq
        %v1639 = vshrl.u32 %v1638, 7
        %v1640 = vsub.s32 %v1637, %v1639
        %v1641 = vrot.slane %v1633, %v1640
        %v1643 = vunpack.c.l.s4 1983009808
        %v1644 = vunpack.c.0.s8 %v1643
        %v1645 = vlaneseq
        %v1646 = vshrl.u32 %v1645, 7
        %v1647 = vsub.s32 %v1644, %v1646
        %v1648 = vrot.slane %v1634, %v1647
        %v1649 = vcombine.low %v1490, %v1492
        %v1650 = vcombine.high %v1490, %v1492
        %v1652 = vunpack.c.l.s4 1983009808
        %v1653 = vunpack.c.0.s8 %v1652
        %v1654 = vlaneseq
        %v1655 = vshrl.u32 %v1654, 7
        %v1656 = vsub.s32 %v1653, %v1655
        %v1657 = vrot.slane %v1649, %v1656
        %v1659 = vunpack.c.l.s4 1983009808
        %v1660 = vunpack.c.0.s8 %v1659
        %v1661 = vlaneseq
        %v1662 = vshrl.u32 %v1661, 7
        %v1663 = vsub.s32 %v1660, %v1662
        %v1664 = vrot.slane %v1650, %v1663
        %v1665 = vcombine.low %v1493, %v1495
        %v1666 = vcombine.high %v1493, %v1495
        %v1668 = vunpack.c.l.s4 1983009808
        %v1669 = vunpack.c.0.s8 %v1668
        %v1670 = vlaneseq
        %v1671 = vshrl.u32 %v1670, 7
        %v1672 = vsub.s32 %v1669, %v1671
        %v1673 = vrot.slane %v1665, %v1672
        %v1675 = vunpack.c.l.s4 1983009808
        %v1676 = vunpack.c.0.s8 %v1675
        %v1677 = vlaneseq
        %v1678 = vshrl.u32 %v1677, 7
        %v1679 = vsub.s32 %v1676, %v1678
        %v1680 = vrot.slane %v1666, %v1679
        %v1681 = vcombine.low %v1494, %v1496
        %v1682 = vcombine.high %v1494, %v1496
        %v1684 = vunpack.c.l.s4 1983009808
        %v1685 = vunpack.c.0.s8 %v1684
        %v1686 = vlaneseq
        %v1687 = vshrl.u32 %v1686, 7
        %v1688 = vsub.s32 %v1685, %v1687
        %v1689 = vrot.slane %v1681, %v1688
        %v1691 = vunpack.c.l.s4 1983009808
        %v1692 = vunpack.c.0.s8 %v1691
        %v1693 = vlaneseq
        %v1694 = vshrl.u32 %v1693, 7
        %v1695 = vsub.s32 %v1692, %v1694
        %v1696 = vrot.slane %v1682, %v1695
        %v1697 = vcombine.low %v1641, %v1657
        %v1698 = vcombine.high %v1641, %v1657
        %v1700 = vunpack.c.l.s4 1934713408
        %v1701 = vunpack.c.0.s8 %v1700
        %v1702 = vlaneseq
        %v1703 = vshrl.u32 %v1702, 7
        %v1704 = vsub.s32 %v1701, %v1703
        %v1705 = vrot.slane %v1697, %v1704
        %v1707 = vunpack.c.l.s4 1934713408
        %v1708 = vunpack.c.0.s8 %v1707
        %v1709 = vlaneseq
        %v1710 = vshrl.u32 %v1709, 7
        %v1711 = vsub.s32 %v1708, %v1710
        %v1712 = vrot.slane %v1698, %v1711
        %v1713 = vcombine.low %v1648, %v1664
        %v1714 = vcombine.high %v1648, %v1664
        %v1716 = vunpack.c.l.s4 1934713408
        %v1717 = vunpack.c.0.s8 %v1716
        %v1718 = vlaneseq
        %v1719 = vshrl.u32 %v1718, 7
        %v1720 = vsub.s32 %v1717, %v1719
        %v1721 = vrot.slane %v1713, %v1720
        %v1723 = vunpack.c.l.s4 1934713408
        %v1724 = vunpack.c.0.s8 %v1723
        %v1725 = vlaneseq
        %v1726 = vshrl.u32 %v1725, 7
        %v1727 = vsub.s32 %v1724, %v1726
        %v1728 = vrot.slane %v1714, %v1727
        %v1729 = vcombine.low %v1673, %v1689
        %v1730 = vcombine.high %v1673, %v1689
        %v1732 = vunpack.c.l.s4 1934713408
        %v1733 = vunpack.c.0.s8 %v1732
        %v1734 = vlaneseq
        %v1735 = vshrl.u32 %v1734, 7
        %v1736 = vsub.s32 %v1733, %v1735
        %v1737 = vrot.slane %v1729, %v1736
        %v1739 = vunpack.c.l.s4 1934713408
        %v1740 = vunpack.c.0.s8 %v1739
        %v1741 = vlaneseq
        %v1742 = vshrl.u32 %v1741, 7
        %v1743 = vsub.s32 %v1740, %v1742
        %v1744 = vrot.slane %v1730, %v1743
        %v1745 = vcombine.low %v1680, %v1696
        %v1746 = vcombine.high %v1680, %v1696
        %v1748 = vunpack.c.l.s4 1934713408
        %v1749 = vunpack.c.0.s8 %v1748
        %v1750 = vlaneseq
        %v1751 = vshrl.u32 %v1750, 7
        %v1752 = vsub.s32 %v1749, %v1751
        %v1753 = vrot.slane %v1745, %v1752
        %v1755 = vunpack.c.l.s4 1934713408
        %v1756 = vunpack.c.0.s8 %v1755
        %v1757 = vlaneseq
        %v1758 = vshrl.u32 %v1757, 7
        %v1759 = vsub.s32 %v1756, %v1758
        %v1760 = vrot.slane %v1746, %v1759
        %v1761 = vcombine.low %v1705, %v1737
        %v1762 = vcombine.high %v1705, %v1737
        %v1763 = vcombine.low %v1712, %v1744
        %v1764 = vcombine.high %v1712, %v1744
        %v1765 = vcombine.low %v1721, %v1753
        %v1766 = vcombine.high %v1721, %v1753
        %v1767 = vcombine.low %v1728, %v1760
        %v1768 = vcombine.high %v1728, %v1760
        %v1769 = vpack.c.bf16 %v1181, %v1181
        %v1770 = vpack.c.bf16 %v1182, %v1182
        %v1771 = vpack.c.bf16 %v1183, %v1183
        %v1772 = vpack.c.bf16 %v1184, %v1184
        %v1773 = vpack.c.bf16 %v1761, %v1625
        %v1774 = vpack.c.bf16 %v1762, %v1626
        %v1775 = vpack.c.bf16 %v1763, %v1627
        %v1776 = vpack.c.bf16 %v1764, %v1628
        %vm1777 = vcmask 261120
        %v1779 = vsel %vm1777, %v1769, 0
        %v1782 = vsel %vm1777, %v1773, 0
        %1784 = vmatprep.subr.bf16.mxu0 0
        %1785 = vmatpush1.bf16.xpose.msra.mxu0 %v1782
        %1786 = vmatprep.subr.bf16.mxu0 0
        %1787 = vmatpush1.bf16.xpose.msra.mxu0 0
        %1788 = vmatprep.subr.bf16.mxu0 0
        %1789 = vmatpush1.bf16.xpose.msra.mxu0 0
        %1790 = vmatprep.subr.bf16.mxu0 0
        %1791 = vmatpush1.bf16.xpose.msra.mxu0 0
        %1792 = vmatprep.subr.bf16.mxu0 0
        %1793 = vmatpush1.bf16.xpose.msra.mxu0 0
        %1794 = vmatprep.subr.bf16.mxu0 0
        %1795 = vmatpush1.bf16.xpose.msra.mxu0 0
        %1796 = vmatprep.subr.bf16.mxu0 0
        %1797 = vmatpush1.bf16.xpose.msra.mxu0 0
        %1798 = vmatprep.subr.bf16.mxu0 0
        %1799 = vmatpush1.bf16.xpose.msra.mxu0 0
        %1800 = vmatprep.subr.bf16.mxu0 0
        %1801 = vmatpush1.bf16.xpose.msra.mxu0 0
        %1802 = vmatprep.subr.bf16.mxu0 0
        %1803 = vmatpush1.bf16.xpose.msra.mxu0 0
        %1804 = vmatprep.subr.bf16.mxu0 0
        %1805 = vmatpush1.bf16.xpose.msra.mxu0 0
        %1806 = vmatprep.subr.bf16.mxu0 0
        %1807 = vmatpush1.bf16.xpose.msra.mxu0 0
        %1808 = vmatprep.subr.bf16.mxu0 0
        %1809 = vmatpush1.bf16.xpose.msra.mxu0 0
        %1810 = vmatprep.subr.bf16.mxu0 0
        %1811 = vmatpush1.bf16.xpose.msra.mxu0 0
        %1812 = vmatprep.subr.bf16.mxu0 0
        %1813 = vmatpush1.bf16.xpose.msra.mxu0 0
        %1814 = vmatprep.subr.bf16.mxu0 0
        %1815 = vmatpush1.bf16.xpose.msra.mxu0 0
        %1816 = vmatprep.mubr.bf16.mxu0 0
        %1817 = vmatmul.mubr.bf16.gmra.mrb[0].mxu0 %v1779
        %v1818 = vpop.f32.mrb[0].mxu0
        %v1819 = vadd.f32 0.0, %v1818
        %v1820 = vpop.f32.mrb[0].mxu0
        %v1821 = vpop.f32.mrb[0].mxu0
        %v1822 = vpop.f32.mrb[0].mxu0
        %1823 = vdwg.mxu0
        %v1825 = vsel %vm1777, %v1770, 0
        %v1828 = vsel %vm1777, %v1774, 0
        %1830 = vmatprep.subr.bf16.mxu0 0
        %1831 = vmatpush1.bf16.xpose.msra.mxu0 %v1828
        %1832 = vmatprep.subr.bf16.mxu0 0
        %1833 = vmatpush1.bf16.xpose.msra.mxu0 0
        %1834 = vmatprep.subr.bf16.mxu0 0
        %1835 = vmatpush1.bf16.xpose.msra.mxu0 0
        %1836 = vmatprep.subr.bf16.mxu0 0
        %1837 = vmatpush1.bf16.xpose.msra.mxu0 0
        %1838 = vmatprep.subr.bf16.mxu0 0
        %1839 = vmatpush1.bf16.xpose.msra.mxu0 0
        %1840 = vmatprep.subr.bf16.mxu0 0
        %1841 = vmatpush1.bf16.xpose.msra.mxu0 0
        %1842 = vmatprep.subr.bf16.mxu0 0
        %1843 = vmatpush1.bf16.xpose.msra.mxu0 0
        %1844 = vmatprep.subr.bf16.mxu0 0
        %1845 = vmatpush1.bf16.xpose.msra.mxu0 0
        %1846 = vmatprep.subr.bf16.mxu0 0
        %1847 = vmatpush1.bf16.xpose.msra.mxu0 0
        %1848 = vmatprep.subr.bf16.mxu0 0
        %1849 = vmatpush1.bf16.xpose.msra.mxu0 0
        %1850 = vmatprep.subr.bf16.mxu0 0
        %1851 = vmatpush1.bf16.xpose.msra.mxu0 0
        %1852 = vmatprep.subr.bf16.mxu0 0
        %1853 = vmatpush1.bf16.xpose.msra.mxu0 0
        %1854 = vmatprep.subr.bf16.mxu0 0
        %1855 = vmatpush1.bf16.xpose.msra.mxu0 0
        %1856 = vmatprep.subr.bf16.mxu0 0
        %1857 = vmatpush1.bf16.xpose.msra.mxu0 0
        %1858 = vmatprep.subr.bf16.mxu0 0
        %1859 = vmatpush1.bf16.xpose.msra.mxu0 0
        %1860 = vmatprep.subr.bf16.mxu0 0
        %1861 = vmatpush1.bf16.xpose.msra.mxu0 0
        %1862 = vmatprep.mubr.bf16.mxu0 0
        %1863 = vmatmul.mubr.bf16.gmra.mrb[0].mxu0 %v1825
        %v1864 = vpop.f32.mrb[0].mxu0
        %v1865 = vadd.f32 0.0, %v1864
        %v1866 = vpop.f32.mrb[0].mxu0
        %v1867 = vpop.f32.mrb[0].mxu0
        %v1868 = vpop.f32.mrb[0].mxu0
        %1869 = vdwg.mxu0
        %v1871 = vsel %vm1777, %v1771, 0
        %v1874 = vsel %vm1777, %v1775, 0
        %1876 = vmatprep.subr.bf16.mxu0 0
        %1877 = vmatpush1.bf16.xpose.msra.mxu0 %v1874
        %1878 = vmatprep.subr.bf16.mxu0 0
        %1879 = vmatpush1.bf16.xpose.msra.mxu0 0
        %1880 = vmatprep.subr.bf16.mxu0 0
        %1881 = vmatpush1.bf16.xpose.msra.mxu0 0
        %1882 = vmatprep.subr.bf16.mxu0 0
        %1883 = vmatpush1.bf16.xpose.msra.mxu0 0
        %1884 = vmatprep.subr.bf16.mxu0 0
        %1885 = vmatpush1.bf16.xpose.msra.mxu0 0
        %1886 = vmatprep.subr.bf16.mxu0 0
        %1887 = vmatpush1.bf16.xpose.msra.mxu0 0
        %1888 = vmatprep.subr.bf16.mxu0 0
        %1889 = vmatpush1.bf16.xpose.msra.mxu0 0
        %1890 = vmatprep.subr.bf16.mxu0 0
        %1891 = vmatpush1.bf16.xpose.msra.mxu0 0
        %1892 = vmatprep.subr.bf16.mxu0 0
        %1893 = vmatpush1.bf16.xpose.msra.mxu0 0
        %1894 = vmatprep.subr.bf16.mxu0 0
        %1895 = vmatpush1.bf16.xpose.msra.mxu0 0
        %1896 = vmatprep.subr.bf16.mxu0 0
        %1897 = vmatpush1.bf16.xpose.msra.mxu0 0
        %1898 = vmatprep.subr.bf16.mxu0 0
        %1899 = vmatpush1.bf16.xpose.msra.mxu0 0
        %1900 = vmatprep.subr.bf16.mxu0 0
        %1901 = vmatpush1.bf16.xpose.msra.mxu0 0
        %1902 = vmatprep.subr.bf16.mxu0 0
        %1903 = vmatpush1.bf16.xpose.msra.mxu0 0
        %1904 = vmatprep.subr.bf16.mxu0 0
        %1905 = vmatpush1.bf16.xpose.msra.mxu0 0
        %1906 = vmatprep.subr.bf16.mxu0 0
        %1907 = vmatpush1.bf16.xpose.msra.mxu0 0
        %1908 = vmatprep.mubr.bf16.mxu0 0
        %1909 = vmatmul.mubr.bf16.gmra.mrb[0].mxu0 %v1871
        %v1910 = vpop.f32.mrb[0].mxu0
        %v1911 = vadd.f32 0.0, %v1910
        %v1912 = vpop.f32.mrb[0].mxu0
        %v1913 = vpop.f32.mrb[0].mxu0
        %v1914 = vpop.f32.mrb[0].mxu0
        %1915 = vdwg.mxu0
        %v1917 = vsel %vm1777, %v1772, 0
        %v1920 = vsel %vm1777, %v1776, 0
        %1922 = vmatprep.subr.bf16.mxu0 0
        %1923 = vmatpush1.bf16.xpose.msra.mxu0 %v1920
        %1924 = vmatprep.subr.bf16.mxu0 0
        %1925 = vmatpush1.bf16.xpose.msra.mxu0 0
        %1926 = vmatprep.subr.bf16.mxu0 0
        %1927 = vmatpush1.bf16.xpose.msra.mxu0 0
        %1928 = vmatprep.subr.bf16.mxu0 0
        %1929 = vmatpush1.bf16.xpose.msra.mxu0 0
        %1930 = vmatprep.subr.bf16.mxu0 0
        %1931 = vmatpush1.bf16.xpose.msra.mxu0 0
        %1932 = vmatprep.subr.bf16.mxu0 0
        %1933 = vmatpush1.bf16.xpose.msra.mxu0 0
        %1934 = vmatprep.subr.bf16.mxu0 0
        %1935 = vmatpush1.bf16.xpose.msra.mxu0 0
        %1936 = vmatprep.subr.bf16.mxu0 0
        %1937 = vmatpush1.bf16.xpose.msra.mxu0 0
        %1938 = vmatprep.subr.bf16.mxu0 0
        %1939 = vmatpush1.bf16.xpose.msra.mxu0 0
        %1940 = vmatprep.subr.bf16.mxu0 0
        %1941 = vmatpush1.bf16.xpose.msra.mxu0 0
        %1942 = vmatprep.subr.bf16.mxu0 0
        %1943 = vmatpush1.bf16.xpose.msra.mxu0 0
        %1944 = vmatprep.subr.bf16.mxu0 0
        %1945 = vmatpush1.bf16.xpose.msra.mxu0 0
        %1946 = vmatprep.subr.bf16.mxu0 0
        %1947 = vmatpush1.bf16.xpose.msra.mxu0 0
        %1948 = vmatprep.subr.bf16.mxu0 0
        %1949 = vmatpush1.bf16.xpose.msra.mxu0 0
        %1950 = vmatprep.subr.bf16.mxu0 0
        %1951 = vmatpush1.bf16.xpose.msra.mxu0 0
        %1952 = vmatprep.subr.bf16.mxu0 0
        %1953 = vmatpush1.bf16.xpose.msra.mxu0 0
        %1954 = vmatprep.mubr.bf16.mxu0 0
        %1955 = vmatmul.mubr.bf16.gmra.mrb[0].mxu0 %v1917
        %v1956 = vpop.f32.mrb[0].mxu0
        %v1957 = vadd.f32 0.0, %v1956
        %v1958 = vpop.f32.mrb[0].mxu0
        %v1959 = vpop.f32.mrb[0].mxu0
        %v1960 = vpop.f32.mrb[0].mxu0
        %1961 = vdwg.mxu0
        %v1962 = vlaneseq
        %v1963 = vshrl.u32 %v1962, 7
        %v1964 = vstv %s693
        %v1965 = vadd.s32 %v1963, %v1964
        %v1966 = vlaneseq
        %v1967 = vand.u32 %v1966, 127
        %vm1968 = vcmp.gt.s32.totalorder %v1967, %v1965
        %v1969 = vsel %vm1968, 1, 0
        %vm1970 = vcmp.eq.s32.totalorder %v1969, 1
        %v1971 = vsel %vm1970, -8.8388346e+08, %v1819
        %v1972 = vsel %vm1970, -8.8388346e+08, %v1865
        %v1973 = vsel %vm1970, -8.8388346e+08, %v1911
        %v1974 = vsel %vm1970, -8.8388346e+08, %v1957
        %vm1975 = vcmask 130048
        %v1976 = vsel %vm1975, %v1971, -inf
        %1977 = vmax.xlane.f32.xlu0 %v1976
        %v1978 = vpop.xlane.xlu0 %1977
        %v1979 = vsel %vm1975, %v1972, -inf
        %1980 = vmax.xlane.f32.xlu0 %v1979
        %v1981 = vpop.xlane.xlu0 %1980
        %v1982 = vsel %vm1975, %v1973, -inf
        %1983 = vmax.xlane.f32.xlu0 %v1982
        %v1984 = vpop.xlane.xlu0 %1983
        %v1985 = vsel %vm1975, %v1974, -inf
        %1986 = vmax.xlane.f32.xlu0 %v1985
        %v1987 = vpop.xlane.xlu0 %1986
        %v1988 = vsub.f32 %v1971, %v1978
        %v1989 = vsub.f32 %v1972, %v1981
        %v1990 = vsub.f32 %v1973, %v1984
        %v1991 = vsub.f32 %v1974, %v1987
        %v1992 = vmul.f32 %v1988, 1.442695
        %v1993 = vpow.pop %v1992
        %v1994 = vmul.f32 %v1989, 1.442695
        %v1995 = vpow.pop %v1994
        %v1996 = vmul.f32 %v1990, 1.442695
        %v1997 = vpow.pop %v1996
        %v1998 = vmul.f32 %v1991, 1.442695
        %v1999 = vpow.pop %v1998
        %v2000 = vsel %vm1975, %v1993, 0.0
        %2001 = vadd.xlane.f32.xlu0 %v2000
        %v2002 = vpop.xlane.xlu0 %2001
        %v2003 = vsel %vm1975, %v1995, 0.0
        %2004 = vadd.xlane.f32.xlu0 %v2003
        %v2005 = vpop.xlane.xlu0 %2004
        %v2006 = vsel %vm1975, %v1997, 0.0
        %2007 = vadd.xlane.f32.xlu0 %v2006
        %v2008 = vpop.xlane.xlu0 %2007
        %v2009 = vsel %vm1975, %v1999, 0.0
        %2010 = vadd.xlane.f32.xlu0 %v2009
        %v2011 = vpop.xlane.xlu0 %2010
        %v2012 = vrcp.pop %v2002
        %v2013 = vrcp.pop %v2005
        %v2014 = vrcp.pop %v2008
        %v2015 = vrcp.pop %v2011
        %v2016 = vmul.f32 %v1993, %v2012
        %v2017 = vmul.f32 %v1995, %v2013
        %v2018 = vmul.f32 %v1997, %v2014
        %v2019 = vmul.f32 %v1999, %v2015
        %v2020 = vpack.c.bf16 %v2016, %v2016
        %v2021 = vpack.c.bf16 %v2017, %v2017
        %v2022 = vpack.c.bf16 %v2018, %v2018
        %v2023 = vpack.c.bf16 %v2019, %v2019
        %v2024 = vpack.c.bf16 %v1765, %v1629
        %v2025 = vpack.c.bf16 %v1766, %v1630
        %v2026 = vpack.c.bf16 %v1767, %v1631
        %v2027 = vpack.c.bf16 %v1768, %v1632
        %v2029 = vsel %vm1975, %v2020, 0
        %2031 = vmatprep.subr.bf16.mxu0 0
        %2032 = vmatpush1.bf16.msra.mxu0 %v2024
        %2033 = vmatprep.subr.bf16.mxu0 0
        %2034 = vmatpush1.bf16.msra.mxu0 0
        %2035 = vmatprep.subr.bf16.mxu0 0
        %2036 = vmatpush1.bf16.msra.mxu0 0
        %2037 = vmatprep.subr.bf16.mxu0 0
        %2038 = vmatpush1.bf16.msra.mxu0 0
        %2039 = vmatprep.subr.bf16.mxu0 0
        %2040 = vmatpush1.bf16.msra.mxu0 0
        %2041 = vmatprep.subr.bf16.mxu0 0
        %2042 = vmatpush1.bf16.msra.mxu0 0
        %2043 = vmatprep.subr.bf16.mxu0 0
        %2044 = vmatpush1.bf16.msra.mxu0 0
        %2045 = vmatprep.subr.bf16.mxu0 0
        %2046 = vmatpush1.bf16.msra.mxu0 0
        %2047 = vmatprep.subr.bf16.mxu0 0
        %2048 = vmatpush1.bf16.msra.mxu0 0
        %2049 = vmatprep.subr.bf16.mxu0 0
        %2050 = vmatpush1.bf16.msra.mxu0 0
        %2051 = vmatprep.subr.bf16.mxu0 0
        %2052 = vmatpush1.bf16.msra.mxu0 0
        %2053 = vmatprep.subr.bf16.mxu0 0
        %2054 = vmatpush1.bf16.msra.mxu0 0
        %2055 = vmatprep.subr.bf16.mxu0 0
        %2056 = vmatpush1.bf16.msra.mxu0 0
        %2057 = vmatprep.subr.bf16.mxu0 0
        %2058 = vmatpush1.bf16.msra.mxu0 0
        %2059 = vmatprep.subr.bf16.mxu0 0
        %2060 = vmatpush1.bf16.msra.mxu0 0
        %2061 = vmatprep.subr.bf16.mxu0 0
        %2062 = vmatpush1.bf16.msra.mxu0 0
        %2063 = vmatprep.mubr.bf16.mxu0 0
        %2064 = vmatmul.mubr.bf16.gmra.mrb[0].mxu0 %v2029
        %v2065 = vpop.f32.mrb[0].mxu0
        %v2066 = vadd.f32 0.0, %v2065
        %v2067 = vpop.f32.mrb[0].mxu0
        %v2068 = vpop.f32.mrb[0].mxu0
        %v2069 = vpop.f32.mrb[0].mxu0
        %2070 = vdwg.mxu0
        %v2072 = vsel %vm1975, %v2021, 0
        %2074 = vmatprep.subr.bf16.mxu0 0
        %2075 = vmatpush1.bf16.msra.mxu0 %v2025
        %2076 = vmatprep.subr.bf16.mxu0 0
        %2077 = vmatpush1.bf16.msra.mxu0 0
        %2078 = vmatprep.subr.bf16.mxu0 0
        %2079 = vmatpush1.bf16.msra.mxu0 0
        %2080 = vmatprep.subr.bf16.mxu0 0
        %2081 = vmatpush1.bf16.msra.mxu0 0
        %2082 = vmatprep.subr.bf16.mxu0 0
        %2083 = vmatpush1.bf16.msra.mxu0 0
        %2084 = vmatprep.subr.bf16.mxu0 0
        %2085 = vmatpush1.bf16.msra.mxu0 0
        %2086 = vmatprep.subr.bf16.mxu0 0
        %2087 = vmatpush1.bf16.msra.mxu0 0
        %2088 = vmatprep.subr.bf16.mxu0 0
        %2089 = vmatpush1.bf16.msra.mxu0 0
        %2090 = vmatprep.subr.bf16.mxu0 0
        %2091 = vmatpush1.bf16.msra.mxu0 0
        %2092 = vmatprep.subr.bf16.mxu0 0
        %2093 = vmatpush1.bf16.msra.mxu0 0
        %2094 = vmatprep.subr.bf16.mxu0 0
        %2095 = vmatpush1.bf16.msra.mxu0 0
        %2096 = vmatprep.subr.bf16.mxu0 0
        %2097 = vmatpush1.bf16.msra.mxu0 0
        %2098 = vmatprep.subr.bf16.mxu0 0
        %2099 = vmatpush1.bf16.msra.mxu0 0
        %2100 = vmatprep.subr.bf16.mxu0 0
        %2101 = vmatpush1.bf16.msra.mxu0 0
        %2102 = vmatprep.subr.bf16.mxu0 0
        %2103 = vmatpush1.bf16.msra.mxu0 0
        %2104 = vmatprep.subr.bf16.mxu0 0
        %2105 = vmatpush1.bf16.msra.mxu0 0
        %2106 = vmatprep.mubr.bf16.mxu0 0
        %2107 = vmatmul.mubr.bf16.gmra.mrb[0].mxu0 %v2072
        %v2108 = vpop.f32.mrb[0].mxu0
        %v2109 = vadd.f32 0.0, %v2108
        %v2110 = vpop.f32.mrb[0].mxu0
        %v2111 = vpop.f32.mrb[0].mxu0
        %v2112 = vpop.f32.mrb[0].mxu0
        %2113 = vdwg.mxu0
        %v2115 = vsel %vm1975, %v2022, 0
        %2117 = vmatprep.subr.bf16.mxu0 0
        %2118 = vmatpush1.bf16.msra.mxu0 %v2026
        %2119 = vmatprep.subr.bf16.mxu0 0
        %2120 = vmatpush1.bf16.msra.mxu0 0
        %2121 = vmatprep.subr.bf16.mxu0 0
        %2122 = vmatpush1.bf16.msra.mxu0 0
        %2123 = vmatprep.subr.bf16.mxu0 0
        %2124 = vmatpush1.bf16.msra.mxu0 0
        %2125 = vmatprep.subr.bf16.mxu0 0
        %2126 = vmatpush1.bf16.msra.mxu0 0
        %2127 = vmatprep.subr.bf16.mxu0 0
        %2128 = vmatpush1.bf16.msra.mxu0 0
        %2129 = vmatprep.subr.bf16.mxu0 0
        %2130 = vmatpush1.bf16.msra.mxu0 0
        %2131 = vmatprep.subr.bf16.mxu0 0
        %2132 = vmatpush1.bf16.msra.mxu0 0
        %2133 = vmatprep.subr.bf16.mxu0 0
        %2134 = vmatpush1.bf16.msra.mxu0 0
        %2135 = vmatprep.subr.bf16.mxu0 0
        %2136 = vmatpush1.bf16.msra.mxu0 0
        %2137 = vmatprep.subr.bf16.mxu0 0
        %2138 = vmatpush1.bf16.msra.mxu0 0
        %2139 = vmatprep.subr.bf16.mxu0 0
        %2140 = vmatpush1.bf16.msra.mxu0 0
        %2141 = vmatprep.subr.bf16.mxu0 0
        %2142 = vmatpush1.bf16.msra.mxu0 0
        %2143 = vmatprep.subr.bf16.mxu0 0
        %2144 = vmatpush1.bf16.msra.mxu0 0
        %2145 = vmatprep.subr.bf16.mxu0 0
        %2146 = vmatpush1.bf16.msra.mxu0 0
        %2147 = vmatprep.subr.bf16.mxu0 0
        %2148 = vmatpush1.bf16.msra.mxu0 0
        %2149 = vmatprep.mubr.bf16.mxu0 0
        %2150 = vmatmul.mubr.bf16.gmra.mrb[0].mxu0 %v2115
        %v2151 = vpop.f32.mrb[0].mxu0
        %v2152 = vadd.f32 0.0, %v2151
        %v2153 = vpop.f32.mrb[0].mxu0
        %v2154 = vpop.f32.mrb[0].mxu0
        %v2155 = vpop.f32.mrb[0].mxu0
        %2156 = vdwg.mxu0
        %v2158 = vsel %vm1975, %v2023, 0
        %2160 = vmatprep.subr.bf16.mxu0 0
        %2161 = vmatpush1.bf16.msra.mxu0 %v2027
        %2162 = vmatprep.subr.bf16.mxu0 0
        %2163 = vmatpush1.bf16.msra.mxu0 0
        %2164 = vmatprep.subr.bf16.mxu0 0
        %2165 = vmatpush1.bf16.msra.mxu0 0
        %2166 = vmatprep.subr.bf16.mxu0 0
        %2167 = vmatpush1.bf16.msra.mxu0 0
        %2168 = vmatprep.subr.bf16.mxu0 0
        %2169 = vmatpush1.bf16.msra.mxu0 0
        %2170 = vmatprep.subr.bf16.mxu0 0
        %2171 = vmatpush1.bf16.msra.mxu0 0
        %2172 = vmatprep.subr.bf16.mxu0 0
        %2173 = vmatpush1.bf16.msra.mxu0 0
        %2174 = vmatprep.subr.bf16.mxu0 0
        %2175 = vmatpush1.bf16.msra.mxu0 0
        %2176 = vmatprep.subr.bf16.mxu0 0
        %2177 = vmatpush1.bf16.msra.mxu0 0
        %2178 = vmatprep.subr.bf16.mxu0 0
        %2179 = vmatpush1.bf16.msra.mxu0 0
        %2180 = vmatprep.subr.bf16.mxu0 0
        %2181 = vmatpush1.bf16.msra.mxu0 0
        %2182 = vmatprep.subr.bf16.mxu0 0
        %2183 = vmatpush1.bf16.msra.mxu0 0
        %2184 = vmatprep.subr.bf16.mxu0 0
        %2185 = vmatpush1.bf16.msra.mxu0 0
        %2186 = vmatprep.subr.bf16.mxu0 0
        %2187 = vmatpush1.bf16.msra.mxu0 0
        %2188 = vmatprep.subr.bf16.mxu0 0
        %2189 = vmatpush1.bf16.msra.mxu0 0
        %2190 = vmatprep.subr.bf16.mxu0 0
        %2191 = vmatpush1.bf16.msra.mxu0 0
        %2192 = vmatprep.mubr.bf16.mxu0 0
        %2193 = vmatmul.mubr.bf16.gmra.mrb[0].mxu0 %v2158
        %v2194 = vpop.f32.mrb[0].mxu0
        %v2195 = vadd.f32 0.0, %v2194
        %v2196 = vpop.f32.mrb[0].mxu0
        %v2197 = vpop.f32.mrb[0].mxu0
        %v2198 = vpop.f32.mrb[0].mxu0
        %2199 = vdwg.mxu0
        %v2200 = vpack.c.bf16 %v2066, %v2066
        %v2201 = vpack.c.bf16 %v2109, %v2109
        %v2202 = vpack.c.bf16 %v2152, %v2152
        %v2203 = vpack.c.bf16 %v2195, %v2195
        %v2220 = vunpack.c.l.b16 %v694
        %v2221 = vunpack.c.l.b16 %v695
        %v2222 = vunpack.c.l.b16 %v696
        %v2223 = vunpack.c.l.b16 %v697
        %v2224 = vunpack.c.l.b16 %v698
        %v2225 = vunpack.c.l.b16 %v699
        %v2226 = vunpack.c.l.b16 %v700
        %v2227 = vunpack.c.l.b16 %v701
        %v2228 = vunpack.c.l.b16 %v702
        %v2229 = vunpack.c.l.b16 %v703
        %v2230 = vunpack.c.l.b16 %v704
        %v2231 = vunpack.c.l.b16 %v705
        %v2232 = vunpack.c.l.b16 %v706
        %v2233 = vunpack.c.l.b16 %v707
        %v2234 = vunpack.c.l.b16 %v708
        %v2235 = vunpack.c.l.b16 %v709
        %v2236 = vpack.c.b16 %v2221, %v2220
        %v2237 = vpack.c.b16 %v2223, %v2222
        %v2238 = vpack.c.b16 %v2225, %v2224
        %v2239 = vpack.c.b16 %v2227, %v2226
        %v2240 = vpack.c.b16 %v2229, %v2228
        %v2241 = vpack.c.b16 %v2231, %v2230
        %v2242 = vpack.c.b16 %v2233, %v2232
        %v2243 = vpack.c.b16 %v2235, %v2234
        %v2245 = vsel %vm1777, %v2200, 0
        %v2248 = vsel %vm1777, %v2236, 0
        %v2251 = vsel %vm1777, %v2237, 0
        %v2254 = vsel %vm1777, %v2238, 0
        %v2257 = vsel %vm1777, %v2239, 0
        %v2260 = vsel %vm1777, %v2240, 0
        %v2263 = vsel %vm1777, %v2241, 0
        %v2266 = vsel %vm1777, %v2242, 0
        %v2269 = vsel %vm1777, %v2243, 0
        %2271 = vmatprep.subr.bf16.mxu0 0
        %2272 = vmatpush1.bf16.xpose.msra.mxu0 %v2248
        %2273 = vmatprep.subr.bf16.mxu0 0
        %2274 = vmatpush1.bf16.xpose.msra.mxu0 %v2251
        %2275 = vmatprep.subr.bf16.mxu0 0
        %2276 = vmatpush1.bf16.xpose.msra.mxu0 %v2254
        %2277 = vmatprep.subr.bf16.mxu0 0
        %2278 = vmatpush1.bf16.xpose.msra.mxu0 %v2257
        %2279 = vmatprep.subr.bf16.mxu0 0
        %2280 = vmatpush1.bf16.xpose.msra.mxu0 %v2260
        %2281 = vmatprep.subr.bf16.mxu0 0
        %2282 = vmatpush1.bf16.xpose.msra.mxu0 %v2263
        %2283 = vmatprep.subr.bf16.mxu0 0
        %2284 = vmatpush1.bf16.xpose.msra.mxu0 %v2266
        %2285 = vmatprep.subr.bf16.mxu0 0
        %2286 = vmatpush1.bf16.xpose.msra.mxu0 %v2269
        %2287 = vmatprep.subr.bf16.mxu0 0
        %2288 = vmatpush1.bf16.xpose.msra.mxu0 0
        %2289 = vmatprep.subr.bf16.mxu0 0
        %2290 = vmatpush1.bf16.xpose.msra.mxu0 0
        %2291 = vmatprep.subr.bf16.mxu0 0
        %2292 = vmatpush1.bf16.xpose.msra.mxu0 0
        %2293 = vmatprep.subr.bf16.mxu0 0
        %2294 = vmatpush1.bf16.xpose.msra.mxu0 0
        %2295 = vmatprep.subr.bf16.mxu0 0
        %2296 = vmatpush1.bf16.xpose.msra.mxu0 0
        %2297 = vmatprep.subr.bf16.mxu0 0
        %2298 = vmatpush1.bf16.xpose.msra.mxu0 0
        %2299 = vmatprep.subr.bf16.mxu0 0
        %2300 = vmatpush1.bf16.xpose.msra.mxu0 0
        %2301 = vmatprep.subr.bf16.mxu0 0
        %2302 = vmatpush1.bf16.xpose.msra.mxu0 0
        %2303 = vmatprep.mubr.bf16.mxu0 0
        %2304 = vmatmul.mubr.bf16.gmra.mrb[0].mxu0 %v2245
        %v2305 = vpop.f32.mrb[0].mxu0
        %v2306 = vadd.f32 0.0, %v2305
        %v2307 = vpop.f32.mrb[0].mxu0
        %v2308 = vpop.f32.mrb[0].mxu0
        %v2309 = vpop.f32.mrb[0].mxu0
        %2310 = vdwg.mxu0
        %v2327 = vunpack.c.l.b16 %v710
        %v2328 = vunpack.c.l.b16 %v711
        %v2329 = vunpack.c.l.b16 %v712
        %v2330 = vunpack.c.l.b16 %v713
        %v2331 = vunpack.c.l.b16 %v714
        %v2332 = vunpack.c.l.b16 %v715
        %v2333 = vunpack.c.l.b16 %v716
        %v2334 = vunpack.c.l.b16 %v717
        %v2335 = vunpack.c.l.b16 %v718
        %v2336 = vunpack.c.l.b16 %v719
        %v2337 = vunpack.c.l.b16 %v720
        %v2338 = vunpack.c.l.b16 %v721
        %v2339 = vunpack.c.l.b16 %v722
        %v2340 = vunpack.c.l.b16 %v723
        %v2341 = vunpack.c.l.b16 %v724
        %v2342 = vunpack.c.l.b16 %v725
        %v2343 = vpack.c.b16 %v2328, %v2327
        %v2344 = vpack.c.b16 %v2330, %v2329
        %v2345 = vpack.c.b16 %v2332, %v2331
        %v2346 = vpack.c.b16 %v2334, %v2333
        %v2347 = vpack.c.b16 %v2336, %v2335
        %v2348 = vpack.c.b16 %v2338, %v2337
        %v2349 = vpack.c.b16 %v2340, %v2339
        %v2350 = vpack.c.b16 %v2342, %v2341
        %v2352 = vsel %vm1777, %v2201, 0
        %v2355 = vsel %vm1777, %v2343, 0
        %v2358 = vsel %vm1777, %v2344, 0
        %v2361 = vsel %vm1777, %v2345, 0
        %v2364 = vsel %vm1777, %v2346, 0
        %v2367 = vsel %vm1777, %v2347, 0
        %v2370 = vsel %vm1777, %v2348, 0
        %v2373 = vsel %vm1777, %v2349, 0
        %v2376 = vsel %vm1777, %v2350, 0
        %2378 = vmatprep.subr.bf16.mxu0 0
        %2379 = vmatpush1.bf16.xpose.msra.mxu0 %v2355
        %2380 = vmatprep.subr.bf16.mxu0 0
        %2381 = vmatpush1.bf16.xpose.msra.mxu0 %v2358
        %2382 = vmatprep.subr.bf16.mxu0 0
        %2383 = vmatpush1.bf16.xpose.msra.mxu0 %v2361
        %2384 = vmatprep.subr.bf16.mxu0 0
        %2385 = vmatpush1.bf16.xpose.msra.mxu0 %v2364
        %2386 = vmatprep.subr.bf16.mxu0 0
        %2387 = vmatpush1.bf16.xpose.msra.mxu0 %v2367
        %2388 = vmatprep.subr.bf16.mxu0 0
        %2389 = vmatpush1.bf16.xpose.msra.mxu0 %v2370
        %2390 = vmatprep.subr.bf16.mxu0 0
        %2391 = vmatpush1.bf16.xpose.msra.mxu0 %v2373
        %2392 = vmatprep.subr.bf16.mxu0 0
        %2393 = vmatpush1.bf16.xpose.msra.mxu0 %v2376
        %2394 = vmatprep.subr.bf16.mxu0 0
        %2395 = vmatpush1.bf16.xpose.msra.mxu0 0
        %2396 = vmatprep.subr.bf16.mxu0 0
        %2397 = vmatpush1.bf16.xpose.msra.mxu0 0
        %2398 = vmatprep.subr.bf16.mxu0 0
        %2399 = vmatpush1.bf16.xpose.msra.mxu0 0
        %2400 = vmatprep.subr.bf16.mxu0 0
        %2401 = vmatpush1.bf16.xpose.msra.mxu0 0
        %2402 = vmatprep.subr.bf16.mxu0 0
        %2403 = vmatpush1.bf16.xpose.msra.mxu0 0
        %2404 = vmatprep.subr.bf16.mxu0 0
        %2405 = vmatpush1.bf16.xpose.msra.mxu0 0
        %2406 = vmatprep.subr.bf16.mxu0 0
        %2407 = vmatpush1.bf16.xpose.msra.mxu0 0
        %2408 = vmatprep.subr.bf16.mxu0 0
        %2409 = vmatpush1.bf16.xpose.msra.mxu0 0
        %2410 = vmatprep.mubr.bf16.mxu0 0
        %2411 = vmatmul.mubr.bf16.gmra.mrb[0].mxu0 %v2352
        %v2412 = vpop.f32.mrb[0].mxu0
        %v2413 = vadd.f32 0.0, %v2412
        %v2414 = vpop.f32.mrb[0].mxu0
        %v2415 = vpop.f32.mrb[0].mxu0
        %v2416 = vpop.f32.mrb[0].mxu0
        %2417 = vdwg.mxu0
        %v2434 = vunpack.c.l.b16 %v726
        %v2435 = vunpack.c.l.b16 %v727
        %v2436 = vunpack.c.l.b16 %v728
        %v2437 = vunpack.c.l.b16 %v729
        %v2438 = vunpack.c.l.b16 %v730
        %v2439 = vunpack.c.l.b16 %v731
        %v2440 = vunpack.c.l.b16 %v732
        %v2441 = vunpack.c.l.b16 %v733
        %v2442 = vunpack.c.l.b16 %v734
        %v2443 = vunpack.c.l.b16 %v735
        %v2444 = vunpack.c.l.b16 %v736
        %v2445 = vunpack.c.l.b16 %v737
        %v2446 = vunpack.c.l.b16 %v738
        %v2447 = vunpack.c.l.b16 %v739
        %v2448 = vunpack.c.l.b16 %v740
        %v2449 = vunpack.c.l.b16 %v741
        %v2450 = vpack.c.b16 %v2435, %v2434
        %v2451 = vpack.c.b16 %v2437, %v2436
        %v2452 = vpack.c.b16 %v2439, %v2438
        %v2453 = vpack.c.b16 %v2441, %v2440
        %v2454 = vpack.c.b16 %v2443, %v2442
        %v2455 = vpack.c.b16 %v2445, %v2444
        %v2456 = vpack.c.b16 %v2447, %v2446
        %v2457 = vpack.c.b16 %v2449, %v2448
        %v2459 = vsel %vm1777, %v2202, 0
        %v2462 = vsel %vm1777, %v2450, 0
        %v2465 = vsel %vm1777, %v2451, 0
        %v2468 = vsel %vm1777, %v2452, 0
        %v2471 = vsel %vm1777, %v2453, 0
        %v2474 = vsel %vm1777, %v2454, 0
        %v2477 = vsel %vm1777, %v2455, 0
        %v2480 = vsel %vm1777, %v2456, 0
        %v2483 = vsel %vm1777, %v2457, 0
        %2485 = vmatprep.subr.bf16.mxu0 0
        %2486 = vmatpush1.bf16.xpose.msra.mxu0 %v2462
        %2487 = vmatprep.subr.bf16.mxu0 0
        %2488 = vmatpush1.bf16.xpose.msra.mxu0 %v2465
        %2489 = vmatprep.subr.bf16.mxu0 0
        %2490 = vmatpush1.bf16.xpose.msra.mxu0 %v2468
        %2491 = vmatprep.subr.bf16.mxu0 0
        %2492 = vmatpush1.bf16.xpose.msra.mxu0 %v2471
        %2493 = vmatprep.subr.bf16.mxu0 0
        %2494 = vmatpush1.bf16.xpose.msra.mxu0 %v2474
        %2495 = vmatprep.subr.bf16.mxu0 0
        %2496 = vmatpush1.bf16.xpose.msra.mxu0 %v2477
        %2497 = vmatprep.subr.bf16.mxu0 0
        %2498 = vmatpush1.bf16.xpose.msra.mxu0 %v2480
        %2499 = vmatprep.subr.bf16.mxu0 0
        %2500 = vmatpush1.bf16.xpose.msra.mxu0 %v2483
        %2501 = vmatprep.subr.bf16.mxu0 0
        %2502 = vmatpush1.bf16.xpose.msra.mxu0 0
        %2503 = vmatprep.subr.bf16.mxu0 0
        %2504 = vmatpush1.bf16.xpose.msra.mxu0 0
        %2505 = vmatprep.subr.bf16.mxu0 0
        %2506 = vmatpush1.bf16.xpose.msra.mxu0 0
        %2507 = vmatprep.subr.bf16.mxu0 0
        %2508 = vmatpush1.bf16.xpose.msra.mxu0 0
        %2509 = vmatprep.subr.bf16.mxu0 0
        %2510 = vmatpush1.bf16.xpose.msra.mxu0 0
        %2511 = vmatprep.subr.bf16.mxu0 0
        %2512 = vmatpush1.bf16.xpose.msra.mxu0 0
        %2513 = vmatprep.subr.bf16.mxu0 0
        %2514 = vmatpush1.bf16.xpose.msra.mxu0 0
        %2515 = vmatprep.subr.bf16.mxu0 0
        %2516 = vmatpush1.bf16.xpose.msra.mxu0 0
        %2517 = vmatprep.mubr.bf16.mxu0 0
        %2518 = vmatmul.mubr.bf16.gmra.mrb[0].mxu0 %v2459
        %v2519 = vpop.f32.mrb[0].mxu0
        %v2520 = vadd.f32 0.0, %v2519
        %v2521 = vpop.f32.mrb[0].mxu0
        %v2522 = vpop.f32.mrb[0].mxu0
        %v2523 = vpop.f32.mrb[0].mxu0
        %2524 = vdwg.mxu0
        %v2541 = vunpack.c.l.b16 %v742
        %v2542 = vunpack.c.l.b16 %v743
        %v2543 = vunpack.c.l.b16 %v744
        %v2544 = vunpack.c.l.b16 %v745
        %v2545 = vunpack.c.l.b16 %v746
        %v2546 = vunpack.c.l.b16 %v747
        %v2547 = vunpack.c.l.b16 %v748
        %v2548 = vunpack.c.l.b16 %v749
        %v2549 = vunpack.c.l.b16 %v750
        %v2550 = vunpack.c.l.b16 %v751
        %v2551 = vunpack.c.l.b16 %v752
        %v2552 = vunpack.c.l.b16 %v753
        %v2553 = vunpack.c.l.b16 %v754
        %v2554 = vunpack.c.l.b16 %v755
        %v2555 = vunpack.c.l.b16 %v756
        %v2556 = vunpack.c.l.b16 %v757
        %v2557 = vpack.c.b16 %v2542, %v2541
        %v2558 = vpack.c.b16 %v2544, %v2543
        %v2559 = vpack.c.b16 %v2546, %v2545
        %v2560 = vpack.c.b16 %v2548, %v2547
        %v2561 = vpack.c.b16 %v2550, %v2549
        %v2562 = vpack.c.b16 %v2552, %v2551
        %v2563 = vpack.c.b16 %v2554, %v2553
        %v2564 = vpack.c.b16 %v2556, %v2555
        %v2566 = vsel %vm1777, %v2203, 0
        %v2569 = vsel %vm1777, %v2557, 0
        %v2572 = vsel %vm1777, %v2558, 0
        %v2575 = vsel %vm1777, %v2559, 0
        %v2578 = vsel %vm1777, %v2560, 0
        %v2581 = vsel %vm1777, %v2561, 0
        %v2584 = vsel %vm1777, %v2562, 0
        %v2587 = vsel %vm1777, %v2563, 0
        %v2590 = vsel %vm1777, %v2564, 0
        %2592 = vmatprep.subr.bf16.mxu0 0
        %2593 = vmatpush1.bf16.xpose.msra.mxu0 %v2569
        %2594 = vmatprep.subr.bf16.mxu0 0
        %2595 = vmatpush1.bf16.xpose.msra.mxu0 %v2572
        %2596 = vmatprep.subr.bf16.mxu0 0
        %2597 = vmatpush1.bf16.xpose.msra.mxu0 %v2575
        %2598 = vmatprep.subr.bf16.mxu0 0
        %2599 = vmatpush1.bf16.xpose.msra.mxu0 %v2578
        %2600 = vmatprep.subr.bf16.mxu0 0
        %2601 = vmatpush1.bf16.xpose.msra.mxu0 %v2581
        %2602 = vmatprep.subr.bf16.mxu0 0
        %2603 = vmatpush1.bf16.xpose.msra.mxu0 %v2584
        %2604 = vmatprep.subr.bf16.mxu0 0
        %2605 = vmatpush1.bf16.xpose.msra.mxu0 %v2587
        %2606 = vmatprep.subr.bf16.mxu0 0
        %2607 = vmatpush1.bf16.xpose.msra.mxu0 %v2590
        %2608 = vmatprep.subr.bf16.mxu0 0
        %2609 = vmatpush1.bf16.xpose.msra.mxu0 0
        %2610 = vmatprep.subr.bf16.mxu0 0
        %2611 = vmatpush1.bf16.xpose.msra.mxu0 0
        %2612 = vmatprep.subr.bf16.mxu0 0
        %2613 = vmatpush1.bf16.xpose.msra.mxu0 0
        %2614 = vmatprep.subr.bf16.mxu0 0
        %2615 = vmatpush1.bf16.xpose.msra.mxu0 0
        %2616 = vmatprep.subr.bf16.mxu0 0
        %2617 = vmatpush1.bf16.xpose.msra.mxu0 0
        %2618 = vmatprep.subr.bf16.mxu0 0
        %2619 = vmatpush1.bf16.xpose.msra.mxu0 0
        %2620 = vmatprep.subr.bf16.mxu0 0
        %2621 = vmatpush1.bf16.xpose.msra.mxu0 0
        %2622 = vmatprep.subr.bf16.mxu0 0
        %2623 = vmatpush1.bf16.xpose.msra.mxu0 0
        %2624 = vmatprep.mubr.bf16.mxu0 0
        %2625 = vmatmul.mubr.bf16.gmra.mrb[0].mxu0 %v2566
        %v2626 = vpop.f32.mrb[0].mxu0
        %v2627 = vadd.f32 0.0, %v2626
        %v2628 = vpop.f32.mrb[0].mxu0
        %v2629 = vpop.f32.mrb[0].mxu0
        %v2630 = vpop.f32.mrb[0].mxu0
        %2631 = vdwg.mxu0
        %v2632 = vadd.f32 %v2306, %v2413
        %v2633 = vadd.f32 %v2632, %v2520
        %v2634 = vadd.f32 %v2633, %v2627
        %v2635 = vadd.f32 %v690, %v2634
        %2636 = vadd.xlane.f32.xlu0 %v2635
        %v2637 = vpop.xlane.xlu0 %2636
        %v2638 = vrcp.pop 128.0
        %v2639 = vmul.f32 %v2637, %v2638
        %v2640 = vsub.f32 %v2635, %v2639
        %v2641 = vmul.f32 %v2640, %v2640
        %2642 = vadd.xlane.f32.xlu0 %v2641
        %v2643 = vpop.xlane.xlu0 %2642
        %v2644 = vmul.f32 %v2643, 0.007874016
        %v2645 = vrsqrt.pop %v2644
        %v2646 = vmul.f32 %v2644, %v2645
        %vm2647 = vcmp.eq.f32.partialorder %v2644, inf
        %v2648 = vsel %vm2647, %v2644, %v2646
        %vm2649 = vcmp.eq.f32.partialorder %v2644, 0.0
        %v2650 = vand.u32 %v2644, 2147483648
        %v2651 = vsel %vm2649, %v2650, %v2648
        %v2652 = vadd.f32 %v2651, 1e-06
        %v2653 = vrcp.pop %v2652
        %v2654 = vmul.f32 %v2640, %v2653
        %v2655 = vlaneseq
        %v2656 = vshrl.u32 %v2655, 7
        %v2657 = vsub.s32 0, %v2656
        %v2658 = vrot.slane %v691, %v2657
        %v2659 = vmul.f32 %v2658, %v2654
        %v2660 = vlaneseq
        %v2661 = vshrl.u32 %v2660, 7
        %v2662 = vsub.s32 0, %v2661
        %v2663 = vrot.slane %v692, %v2662
        %v2664 = vadd.f32 %v2659, %v2663
        %v2665 = vld [vmem:[#allocation13] sm:$0xf]
        %v2666 = vld [vmem:[#allocation13 + $0x4] sm:$0xf]
        %v2667 = vld [vmem:[#allocation13 + $0x8] sm:$0xf]
        %v2668 = vld [vmem:[#allocation13 + $0xc] sm:$0xf]
        %v2669 = vld [vmem:[#allocation13 + $0x10] sm:$0xf]
        %v2670 = vld [vmem:[#allocation13 + $0x14] sm:$0xf]
        %v2671 = vld [vmem:[#allocation13 + $0x18] sm:$0xf]
        %v2672 = vld [vmem:[#allocation13 + $0x1c] sm:$0xf]
        %v2673 = vld [vmem:[#allocation13 + $0x20] sm:$0xf]
        %v2674 = vld [vmem:[#allocation13 + $0x24] sm:$0xf]
        %v2675 = vld [vmem:[#allocation13 + $0x28] sm:$0xf]
        %v2676 = vld [vmem:[#allocation13 + $0x2c] sm:$0xf]
        %v2677 = vld [vmem:[#allocation13 + $0x30] sm:$0xf]
        %v2678 = vld [vmem:[#allocation13 + $0x34] sm:$0xf]
        %v2679 = vld [vmem:[#allocation13 + $0x38] sm:$0xf]
        %v2680 = vld [vmem:[#allocation13 + $0x3c] sm:$0xf]
        %v2681 = vld [vmem:[#allocation13 + $0x40] sm:$0xf]
        %v2682 = vld [vmem:[#allocation13 + $0x44] sm:$0xf]
        %v2683 = vld [vmem:[#allocation13 + $0x48] sm:$0xf]
        %v2684 = vld [vmem:[#allocation13 + $0x4c] sm:$0xf]
        %v2685 = vld [vmem:[#allocation13 + $0x50] sm:$0xf]
        %v2686 = vld [vmem:[#allocation13 + $0x54] sm:$0xf]
        %v2687 = vld [vmem:[#allocation13 + $0x58] sm:$0xf]
        %v2688 = vld [vmem:[#allocation13 + $0x5c] sm:$0xf]
        %v2689 = vld [vmem:[#allocation13 + $0x60] sm:$0xf]
        %v2690 = vld [vmem:[#allocation13 + $0x64] sm:$0xf]
        %v2691 = vld [vmem:[#allocation13 + $0x68] sm:$0xf]
        %v2692 = vld [vmem:[#allocation13 + $0x6c] sm:$0xf]
        %v2693 = vld [vmem:[#allocation13 + $0x70] sm:$0xf]
        %v2694 = vld [vmem:[#allocation13 + $0x74] sm:$0xf]
        %v2695 = vld [vmem:[#allocation13 + $0x78] sm:$0xf]
        %v2696 = vld [vmem:[#allocation13 + $0x7c] sm:$0xf]
        %v2697 = vld [vmem:[#allocation13 + $0x80] sm:$0xf]
        %v2698 = vld [vmem:[#allocation13 + $0x84] sm:$0xf]
        %v2699 = vld [vmem:[#allocation13 + $0x88] sm:$0xf]
        %v2700 = vld [vmem:[#allocation13 + $0x8c] sm:$0xf]
        %v2701 = vld [vmem:[#allocation13 + $0x90] sm:$0xf]
        %v2702 = vld [vmem:[#allocation13 + $0x94] sm:$0xf]
        %v2703 = vld [vmem:[#allocation13 + $0x98] sm:$0xf]
        %v2704 = vld [vmem:[#allocation13 + $0x9c] sm:$0xf]
        %v2705 = vld [vmem:[#allocation13 + $0xa0] sm:$0xf]
        %v2706 = vld [vmem:[#allocation13 + $0xa4] sm:$0xf]
        %v2707 = vld [vmem:[#allocation13 + $0xa8] sm:$0xf]
        %v2708 = vld [vmem:[#allocation13 + $0xac] sm:$0xf]
        %v2709 = vld [vmem:[#allocation13 + $0xb0] sm:$0xf]
        %v2710 = vld [vmem:[#allocation13 + $0xb4] sm:$0xf]
        %v2711 = vld [vmem:[#allocation13 + $0xb8] sm:$0xf]
        %v2712 = vld [vmem:[#allocation13 + $0xbc] sm:$0xf]
        %v2713 = vld [vmem:[#allocation13 + $0xc0] sm:$0xf]
        %v2714 = vld [vmem:[#allocation13 + $0xc4] sm:$0xf]
        %v2715 = vld [vmem:[#allocation13 + $0xc8] sm:$0xf]
        %v2716 = vld [vmem:[#allocation13 + $0xcc] sm:$0xf]
        %v2717 = vld [vmem:[#allocation13 + $0xd0] sm:$0xf]
        %v2718 = vld [vmem:[#allocation13 + $0xd4] sm:$0xf]
        %v2719 = vld [vmem:[#allocation13 + $0xd8] sm:$0xf]
        %v2720 = vld [vmem:[#allocation13 + $0xdc] sm:$0xf]
        %v2721 = vld [vmem:[#allocation13 + $0xe0] sm:$0xf]
        %v2722 = vld [vmem:[#allocation13 + $0xe4] sm:$0xf]
        %v2723 = vld [vmem:[#allocation13 + $0xe8] sm:$0xf]
        %v2724 = vld [vmem:[#allocation13 + $0xec] sm:$0xf]
        %v2725 = vld [vmem:[#allocation13 + $0xf0] sm:$0xf]
        %v2726 = vld [vmem:[#allocation13 + $0xf4] sm:$0xf]
        %v2727 = vld [vmem:[#allocation13 + $0xf8] sm:$0xf]
        %v2728 = vld [vmem:[#allocation13 + $0xfc] sm:$0xf]
        %v2729 = vld [vmem:[#allocation11] sm:$0xf]
        %v2730 = vld [vmem:[#allocation11 + $0x4] sm:$0xf]
        %v2731 = vld [vmem:[#allocation11 + $0x8] sm:$0xf]
        %v2732 = vld [vmem:[#allocation11 + $0xc] sm:$0xf]
        %v2733 = vld [vmem:[#allocation11 + $0x10] sm:$0xf]
        %v2734 = vld [vmem:[#allocation11 + $0x14] sm:$0xf]
        %v2735 = vld [vmem:[#allocation11 + $0x18] sm:$0xf]
        %v2736 = vld [vmem:[#allocation11 + $0x1c] sm:$0xf]
        %v2737 = vld [vmem:[#allocation11 + $0x20] sm:$0xf]
        %v2738 = vld [vmem:[#allocation11 + $0x24] sm:$0xf]
        %v2739 = vld [vmem:[#allocation11 + $0x28] sm:$0xf]
        %v2740 = vld [vmem:[#allocation11 + $0x2c] sm:$0xf]
        %v2741 = vld [vmem:[#allocation11 + $0x30] sm:$0xf]
        %v2742 = vld [vmem:[#allocation11 + $0x34] sm:$0xf]
        %v2743 = vld [vmem:[#allocation11 + $0x38] sm:$0xf]
        %v2744 = vld [vmem:[#allocation11 + $0x3c] sm:$0xf]
        %v2745 = vld [vmem:[#allocation11 + $0x40] sm:$0xf]
        %v2746 = vld [vmem:[#allocation11 + $0x44] sm:$0xf]
        %v2747 = vld [vmem:[#allocation11 + $0x48] sm:$0xf]
        %v2748 = vld [vmem:[#allocation11 + $0x4c] sm:$0xf]
        %v2749 = vld [vmem:[#allocation11 + $0x50] sm:$0xf]
        %v2750 = vld [vmem:[#allocation11 + $0x54] sm:$0xf]
        %v2751 = vld [vmem:[#allocation11 + $0x58] sm:$0xf]
        %v2752 = vld [vmem:[#allocation11 + $0x5c] sm:$0xf]
        %v2753 = vld [vmem:[#allocation11 + $0x60] sm:$0xf]
        %v2754 = vld [vmem:[#allocation11 + $0x64] sm:$0xf]
        %v2755 = vld [vmem:[#allocation11 + $0x68] sm:$0xf]
        %v2756 = vld [vmem:[#allocation11 + $0x6c] sm:$0xf]
        %v2757 = vld [vmem:[#allocation11 + $0x70] sm:$0xf]
        %v2758 = vld [vmem:[#allocation11 + $0x74] sm:$0xf]
        %v2759 = vld [vmem:[#allocation11 + $0x78] sm:$0xf]
        %v2760 = vld [vmem:[#allocation11 + $0x7c] sm:$0xf]
        %v2761 = vld [vmem:[#allocation11 + $0x80] sm:$0xf]
        %v2762 = vld [vmem:[#allocation11 + $0x84] sm:$0xf]
        %v2763 = vld [vmem:[#allocation11 + $0x88] sm:$0xf]
        %v2764 = vld [vmem:[#allocation11 + $0x8c] sm:$0xf]
        %v2765 = vld [vmem:[#allocation11 + $0x90] sm:$0xf]
        %v2766 = vld [vmem:[#allocation11 + $0x94] sm:$0xf]
        %v2767 = vld [vmem:[#allocation11 + $0x98] sm:$0xf]
        %v2768 = vld [vmem:[#allocation11 + $0x9c] sm:$0xf]
        %v2769 = vld [vmem:[#allocation11 + $0xa0] sm:$0xf]
        %v2770 = vld [vmem:[#allocation11 + $0xa4] sm:$0xf]
        %v2771 = vld [vmem:[#allocation11 + $0xa8] sm:$0xf]
        %v2772 = vld [vmem:[#allocation11 + $0xac] sm:$0xf]
        %v2773 = vld [vmem:[#allocation11 + $0xb0] sm:$0xf]
        %v2774 = vld [vmem:[#allocation11 + $0xb4] sm:$0xf]
        %v2775 = vld [vmem:[#allocation11 + $0xb8] sm:$0xf]
        %v2776 = vld [vmem:[#allocation11 + $0xbc] sm:$0xf]
        %v2777 = vpack.c.bf16 %v2664, %v2664
        %v2794 = vunpack.c.l.b16 %v2729
        %v2795 = vunpack.c.l.b16 %v2730
        %v2796 = vunpack.c.l.b16 %v2731
        %v2797 = vunpack.c.l.b16 %v2732
        %v2798 = vunpack.c.l.b16 %v2733
        %v2799 = vunpack.c.l.b16 %v2734
        %v2800 = vunpack.c.l.b16 %v2735
        %v2801 = vunpack.c.l.b16 %v2736
        %v2802 = vunpack.c.l.b16 %v2737
        %v2803 = vunpack.c.l.b16 %v2738
        %v2804 = vunpack.c.l.b16 %v2739
        %v2805 = vunpack.c.l.b16 %v2740
        %v2806 = vunpack.c.l.b16 %v2741
        %v2807 = vunpack.c.l.b16 %v2742
        %v2808 = vunpack.c.l.b16 %v2743
        %v2809 = vunpack.c.l.b16 %v2744
        %v2810 = vpack.c.b16 %v2795, %v2794
        %v2811 = vpack.c.b16 %v2797, %v2796
        %v2812 = vpack.c.b16 %v2799, %v2798
        %v2813 = vpack.c.b16 %v2801, %v2800
        %v2814 = vpack.c.b16 %v2803, %v2802
        %v2815 = vpack.c.b16 %v2805, %v2804
        %v2816 = vpack.c.b16 %v2807, %v2806
        %v2817 = vpack.c.b16 %v2809, %v2808
        %2826 = vmatprep.subr.bf16.mxu0 0
        %2827 = vmatpush1.bf16.xpose.msra.mxu0 %v2810
        %2828 = vmatprep.subr.bf16.mxu0 0
        %2829 = vmatpush1.bf16.xpose.msra.mxu0 %v2811
        %2830 = vmatprep.subr.bf16.mxu0 0
        %2831 = vmatpush1.bf16.xpose.msra.mxu0 %v2812
        %2832 = vmatprep.subr.bf16.mxu0 0
        %2833 = vmatpush1.bf16.xpose.msra.mxu0 %v2813
        %2834 = vmatprep.subr.bf16.mxu0 0
        %2835 = vmatpush1.bf16.xpose.msra.mxu0 %v2814
        %2836 = vmatprep.subr.bf16.mxu0 0
        %2837 = vmatpush1.bf16.xpose.msra.mxu0 %v2815
        %2838 = vmatprep.subr.bf16.mxu0 0
        %2839 = vmatpush1.bf16.xpose.msra.mxu0 %v2816
        %2840 = vmatprep.subr.bf16.mxu0 0
        %2841 = vmatpush1.bf16.xpose.msra.mxu0 %v2817
        %2842 = vmatprep.subr.bf16.mxu0 0
        %2843 = vmatpush1.bf16.xpose.msra.mxu0 0
        %2844 = vmatprep.subr.bf16.mxu0 0
        %2845 = vmatpush1.bf16.xpose.msra.mxu0 0
        %2846 = vmatprep.subr.bf16.mxu0 0
        %2847 = vmatpush1.bf16.xpose.msra.mxu0 0
        %2848 = vmatprep.subr.bf16.mxu0 0
        %2849 = vmatpush1.bf16.xpose.msra.mxu0 0
        %2850 = vmatprep.subr.bf16.mxu0 0
        %2851 = vmatpush1.bf16.xpose.msra.mxu0 0
        %2852 = vmatprep.subr.bf16.mxu0 0
        %2853 = vmatpush1.bf16.xpose.msra.mxu0 0
        %2854 = vmatprep.subr.bf16.mxu0 0
        %2855 = vmatpush1.bf16.xpose.msra.mxu0 0
        %2856 = vmatprep.subr.bf16.mxu0 0
        %2857 = vmatpush1.bf16.xpose.msra.mxu0 0
        %2858 = vmatprep.mubr.bf16.mxu0 0
        %2859 = vmatmul.mubr.bf16.gmra.mrb[0].mxu0 %v2777
        %v2860 = vpop.f32.mrb[0].mxu0
        %v2861 = vadd.f32 0.0, %v2860
        %v2862 = vpop.f32.mrb[0].mxu0
        %v2863 = vpop.f32.mrb[0].mxu0
        %v2864 = vpop.f32.mrb[0].mxu0
        %2865 = vdwg.mxu0
        %v2898 = vunpack.c.l.b16 %v2745
        %v2899 = vunpack.c.l.b16 %v2746
        %v2900 = vunpack.c.l.b16 %v2747
        %v2901 = vunpack.c.l.b16 %v2748
        %v2902 = vunpack.c.l.b16 %v2749
        %v2903 = vunpack.c.l.b16 %v2750
        %v2904 = vunpack.c.l.b16 %v2751
        %v2905 = vunpack.c.l.b16 %v2752
        %v2906 = vunpack.c.l.b16 %v2753
        %v2907 = vunpack.c.l.b16 %v2754
        %v2908 = vunpack.c.l.b16 %v2755
        %v2909 = vunpack.c.l.b16 %v2756
        %v2910 = vunpack.c.l.b16 %v2757
        %v2911 = vunpack.c.l.b16 %v2758
        %v2912 = vunpack.c.l.b16 %v2759
        %v2913 = vunpack.c.l.b16 %v2760
        %v2914 = vunpack.c.l.b16 %v2761
        %v2915 = vunpack.c.l.b16 %v2762
        %v2916 = vunpack.c.l.b16 %v2763
        %v2917 = vunpack.c.l.b16 %v2764
        %v2918 = vunpack.c.l.b16 %v2765
        %v2919 = vunpack.c.l.b16 %v2766
        %v2920 = vunpack.c.l.b16 %v2767
        %v2921 = vunpack.c.l.b16 %v2768
        %v2922 = vunpack.c.l.b16 %v2769
        %v2923 = vunpack.c.l.b16 %v2770
        %v2924 = vunpack.c.l.b16 %v2771
        %v2925 = vunpack.c.l.b16 %v2772
        %v2926 = vunpack.c.l.b16 %v2773
        %v2927 = vunpack.c.l.b16 %v2774
        %v2928 = vunpack.c.l.b16 %v2775
        %v2929 = vunpack.c.l.b16 %v2776
        %v2930 = vpack.c.b16 %v2899, %v2898
        %v2931 = vpack.c.b16 %v2901, %v2900
        %v2932 = vpack.c.b16 %v2903, %v2902
        %v2933 = vpack.c.b16 %v2905, %v2904
        %v2934 = vpack.c.b16 %v2907, %v2906
        %v2935 = vpack.c.b16 %v2909, %v2908
        %v2936 = vpack.c.b16 %v2911, %v2910
        %v2937 = vpack.c.b16 %v2913, %v2912
        %v2938 = vpack.c.b16 %v2915, %v2914
        %v2939 = vpack.c.b16 %v2917, %v2916
        %v2940 = vpack.c.b16 %v2919, %v2918
        %v2941 = vpack.c.b16 %v2921, %v2920
        %v2942 = vpack.c.b16 %v2923, %v2922
        %v2943 = vpack.c.b16 %v2925, %v2924
        %v2944 = vpack.c.b16 %v2927, %v2926
        %v2945 = vpack.c.b16 %v2929, %v2928
        %2962 = vmatprep.subr.bf16.mxu0 0
        %2963 = vmatpush1.bf16.xpose.msra.mxu0 %v2930
        %2964 = vmatprep.subr.bf16.mxu0 0
        %2965 = vmatpush1.bf16.xpose.msra.mxu0 %v2931
        %2966 = vmatprep.subr.bf16.mxu0 0
        %2967 = vmatpush1.bf16.xpose.msra.mxu0 %v2932
        %2968 = vmatprep.subr.bf16.mxu0 0
        %2969 = vmatpush1.bf16.xpose.msra.mxu0 %v2933
        %2970 = vmatprep.subr.bf16.mxu0 0
        %2971 = vmatpush1.bf16.xpose.msra.mxu0 %v2934
        %2972 = vmatprep.subr.bf16.mxu0 0
        %2973 = vmatpush1.bf16.xpose.msra.mxu0 %v2935
        %2974 = vmatprep.subr.bf16.mxu0 0
        %2975 = vmatpush1.bf16.xpose.msra.mxu0 %v2936
        %2976 = vmatprep.subr.bf16.mxu0 0
        %2977 = vmatpush1.bf16.xpose.msra.mxu0 %v2937
        %2978 = vmatprep.subr.bf16.mxu0 0
        %2979 = vmatpush1.bf16.xpose.msra.mxu0 %v2938
        %2980 = vmatprep.subr.bf16.mxu0 0
        %2981 = vmatpush1.bf16.xpose.msra.mxu0 %v2939
        %2982 = vmatprep.subr.bf16.mxu0 0
        %2983 = vmatpush1.bf16.xpose.msra.mxu0 %v2940
        %2984 = vmatprep.subr.bf16.mxu0 0
        %2985 = vmatpush1.bf16.xpose.msra.mxu0 %v2941
        %2986 = vmatprep.subr.bf16.mxu0 0
        %2987 = vmatpush1.bf16.xpose.msra.mxu0 %v2942
        %2988 = vmatprep.subr.bf16.mxu0 0
        %2989 = vmatpush1.bf16.xpose.msra.mxu0 %v2943
        %2990 = vmatprep.subr.bf16.mxu0 0
        %2991 = vmatpush1.bf16.xpose.msra.mxu0 %v2944
        %2992 = vmatprep.subr.bf16.mxu0 0
        %2993 = vmatpush1.bf16.xpose.msra.mxu0 %v2945
        %2994 = vmatprep.mubr.bf16.mxu0 0
        %2995 = vmatmul.mubr.bf16.gmra.mrb[0].mxu0 %v689
        %v2996 = vpop.f32.mrb[0].mxu0
        %v2997 = vadd.f32 0.0, %v2996
        %v2998 = vpop.f32.mrb[0].mxu0
        %v2999 = vadd.f32 0.0, %v2998
        %v3000 = vpop.f32.mrb[0].mxu0
        %v3001 = vpop.f32.mrb[0].mxu0
        %3002 = vdwg.mxu0
        %3004 = vrot.lane.b32.xlu0 %v2861, 96
        %v3005 = vpop.permute.xlu0 %3004
        %3007 = vrot.lane.b32.xlu0 %v2861, 64
        %v3008 = vpop.permute.xlu0 %3007
        %3010 = vrot.lane.b32.xlu0 %v2861, 32
        %v3011 = vpop.permute.xlu0 %3010
        %v3013 = vcombine.low %v2861, %v3008
        %v3014 = vcombine.high %v2861, %v3008
        %v3016 = vunpack.c.l.s4 1983009808
        %v3017 = vunpack.c.0.s8 %v3016
        %v3018 = vlaneseq
        %v3019 = vshrl.u32 %v3018, 7
        %v3020 = vsub.s32 %v3017, %v3019
        %v3021 = vrot.slane %v3013, %v3020
        %v3023 = vunpack.c.l.s4 1983009808
        %v3024 = vunpack.c.0.s8 %v3023
        %v3025 = vlaneseq
        %v3026 = vshrl.u32 %v3025, 7
        %v3027 = vsub.s32 %v3024, %v3026
        %v3028 = vrot.slane %v3014, %v3027
        %v3029 = vcombine.low %v3005, %v3011
        %v3030 = vcombine.high %v3005, %v3011
        %v3032 = vunpack.c.l.s4 1983009808
        %v3033 = vunpack.c.0.s8 %v3032
        %v3034 = vlaneseq
        %v3035 = vshrl.u32 %v3034, 7
        %v3036 = vsub.s32 %v3033, %v3035
        %v3037 = vrot.slane %v3029, %v3036
        %v3039 = vunpack.c.l.s4 1983009808
        %v3040 = vunpack.c.0.s8 %v3039
        %v3041 = vlaneseq
        %v3042 = vshrl.u32 %v3041, 7
        %v3043 = vsub.s32 %v3040, %v3042
        %v3044 = vrot.slane %v3030, %v3043
        %v3045 = vcombine.low %v3021, %v3037
        %v3046 = vcombine.high %v3021, %v3037
        %v3048 = vunpack.c.l.s4 1934713408
        %v3049 = vunpack.c.0.s8 %v3048
        %v3050 = vlaneseq
        %v3051 = vshrl.u32 %v3050, 7
        %v3052 = vsub.s32 %v3049, %v3051
        %v3053 = vrot.slane %v3045, %v3052
        %v3055 = vunpack.c.l.s4 1934713408
        %v3056 = vunpack.c.0.s8 %v3055
        %v3057 = vlaneseq
        %v3058 = vshrl.u32 %v3057, 7
        %v3059 = vsub.s32 %v3056, %v3058
        %v3060 = vrot.slane %v3046, %v3059
        %v3061 = vcombine.low %v3028, %v3044
        %v3062 = vcombine.high %v3028, %v3044
        %v3064 = vunpack.c.l.s4 1934713408
        %v3065 = vunpack.c.0.s8 %v3064
        %v3066 = vlaneseq
        %v3067 = vshrl.u32 %v3066, 7
        %v3068 = vsub.s32 %v3065, %v3067
        %v3069 = vrot.slane %v3061, %v3068
        %v3071 = vunpack.c.l.s4 1934713408
        %v3072 = vunpack.c.0.s8 %v3071
        %v3073 = vlaneseq
        %v3074 = vshrl.u32 %v3073, 7
        %v3075 = vsub.s32 %v3072, %v3074
        %v3076 = vrot.slane %v3062, %v3075
        %v3077 = vcombine.high %v3053, 0.0
        %v3078 = vcombine.high %v3060, 0.0
        %v3079 = vcombine.high %v3069, 0.0
        %v3080 = vcombine.high %v3076, 0.0
        %v3081 = vcombine.low %v3053, %v3060
        %v3083 = vunpack.c.l.s4 1983009808
        %v3084 = vunpack.c.0.s8 %v3083
        %v3085 = vlaneseq
        %v3086 = vshrl.u32 %v3085, 7
        %v3087 = vsub.s32 %v3084, %v3086
        %v3088 = vrot.slane %v3081, %v3087
        %v3089 = vcombine.low %v3077, %v3078
        %v3091 = vunpack.c.l.s4 1983009808
        %v3092 = vunpack.c.0.s8 %v3091
        %v3093 = vlaneseq
        %v3094 = vshrl.u32 %v3093, 7
        %v3095 = vsub.s32 %v3092, %v3094
        %v3096 = vrot.slane %v3089, %v3095
        %v3097 = vcombine.low %v3069, %v3076
        %v3099 = vunpack.c.l.s4 1983009808
        %v3100 = vunpack.c.0.s8 %v3099
        %v3101 = vlaneseq
        %v3102 = vshrl.u32 %v3101, 7
        %v3103 = vsub.s32 %v3100, %v3102
        %v3104 = vrot.slane %v3097, %v3103
        %v3105 = vcombine.low %v3079, %v3080
        %v3107 = vunpack.c.l.s4 1983009808
        %v3108 = vunpack.c.0.s8 %v3107
        %v3109 = vlaneseq
        %v3110 = vshrl.u32 %v3109, 7
        %v3111 = vsub.s32 %v3108, %v3110
        %v3112 = vrot.slane %v3105, %v3111
        %v3113 = vcombine.low %v3088, %v3096
        %v3114 = vcombine.high %v3088, %v3096
        %v3116 = vunpack.c.l.s4 1934713408
        %v3117 = vunpack.c.0.s8 %v3116
        %v3118 = vlaneseq
        %v3119 = vshrl.u32 %v3118, 7
        %v3120 = vsub.s32 %v3117, %v3119
        %v3121 = vrot.slane %v3113, %v3120
        %v3123 = vunpack.c.l.s4 1934713408
        %v3124 = vunpack.c.0.s8 %v3123
        %v3125 = vlaneseq
        %v3126 = vshrl.u32 %v3125, 7
        %v3127 = vsub.s32 %v3124, %v3126
        %v3128 = vrot.slane %v3114, %v3127
        %v3129 = vcombine.low %v3104, %v3112
        %v3130 = vcombine.high %v3104, %v3112
        %v3132 = vunpack.c.l.s4 1934713408
        %v3133 = vunpack.c.0.s8 %v3132
        %v3134 = vlaneseq
        %v3135 = vshrl.u32 %v3134, 7
        %v3136 = vsub.s32 %v3133, %v3135
        %v3137 = vrot.slane %v3129, %v3136
        %v3139 = vunpack.c.l.s4 1934713408
        %v3140 = vunpack.c.0.s8 %v3139
        %v3141 = vlaneseq
        %v3142 = vshrl.u32 %v3141, 7
        %v3143 = vsub.s32 %v3140, %v3142
        %v3144 = vrot.slane %v3130, %v3143
        %v3145 = vcombine.low %v3121, %v3137
        %v3146 = vcombine.high %v3121, %v3137
        %v3147 = vcombine.low %v3128, %v3144
        %v3148 = vcombine.high %v3128, %v3144
        %3150 = vrot.lane.b32.xlu0 %v2997, 96
        %v3151 = vpop.permute.xlu0 %3150
        %3153 = vrot.lane.b32.xlu0 %v2997, 64
        %v3154 = vpop.permute.xlu0 %3153
        %3156 = vrot.lane.b32.xlu0 %v2997, 32
        %v3157 = vpop.permute.xlu0 %3156
        %3160 = vrot.lane.b32.xlu0 %v2999, 96
        %v3161 = vpop.permute.xlu0 %3160
        %3163 = vrot.lane.b32.xlu0 %v2999, 64
        %v3164 = vpop.permute.xlu0 %3163
        %3166 = vrot.lane.b32.xlu0 %v2999, 32
        %v3167 = vpop.permute.xlu0 %3166
        %v3169 = vcombine.low %v2997, %v3154
        %v3170 = vcombine.high %v2997, %v3154
        %v3172 = vunpack.c.l.s4 1983009808
        %v3173 = vunpack.c.0.s8 %v3172
        %v3174 = vlaneseq
        %v3175 = vshrl.u32 %v3174, 7
        %v3176 = vsub.s32 %v3173, %v3175
        %v3177 = vrot.slane %v3169, %v3176
        %v3179 = vunpack.c.l.s4 1983009808
        %v3180 = vunpack.c.0.s8 %v3179
        %v3181 = vlaneseq
        %v3182 = vshrl.u32 %v3181, 7
        %v3183 = vsub.s32 %v3180, %v3182
        %v3184 = vrot.slane %v3170, %v3183
        %v3185 = vcombine.low %v3151, %v3157
        %v3186 = vcombine.high %v3151, %v3157
        %v3188 = vunpack.c.l.s4 1983009808
        %v3189 = vunpack.c.0.s8 %v3188
        %v3190 = vlaneseq
        %v3191 = vshrl.u32 %v3190, 7
        %v3192 = vsub.s32 %v3189, %v3191
        %v3193 = vrot.slane %v3185, %v3192
        %v3195 = vunpack.c.l.s4 1983009808
        %v3196 = vunpack.c.0.s8 %v3195
        %v3197 = vlaneseq
        %v3198 = vshrl.u32 %v3197, 7
        %v3199 = vsub.s32 %v3196, %v3198
        %v3200 = vrot.slane %v3186, %v3199
        %v3201 = vcombine.low %v2999, %v3164
        %v3202 = vcombine.high %v2999, %v3164
        %v3204 = vunpack.c.l.s4 1983009808
        %v3205 = vunpack.c.0.s8 %v3204
        %v3206 = vlaneseq
        %v3207 = vshrl.u32 %v3206, 7
        %v3208 = vsub.s32 %v3205, %v3207
        %v3209 = vrot.slane %v3201, %v3208
        %v3211 = vunpack.c.l.s4 1983009808
        %v3212 = vunpack.c.0.s8 %v3211
        %v3213 = vlaneseq
        %v3214 = vshrl.u32 %v3213, 7
        %v3215 = vsub.s32 %v3212, %v3214
        %v3216 = vrot.slane %v3202, %v3215
        %v3217 = vcombine.low %v3161, %v3167
        %v3218 = vcombine.high %v3161, %v3167
        %v3220 = vunpack.c.l.s4 1983009808
        %v3221 = vunpack.c.0.s8 %v3220
        %v3222 = vlaneseq
        %v3223 = vshrl.u32 %v3222, 7
        %v3224 = vsub.s32 %v3221, %v3223
        %v3225 = vrot.slane %v3217, %v3224
        %v3227 = vunpack.c.l.s4 1983009808
        %v3228 = vunpack.c.0.s8 %v3227
        %v3229 = vlaneseq
        %v3230 = vshrl.u32 %v3229, 7
        %v3231 = vsub.s32 %v3228, %v3230
        %v3232 = vrot.slane %v3218, %v3231
        %v3233 = vcombine.low %v3177, %v3193
        %v3234 = vcombine.high %v3177, %v3193
        %v3236 = vunpack.c.l.s4 1934713408
        %v3237 = vunpack.c.0.s8 %v3236
        %v3238 = vlaneseq
        %v3239 = vshrl.u32 %v3238, 7
        %v3240 = vsub.s32 %v3237, %v3239
        %v3241 = vrot.slane %v3233, %v3240
        %v3243 = vunpack.c.l.s4 1934713408
        %v3244 = vunpack.c.0.s8 %v3243
        %v3245 = vlaneseq
        %v3246 = vshrl.u32 %v3245, 7
        %v3247 = vsub.s32 %v3244, %v3246
        %v3248 = vrot.slane %v3234, %v3247
        %v3249 = vcombine.low %v3184, %v3200
        %v3250 = vcombine.high %v3184, %v3200
        %v3252 = vunpack.c.l.s4 1934713408
        %v3253 = vunpack.c.0.s8 %v3252
        %v3254 = vlaneseq
        %v3255 = vshrl.u32 %v3254, 7
        %v3256 = vsub.s32 %v3253, %v3255
        %v3257 = vrot.slane %v3249, %v3256
        %v3259 = vunpack.c.l.s4 1934713408
        %v3260 = vunpack.c.0.s8 %v3259
        %v3261 = vlaneseq
        %v3262 = vshrl.u32 %v3261, 7
        %v3263 = vsub.s32 %v3260, %v3262
        %v3264 = vrot.slane %v3250, %v3263
        %v3265 = vcombine.low %v3209, %v3225
        %v3266 = vcombine.high %v3209, %v3225
        %v3268 = vunpack.c.l.s4 1934713408
        %v3269 = vunpack.c.0.s8 %v3268
        %v3270 = vlaneseq
        %v3271 = vshrl.u32 %v3270, 7
        %v3272 = vsub.s32 %v3269, %v3271
        %v3273 = vrot.slane %v3265, %v3272
        %v3275 = vunpack.c.l.s4 1934713408
        %v3276 = vunpack.c.0.s8 %v3275
        %v3277 = vlaneseq
        %v3278 = vshrl.u32 %v3277, 7
        %v3279 = vsub.s32 %v3276, %v3278
        %v3280 = vrot.slane %v3266, %v3279
        %v3281 = vcombine.low %v3216, %v3232
        %v3282 = vcombine.high %v3216, %v3232
        %v3284 = vunpack.c.l.s4 1934713408
        %v3285 = vunpack.c.0.s8 %v3284
        %v3286 = vlaneseq
        %v3287 = vshrl.u32 %v3286, 7
        %v3288 = vsub.s32 %v3285, %v3287
        %v3289 = vrot.slane %v3281, %v3288
        %v3291 = vunpack.c.l.s4 1934713408
        %v3292 = vunpack.c.0.s8 %v3291
        %v3293 = vlaneseq
        %v3294 = vshrl.u32 %v3293, 7
        %v3295 = vsub.s32 %v3292, %v3294
        %v3296 = vrot.slane %v3282, %v3295
        %v3297 = vcombine.low %v3241, %v3273
        %v3298 = vcombine.high %v3241, %v3273
        %v3299 = vcombine.low %v3248, %v3280
        %v3300 = vcombine.high %v3248, %v3280
        %v3301 = vcombine.low %v3257, %v3289
        %v3302 = vcombine.high %v3257, %v3289
        %v3303 = vcombine.low %v3264, %v3296
        %v3304 = vcombine.high %v3264, %v3296
        %v3305 = vcombine.low %v3297, %v3299
        %v3306 = vcombine.high %v3297, %v3299
        %v3308 = vunpack.c.l.s4 1983009808
        %v3309 = vunpack.c.0.s8 %v3308
        %v3310 = vlaneseq
        %v3311 = vshrl.u32 %v3310, 7
        %v3312 = vsub.s32 %v3309, %v3311
        %v3313 = vrot.slane %v3305, %v3312
        %v3315 = vunpack.c.l.s4 1983009808
        %v3316 = vunpack.c.0.s8 %v3315
        %v3317 = vlaneseq
        %v3318 = vshrl.u32 %v3317, 7
        %v3319 = vsub.s32 %v3316, %v3318
        %v3320 = vrot.slane %v3306, %v3319
        %v3321 = vcombine.low %v3298, %v3300
        %v3322 = vcombine.high %v3298, %v3300
        %v3324 = vunpack.c.l.s4 1983009808
        %v3325 = vunpack.c.0.s8 %v3324
        %v3326 = vlaneseq
        %v3327 = vshrl.u32 %v3326, 7
        %v3328 = vsub.s32 %v3325, %v3327
        %v3329 = vrot.slane %v3321, %v3328
        %v3331 = vunpack.c.l.s4 1983009808
        %v3332 = vunpack.c.0.s8 %v3331
        %v3333 = vlaneseq
        %v3334 = vshrl.u32 %v3333, 7
        %v3335 = vsub.s32 %v3332, %v3334
        %v3336 = vrot.slane %v3322, %v3335
        %v3337 = vcombine.low %v3301, %v3303
        %v3338 = vcombine.high %v3301, %v3303
        %v3340 = vunpack.c.l.s4 1983009808
        %v3341 = vunpack.c.0.s8 %v3340
        %v3342 = vlaneseq
        %v3343 = vshrl.u32 %v3342, 7
        %v3344 = vsub.s32 %v3341, %v3343
        %v3345 = vrot.slane %v3337, %v3344
        %v3347 = vunpack.c.l.s4 1983009808
        %v3348 = vunpack.c.0.s8 %v3347
        %v3349 = vlaneseq
        %v3350 = vshrl.u32 %v3349, 7
        %v3351 = vsub.s32 %v3348, %v3350
        %v3352 = vrot.slane %v3338, %v3351
        %v3353 = vcombine.low %v3302, %v3304
        %v3354 = vcombine.high %v3302, %v3304
        %v3356 = vunpack.c.l.s4 1983009808
        %v3357 = vunpack.c.0.s8 %v3356
        %v3358 = vlaneseq
        %v3359 = vshrl.u32 %v3358, 7
        %v3360 = vsub.s32 %v3357, %v3359
        %v3361 = vrot.slane %v3353, %v3360
        %v3363 = vunpack.c.l.s4 1983009808
        %v3364 = vunpack.c.0.s8 %v3363
        %v3365 = vlaneseq
        %v3366 = vshrl.u32 %v3365, 7
        %v3367 = vsub.s32 %v3364, %v3366
        %v3368 = vrot.slane %v3354, %v3367
        %v3369 = vcombine.low %v3313, %v3329
        %v3370 = vcombine.high %v3313, %v3329
        %v3372 = vunpack.c.l.s4 1934713408
        %v3373 = vunpack.c.0.s8 %v3372
        %v3374 = vlaneseq
        %v3375 = vshrl.u32 %v3374, 7
        %v3376 = vsub.s32 %v3373, %v3375
        %v3377 = vrot.slane %v3369, %v3376
        %v3379 = vunpack.c.l.s4 1934713408
        %v3380 = vunpack.c.0.s8 %v3379
        %v3381 = vlaneseq
        %v3382 = vshrl.u32 %v3381, 7
        %v3383 = vsub.s32 %v3380, %v3382
        %v3384 = vrot.slane %v3370, %v3383
        %v3385 = vcombine.low %v3320, %v3336
        %v3386 = vcombine.high %v3320, %v3336
        %v3388 = vunpack.c.l.s4 1934713408
        %v3389 = vunpack.c.0.s8 %v3388
        %v3390 = vlaneseq
        %v3391 = vshrl.u32 %v3390, 7
        %v3392 = vsub.s32 %v3389, %v3391
        %v3393 = vrot.slane %v3385, %v3392
        %v3395 = vunpack.c.l.s4 1934713408
        %v3396 = vunpack.c.0.s8 %v3395
        %v3397 = vlaneseq
        %v3398 = vshrl.u32 %v3397, 7
        %v3399 = vsub.s32 %v3396, %v3398
        %v3400 = vrot.slane %v3386, %v3399
        %v3401 = vcombine.low %v3345, %v3361
        %v3402 = vcombine.high %v3345, %v3361
        %v3404 = vunpack.c.l.s4 1934713408
        %v3405 = vunpack.c.0.s8 %v3404
        %v3406 = vlaneseq
        %v3407 = vshrl.u32 %v3406, 7
        %v3408 = vsub.s32 %v3405, %v3407
        %v3409 = vrot.slane %v3401, %v3408
        %v3411 = vunpack.c.l.s4 1934713408
        %v3412 = vunpack.c.0.s8 %v3411
        %v3413 = vlaneseq
        %v3414 = vshrl.u32 %v3413, 7
        %v3415 = vsub.s32 %v3412, %v3414
        %v3416 = vrot.slane %v3402, %v3415
        %v3417 = vcombine.low %v3352, %v3368
        %v3418 = vcombine.high %v3352, %v3368
        %v3420 = vunpack.c.l.s4 1934713408
        %v3421 = vunpack.c.0.s8 %v3420
        %v3422 = vlaneseq
        %v3423 = vshrl.u32 %v3422, 7
        %v3424 = vsub.s32 %v3421, %v3423
        %v3425 = vrot.slane %v3417, %v3424
        %v3427 = vunpack.c.l.s4 1934713408
        %v3428 = vunpack.c.0.s8 %v3427
        %v3429 = vlaneseq
        %v3430 = vshrl.u32 %v3429, 7
        %v3431 = vsub.s32 %v3428, %v3430
        %v3432 = vrot.slane %v3418, %v3431
        %v3433 = vcombine.low %v3377, %v3409
        %v3434 = vcombine.high %v3377, %v3409
        %v3435 = vcombine.low %v3384, %v3416
        %v3436 = vcombine.high %v3384, %v3416
        %v3437 = vcombine.low %v3393, %v3425
        %v3438 = vcombine.high %v3393, %v3425
        %v3439 = vcombine.low %v3400, %v3432
        %v3440 = vcombine.high %v3400, %v3432
        %v3441 = vpack.c.bf16 %v3145, %v3145
        %v3442 = vpack.c.bf16 %v3146, %v3146
        %v3443 = vpack.c.bf16 %v3147, %v3147
        %v3444 = vpack.c.bf16 %v3148, %v3148
        %v3445 = vpack.c.bf16 %v3433, %v3433
        %v3446 = vpack.c.bf16 %v3434, %v3434
        %v3447 = vpack.c.bf16 %v3435, %v3435
        %v3448 = vpack.c.bf16 %v3436, %v3436
        %v3450 = vsel %vm1777, %v3441, 0
        %v3453 = vsel %vm1777, %v3445, 0
        %3455 = vmatprep.subr.bf16.mxu0 0
        %3456 = vmatpush1.bf16.xpose.msra.mxu0 %v3453
        %3457 = vmatprep.subr.bf16.mxu0 0
        %3458 = vmatpush1.bf16.xpose.msra.mxu0 0
        %3459 = vmatprep.subr.bf16.mxu0 0
        %3460 = vmatpush1.bf16.xpose.msra.mxu0 0
        %3461 = vmatprep.subr.bf16.mxu0 0
        %3462 = vmatpush1.bf16.xpose.msra.mxu0 0
        %3463 = vmatprep.subr.bf16.mxu0 0
        %3464 = vmatpush1.bf16.xpose.msra.mxu0 0
        %3465 = vmatprep.subr.bf16.mxu0 0
        %3466 = vmatpush1.bf16.xpose.msra.mxu0 0
        %3467 = vmatprep.subr.bf16.mxu0 0
        %3468 = vmatpush1.bf16.xpose.msra.mxu0 0
        %3469 = vmatprep.subr.bf16.mxu0 0
        %3470 = vmatpush1.bf16.xpose.msra.mxu0 0
        %3471 = vmatprep.subr.bf16.mxu0 0
        %3472 = vmatpush1.bf16.xpose.msra.mxu0 0
        %3473 = vmatprep.subr.bf16.mxu0 0
        %3474 = vmatpush1.bf16.xpose.msra.mxu0 0
        %3475 = vmatprep.subr.bf16.mxu0 0
        %3476 = vmatpush1.bf16.xpose.msra.mxu0 0
        %3477 = vmatprep.subr.bf16.mxu0 0
        %3478 = vmatpush1.bf16.xpose.msra.mxu0 0
        %3479 = vmatprep.subr.bf16.mxu0 0
        %3480 = vmatpush1.bf16.xpose.msra.mxu0 0
        %3481 = vmatprep.subr.bf16.mxu0 0
        %3482 = vmatpush1.bf16.xpose.msra.mxu0 0
        %3483 = vmatprep.subr.bf16.mxu0 0
        %3484 = vmatpush1.bf16.xpose.msra.mxu0 0
        %3485 = vmatprep.subr.bf16.mxu0 0
        %3486 = vmatpush1.bf16.xpose.msra.mxu0 0
        %3487 = vmatprep.mubr.bf16.mxu0 0
        %3488 = vmatmul.mubr.bf16.gmra.mrb[0].mxu0 %v3450
        %v3489 = vpop.f32.mrb[0].mxu0
        %v3490 = vadd.f32 0.0, %v3489
        %v3491 = vpop.f32.mrb[0].mxu0
        %v3492 = vpop.f32.mrb[0].mxu0
        %v3493 = vpop.f32.mrb[0].mxu0
        %3494 = vdwg.mxu0
        %v3496 = vsel %vm1777, %v3442, 0
        %v3499 = vsel %vm1777, %v3446, 0
        %3501 = vmatprep.subr.bf16.mxu0 0
        %3502 = vmatpush1.bf16.xpose.msra.mxu0 %v3499
        %3503 = vmatprep.subr.bf16.mxu0 0
        %3504 = vmatpush1.bf16.xpose.msra.mxu0 0
        %3505 = vmatprep.subr.bf16.mxu0 0
        %3506 = vmatpush1.bf16.xpose.msra.mxu0 0
        %3507 = vmatprep.subr.bf16.mxu0 0
        %3508 = vmatpush1.bf16.xpose.msra.mxu0 0
        %3509 = vmatprep.subr.bf16.mxu0 0
        %3510 = vmatpush1.bf16.xpose.msra.mxu0 0
        %3511 = vmatprep.subr.bf16.mxu0 0
        %3512 = vmatpush1.bf16.xpose.msra.mxu0 0
        %3513 = vmatprep.subr.bf16.mxu0 0
        %3514 = vmatpush1.bf16.xpose.msra.mxu0 0
        %3515 = vmatprep.subr.bf16.mxu0 0
        %3516 = vmatpush1.bf16.xpose.msra.mxu0 0
        %3517 = vmatprep.subr.bf16.mxu0 0
        %3518 = vmatpush1.bf16.xpose.msra.mxu0 0
        %3519 = vmatprep.subr.bf16.mxu0 0
        %3520 = vmatpush1.bf16.xpose.msra.mxu0 0
        %3521 = vmatprep.subr.bf16.mxu0 0
        %3522 = vmatpush1.bf16.xpose.msra.mxu0 0
        %3523 = vmatprep.subr.bf16.mxu0 0
        %3524 = vmatpush1.bf16.xpose.msra.mxu0 0
        %3525 = vmatprep.subr.bf16.mxu0 0
        %3526 = vmatpush1.bf16.xpose.msra.mxu0 0
        %3527 = vmatprep.subr.bf16.mxu0 0
        %3528 = vmatpush1.bf16.xpose.msra.mxu0 0
        %3529 = vmatprep.subr.bf16.mxu0 0
        %3530 = vmatpush1.bf16.xpose.msra.mxu0 0
        %3531 = vmatprep.subr.bf16.mxu0 0
        %3532 = vmatpush1.bf16.xpose.msra.mxu0 0
        %3533 = vmatprep.mubr.bf16.mxu0 0
        %3534 = vmatmul.mubr.bf16.gmra.mrb[0].mxu0 %v3496
        %v3535 = vpop.f32.mrb[0].mxu0
        %v3536 = vadd.f32 0.0, %v3535
        %v3537 = vpop.f32.mrb[0].mxu0
        %v3538 = vpop.f32.mrb[0].mxu0
        %v3539 = vpop.f32.mrb[0].mxu0
        %3540 = vdwg.mxu0
        %v3542 = vsel %vm1777, %v3443, 0
        %v3545 = vsel %vm1777, %v3447, 0
        %3547 = vmatprep.subr.bf16.mxu0 0
        %3548 = vmatpush1.bf16.xpose.msra.mxu0 %v3545
        %3549 = vmatprep.subr.bf16.mxu0 0
        %3550 = vmatpush1.bf16.xpose.msra.mxu0 0
        %3551 = vmatprep.subr.bf16.mxu0 0
        %3552 = vmatpush1.bf16.xpose.msra.mxu0 0
        %3553 = vmatprep.subr.bf16.mxu0 0
        %3554 = vmatpush1.bf16.xpose.msra.mxu0 0
        %3555 = vmatprep.subr.bf16.mxu0 0
        %3556 = vmatpush1.bf16.xpose.msra.mxu0 0
        %3557 = vmatprep.subr.bf16.mxu0 0
        %3558 = vmatpush1.bf16.xpose.msra.mxu0 0
        %3559 = vmatprep.subr.bf16.mxu0 0
        %3560 = vmatpush1.bf16.xpose.msra.mxu0 0
        %3561 = vmatprep.subr.bf16.mxu0 0
        %3562 = vmatpush1.bf16.xpose.msra.mxu0 0
        %3563 = vmatprep.subr.bf16.mxu0 0
        %3564 = vmatpush1.bf16.xpose.msra.mxu0 0
        %3565 = vmatprep.subr.bf16.mxu0 0
        %3566 = vmatpush1.bf16.xpose.msra.mxu0 0
        %3567 = vmatprep.subr.bf16.mxu0 0
        %3568 = vmatpush1.bf16.xpose.msra.mxu0 0
        %3569 = vmatprep.subr.bf16.mxu0 0
        %3570 = vmatpush1.bf16.xpose.msra.mxu0 0
        %3571 = vmatprep.subr.bf16.mxu0 0
        %3572 = vmatpush1.bf16.xpose.msra.mxu0 0
        %3573 = vmatprep.subr.bf16.mxu0 0
        %3574 = vmatpush1.bf16.xpose.msra.mxu0 0
        %3575 = vmatprep.subr.bf16.mxu0 0
        %3576 = vmatpush1.bf16.xpose.msra.mxu0 0
        %3577 = vmatprep.subr.bf16.mxu0 0
        %3578 = vmatpush1.bf16.xpose.msra.mxu0 0
        %3579 = vmatprep.mubr.bf16.mxu0 0
        %3580 = vmatmul.mubr.bf16.gmra.mrb[0].mxu0 %v3542
        %v3581 = vpop.f32.mrb[0].mxu0
        %v3582 = vadd.f32 0.0, %v3581
        %v3583 = vpop.f32.mrb[0].mxu0
        %v3584 = vpop.f32.mrb[0].mxu0
        %v3585 = vpop.f32.mrb[0].mxu0
        %3586 = vdwg.mxu0
        %v3588 = vsel %vm1777, %v3444, 0
        %v3591 = vsel %vm1777, %v3448, 0
        %3593 = vmatprep.subr.bf16.mxu0 0
        %3594 = vmatpush1.bf16.xpose.msra.mxu0 %v3591
        %3595 = vmatprep.subr.bf16.mxu0 0
        %3596 = vmatpush1.bf16.xpose.msra.mxu0 0
        %3597 = vmatprep.subr.bf16.mxu0 0
        %3598 = vmatpush1.bf16.xpose.msra.mxu0 0
        %3599 = vmatprep.subr.bf16.mxu0 0
        %3600 = vmatpush1.bf16.xpose.msra.mxu0 0
        %3601 = vmatprep.subr.bf16.mxu0 0
        %3602 = vmatpush1.bf16.xpose.msra.mxu0 0
        %3603 = vmatprep.subr.bf16.mxu0 0
        %3604 = vmatpush1.bf16.xpose.msra.mxu0 0
        %3605 = vmatprep.subr.bf16.mxu0 0
        %3606 = vmatpush1.bf16.xpose.msra.mxu0 0
        %3607 = vmatprep.subr.bf16.mxu0 0
        %3608 = vmatpush1.bf16.xpose.msra.mxu0 0
        %3609 = vmatprep.subr.bf16.mxu0 0
        %3610 = vmatpush1.bf16.xpose.msra.mxu0 0
        %3611 = vmatprep.subr.bf16.mxu0 0
        %3612 = vmatpush1.bf16.xpose.msra.mxu0 0
        %3613 = vmatprep.subr.bf16.mxu0 0
        %3614 = vmatpush1.bf16.xpose.msra.mxu0 0
        %3615 = vmatprep.subr.bf16.mxu0 0
        %3616 = vmatpush1.bf16.xpose.msra.mxu0 0
        %3617 = vmatprep.subr.bf16.mxu0 0
        %3618 = vmatpush1.bf16.xpose.msra.mxu0 0
        %3619 = vmatprep.subr.bf16.mxu0 0
        %3620 = vmatpush1.bf16.xpose.msra.mxu0 0
        %3621 = vmatprep.subr.bf16.mxu0 0
        %3622 = vmatpush1.bf16.xpose.msra.mxu0 0
        %3623 = vmatprep.subr.bf16.mxu0 0
        %3624 = vmatpush1.bf16.xpose.msra.mxu0 0
        %3625 = vmatprep.mubr.bf16.mxu0 0
        %3626 = vmatmul.mubr.bf16.gmra.mrb[0].mxu0 %v3588
        %v3627 = vpop.f32.mrb[0].mxu0
        %v3628 = vadd.f32 0.0, %v3627
        %v3629 = vpop.f32.mrb[0].mxu0
        %v3630 = vpop.f32.mrb[0].mxu0
        %v3631 = vpop.f32.mrb[0].mxu0
        %3632 = vdwg.mxu0
        %vm3633 = vcmask 64512
        %v3634 = vsel %vm3633, %v3490, -inf
        %3635 = vmax.xlane.f32.xlu0 %v3634
        %v3636 = vpop.xlane.xlu0 %3635
        %v3637 = vsel %vm3633, %v3536, -inf
        %3638 = vmax.xlane.f32.xlu0 %v3637
        %v3639 = vpop.xlane.xlu0 %3638
        %v3640 = vsel %vm3633, %v3582, -inf
        %3641 = vmax.xlane.f32.xlu0 %v3640
        %v3642 = vpop.xlane.xlu0 %3641
        %v3643 = vsel %vm3633, %v3628, -inf
        %3644 = vmax.xlane.f32.xlu0 %v3643
        %v3645 = vpop.xlane.xlu0 %3644
        %v3646 = vsub.f32 %v3490, %v3636
        %v3647 = vsub.f32 %v3536, %v3639
        %v3648 = vsub.f32 %v3582, %v3642
        %v3649 = vsub.f32 %v3628, %v3645
        %v3650 = vmul.f32 %v3646, 1.442695
        %v3651 = vpow.pop %v3650
        %v3652 = vmul.f32 %v3647, 1.442695
        %v3653 = vpow.pop %v3652
        %v3654 = vmul.f32 %v3648, 1.442695
        %v3655 = vpow.pop %v3654
        %v3656 = vmul.f32 %v3649, 1.442695
        %v3657 = vpow.pop %v3656
        %v3658 = vsel %vm3633, %v3651, 0.0
        %3659 = vadd.xlane.f32.xlu0 %v3658
        %v3660 = vpop.xlane.xlu0 %3659
        %v3661 = vsel %vm3633, %v3653, 0.0
        %3662 = vadd.xlane.f32.xlu0 %v3661
        %v3663 = vpop.xlane.xlu0 %3662
        %v3664 = vsel %vm3633, %v3655, 0.0
        %3665 = vadd.xlane.f32.xlu0 %v3664
        %v3666 = vpop.xlane.xlu0 %3665
        %v3667 = vsel %vm3633, %v3657, 0.0
        %3668 = vadd.xlane.f32.xlu0 %v3667
        %v3669 = vpop.xlane.xlu0 %3668
        %v3670 = vrcp.pop %v3660
        %v3671 = vrcp.pop %v3663
        %v3672 = vrcp.pop %v3666
        %v3673 = vrcp.pop %v3669
        %v3674 = vmul.f32 %v3651, %v3670
        %v3675 = vmul.f32 %v3653, %v3671
        %v3676 = vmul.f32 %v3655, %v3672
        %v3677 = vmul.f32 %v3657, %v3673
        %v3678 = vpack.c.bf16 %v3674, %v3674
        %v3679 = vpack.c.bf16 %v3675, %v3675
        %v3680 = vpack.c.bf16 %v3676, %v3676
        %v3681 = vpack.c.bf16 %v3677, %v3677
        %v3682 = vpack.c.bf16 %v3437, %v3437
        %v3683 = vpack.c.bf16 %v3438, %v3438
        %v3684 = vpack.c.bf16 %v3439, %v3439
        %v3685 = vpack.c.bf16 %v3440, %v3440
        %v3687 = vsel %vm3633, %v3678, 0
        %vm3689 = vcmask 1043456
        %v3691 = vsel %vm3689, %v3682, 0
        %3693 = vmatprep.subr.bf16.mxu0 0
        %3694 = vmatpush1.bf16.msra.mxu0 %v3691
        %3695 = vmatprep.subr.bf16.mxu0 0
        %3696 = vmatpush1.bf16.msra.mxu0 0
        %3697 = vmatprep.subr.bf16.mxu0 0
        %3698 = vmatpush1.bf16.msra.mxu0 0
        %3699 = vmatprep.subr.bf16.mxu0 0
        %3700 = vmatpush1.bf16.msra.mxu0 0
        %3701 = vmatprep.subr.bf16.mxu0 0
        %3702 = vmatpush1.bf16.msra.mxu0 0
        %3703 = vmatprep.subr.bf16.mxu0 0
        %3704 = vmatpush1.bf16.msra.mxu0 0
        %3705 = vmatprep.subr.bf16.mxu0 0
        %3706 = vmatpush1.bf16.msra.mxu0 0
        %3707 = vmatprep.subr.bf16.mxu0 0
        %3708 = vmatpush1.bf16.msra.mxu0 0
        %3709 = vmatprep.subr.bf16.mxu0 0
        %3710 = vmatpush1.bf16.msra.mxu0 0
        %3711 = vmatprep.subr.bf16.mxu0 0
        %3712 = vmatpush1.bf16.msra.mxu0 0
        %3713 = vmatprep.subr.bf16.mxu0 0
        %3714 = vmatpush1.bf16.msra.mxu0 0
        %3715 = vmatprep.subr.bf16.mxu0 0
        %3716 = vmatpush1.bf16.msra.mxu0 0
        %3717 = vmatprep.subr.bf16.mxu0 0
        %3718 = vmatpush1.bf16.msra.mxu0 0
        %3719 = vmatprep.subr.bf16.mxu0 0
        %3720 = vmatpush1.bf16.msra.mxu0 0
        %3721 = vmatprep.subr.bf16.mxu0 0
        %3722 = vmatpush1.bf16.msra.mxu0 0
        %3723 = vmatprep.subr.bf16.mxu0 0
        %3724 = vmatpush1.bf16.msra.mxu0 0
        %3725 = vmatprep.mubr.bf16.mxu0 0
        %3726 = vmatmul.mubr.bf16.gmra.mrb[0].mxu0 %v3687
        %v3727 = vpop.f32.mrb[0].mxu0
        %v3728 = vadd.f32 0.0, %v3727
        %v3729 = vpop.f32.mrb[0].mxu0
        %v3730 = vpop.f32.mrb[0].mxu0
        %v3731 = vpop.f32.mrb[0].mxu0
        %3732 = vdwg.mxu0
        %v3734 = vsel %vm3633, %v3679, 0
        %v3737 = vsel %vm3689, %v3683, 0
        %3739 = vmatprep.subr.bf16.mxu0 0
        %3740 = vmatpush1.bf16.msra.mxu0 %v3737
        %3741 = vmatprep.subr.bf16.mxu0 0
        %3742 = vmatpush1.bf16.msra.mxu0 0
        %3743 = vmatprep.subr.bf16.mxu0 0
        %3744 = vmatpush1.bf16.msra.mxu0 0
        %3745 = vmatprep.subr.bf16.mxu0 0
        %3746 = vmatpush1.bf16.msra.mxu0 0
        %3747 = vmatprep.subr.bf16.mxu0 0
        %3748 = vmatpush1.bf16.msra.mxu0 0
        %3749 = vmatprep.subr.bf16.mxu0 0
        %3750 = vmatpush1.bf16.msra.mxu0 0
        %3751 = vmatprep.subr.bf16.mxu0 0
        %3752 = vmatpush1.bf16.msra.mxu0 0
        %3753 = vmatprep.subr.bf16.mxu0 0
        %3754 = vmatpush1.bf16.msra.mxu0 0
        %3755 = vmatprep.subr.bf16.mxu0 0
        %3756 = vmatpush1.bf16.msra.mxu0 0
        %3757 = vmatprep.subr.bf16.mxu0 0
        %3758 = vmatpush1.bf16.msra.mxu0 0
        %3759 = vmatprep.subr.bf16.mxu0 0
        %3760 = vmatpush1.bf16.msra.mxu0 0
        %3761 = vmatprep.subr.bf16.mxu0 0
        %3762 = vmatpush1.bf16.msra.mxu0 0
        %3763 = vmatprep.subr.bf16.mxu0 0
        %3764 = vmatpush1.bf16.msra.mxu0 0
        %3765 = vmatprep.subr.bf16.mxu0 0
        %3766 = vmatpush1.bf16.msra.mxu0 0
        %3767 = vmatprep.subr.bf16.mxu0 0
        %3768 = vmatpush1.bf16.msra.mxu0 0
        %3769 = vmatprep.subr.bf16.mxu0 0
        %3770 = vmatpush1.bf16.msra.mxu0 0
        %3771 = vmatprep.mubr.bf16.mxu0 0
        %3772 = vmatmul.mubr.bf16.gmra.mrb[0].mxu0 %v3734
        %v3773 = vpop.f32.mrb[0].mxu0
        %v3774 = vadd.f32 0.0, %v3773
        %v3775 = vpop.f32.mrb[0].mxu0
        %v3776 = vpop.f32.mrb[0].mxu0
        %v3777 = vpop.f32.mrb[0].mxu0
        %3778 = vdwg.mxu0
        %v3780 = vsel %vm3633, %v3680, 0
        %v3783 = vsel %vm3689, %v3684, 0
        %3785 = vmatprep.subr.bf16.mxu0 0
        %3786 = vmatpush1.bf16.msra.mxu0 %v3783
        %3787 = vmatprep.subr.bf16.mxu0 0
        %3788 = vmatpush1.bf16.msra.mxu0 0
        %3789 = vmatprep.subr.bf16.mxu0 0
        %3790 = vmatpush1.bf16.msra.mxu0 0
        %3791 = vmatprep.subr.bf16.mxu0 0
        %3792 = vmatpush1.bf16.msra.mxu0 0
        %3793 = vmatprep.subr.bf16.mxu0 0
        %3794 = vmatpush1.bf16.msra.mxu0 0
        %3795 = vmatprep.subr.bf16.mxu0 0
        %3796 = vmatpush1.bf16.msra.mxu0 0
        %3797 = vmatprep.subr.bf16.mxu0 0
        %3798 = vmatpush1.bf16.msra.mxu0 0
        %3799 = vmatprep.subr.bf16.mxu0 0
        %3800 = vmatpush1.bf16.msra.mxu0 0
        %3801 = vmatprep.subr.bf16.mxu0 0
        %3802 = vmatpush1.bf16.msra.mxu0 0
        %3803 = vmatprep.subr.bf16.mxu0 0
        %3804 = vmatpush1.bf16.msra.mxu0 0
        %3805 = vmatprep.subr.bf16.mxu0 0
        %3806 = vmatpush1.bf16.msra.mxu0 0
        %3807 = vmatprep.subr.bf16.mxu0 0
        %3808 = vmatpush1.bf16.msra.mxu0 0
        %3809 = vmatprep.subr.bf16.mxu0 0
        %3810 = vmatpush1.bf16.msra.mxu0 0
        %3811 = vmatprep.subr.bf16.mxu0 0
        %3812 = vmatpush1.bf16.msra.mxu0 0
        %3813 = vmatprep.subr.bf16.mxu0 0
        %3814 = vmatpush1.bf16.msra.mxu0 0
        %3815 = vmatprep.subr.bf16.mxu0 0
        %3816 = vmatpush1.bf16.msra.mxu0 0
        %3817 = vmatprep.mubr.bf16.mxu0 0
        %3818 = vmatmul.mubr.bf16.gmra.mrb[0].mxu0 %v3780
        %v3819 = vpop.f32.mrb[0].mxu0
        %v3820 = vadd.f32 0.0, %v3819
        %v3821 = vpop.f32.mrb[0].mxu0
        %v3822 = vpop.f32.mrb[0].mxu0
        %v3823 = vpop.f32.mrb[0].mxu0
        %3824 = vdwg.mxu0
        %v3826 = vsel %vm3633, %v3681, 0
        %v3829 = vsel %vm3689, %v3685, 0
        %3831 = vmatprep.subr.bf16.mxu0 0
        %3832 = vmatpush1.bf16.msra.mxu0 %v3829
        %3833 = vmatprep.subr.bf16.mxu0 0
        %3834 = vmatpush1.bf16.msra.mxu0 0
        %3835 = vmatprep.subr.bf16.mxu0 0
        %3836 = vmatpush1.bf16.msra.mxu0 0
        %3837 = vmatprep.subr.bf16.mxu0 0
        %3838 = vmatpush1.bf16.msra.mxu0 0
        %3839 = vmatprep.subr.bf16.mxu0 0
        %3840 = vmatpush1.bf16.msra.mxu0 0
        %3841 = vmatprep.subr.bf16.mxu0 0
        %3842 = vmatpush1.bf16.msra.mxu0 0
        %3843 = vmatprep.subr.bf16.mxu0 0
        %3844 = vmatpush1.bf16.msra.mxu0 0
        %3845 = vmatprep.subr.bf16.mxu0 0
        %3846 = vmatpush1.bf16.msra.mxu0 0
        %3847 = vmatprep.subr.bf16.mxu0 0
        %3848 = vmatpush1.bf16.msra.mxu0 0
        %3849 = vmatprep.subr.bf16.mxu0 0
        %3850 = vmatpush1.bf16.msra.mxu0 0
        %3851 = vmatprep.subr.bf16.mxu0 0
        %3852 = vmatpush1.bf16.msra.mxu0 0
        %3853 = vmatprep.subr.bf16.mxu0 0
        %3854 = vmatpush1.bf16.msra.mxu0 0
        %3855 = vmatprep.subr.bf16.mxu0 0
        %3856 = vmatpush1.bf16.msra.mxu0 0
        %3857 = vmatprep.subr.bf16.mxu0 0
        %3858 = vmatpush1.bf16.msra.mxu0 0
        %3859 = vmatprep.subr.bf16.mxu0 0
        %3860 = vmatpush1.bf16.msra.mxu0 0
        %3861 = vmatprep.subr.bf16.mxu0 0
        %3862 = vmatpush1.bf16.msra.mxu0 0
        %3863 = vmatprep.mubr.bf16.mxu0 0
        %3864 = vmatmul.mubr.bf16.gmra.mrb[0].mxu0 %v3826
        %v3865 = vpop.f32.mrb[0].mxu0
        %v3866 = vadd.f32 0.0, %v3865
        %v3867 = vpop.f32.mrb[0].mxu0
        %v3868 = vpop.f32.mrb[0].mxu0
        %v3869 = vpop.f32.mrb[0].mxu0
        %3870 = vdwg.mxu0
        %v3871 = vpack.c.bf16 %v3728, %v3728
        %v3872 = vpack.c.bf16 %v3774, %v3774
        %v3873 = vpack.c.bf16 %v3820, %v3820
        %v3874 = vpack.c.bf16 %v3866, %v3866
        %v3891 = vunpack.c.l.b16 %v2665
        %v3892 = vunpack.c.l.b16 %v2666
        %v3893 = vunpack.c.l.b16 %v2667
        %v3894 = vunpack.c.l.b16 %v2668
        %v3895 = vunpack.c.l.b16 %v2669
        %v3896 = vunpack.c.l.b16 %v2670
        %v3897 = vunpack.c.l.b16 %v2671
        %v3898 = vunpack.c.l.b16 %v2672
        %v3899 = vunpack.c.l.b16 %v2673
        %v3900 = vunpack.c.l.b16 %v2674
        %v3901 = vunpack.c.l.b16 %v2675
        %v3902 = vunpack.c.l.b16 %v2676
        %v3903 = vunpack.c.l.b16 %v2677
        %v3904 = vunpack.c.l.b16 %v2678
        %v3905 = vunpack.c.l.b16 %v2679
        %v3906 = vunpack.c.l.b16 %v2680
        %v3907 = vpack.c.b16 %v3892, %v3891
        %v3908 = vpack.c.b16 %v3894, %v3893
        %v3909 = vpack.c.b16 %v3896, %v3895
        %v3910 = vpack.c.b16 %v3898, %v3897
        %v3911 = vpack.c.b16 %v3900, %v3899
        %v3912 = vpack.c.b16 %v3902, %v3901
        %v3913 = vpack.c.b16 %v3904, %v3903
        %v3914 = vpack.c.b16 %v3906, %v3905
        %v3916 = vsel %vm1777, %v3871, 0
        %v3919 = vsel %vm1777, %v3907, 0
        %v3922 = vsel %vm1777, %v3908, 0
        %v3925 = vsel %vm1777, %v3909, 0
        %v3928 = vsel %vm1777, %v3910, 0
        %v3931 = vsel %vm1777, %v3911, 0
        %v3934 = vsel %vm1777, %v3912, 0
        %v3937 = vsel %vm1777, %v3913, 0
        %v3940 = vsel %vm1777, %v3914, 0
        %3942 = vmatprep.subr.bf16.mxu0 0
        %3943 = vmatpush1.bf16.xpose.msra.mxu0 %v3919
        %3944 = vmatprep.subr.bf16.mxu0 0
        %3945 = vmatpush1.bf16.xpose.msra.mxu0 %v3922
        %3946 = vmatprep.subr.bf16.mxu0 0
        %3947 = vmatpush1.bf16.xpose.msra.mxu0 %v3925
        %3948 = vmatprep.subr.bf16.mxu0 0
        %3949 = vmatpush1.bf16.xpose.msra.mxu0 %v3928
        %3950 = vmatprep.subr.bf16.mxu0 0
        %3951 = vmatpush1.bf16.xpose.msra.mxu0 %v3931
        %3952 = vmatprep.subr.bf16.mxu0 0
        %3953 = vmatpush1.bf16.xpose.msra.mxu0 %v3934
        %3954 = vmatprep.subr.bf16.mxu0 0
        %3955 = vmatpush1.bf16.xpose.msra.mxu0 %v3937
        %3956 = vmatprep.subr.bf16.mxu0 0
        %3957 = vmatpush1.bf16.xpose.msra.mxu0 %v3940
        %3958 = vmatprep.subr.bf16.mxu0 0
        %3959 = vmatpush1.bf16.xpose.msra.mxu0 0
        %3960 = vmatprep.subr.bf16.mxu0 0
        %3961 = vmatpush1.bf16.xpose.msra.mxu0 0
        %3962 = vmatprep.subr.bf16.mxu0 0
        %3963 = vmatpush1.bf16.xpose.msra.mxu0 0
        %3964 = vmatprep.subr.bf16.mxu0 0
        %3965 = vmatpush1.bf16.xpose.msra.mxu0 0
        %3966 = vmatprep.subr.bf16.mxu0 0
        %3967 = vmatpush1.bf16.xpose.msra.mxu0 0
        %3968 = vmatprep.subr.bf16.mxu0 0
        %3969 = vmatpush1.bf16.xpose.msra.mxu0 0
        %3970 = vmatprep.subr.bf16.mxu0 0
        %3971 = vmatpush1.bf16.xpose.msra.mxu0 0
        %3972 = vmatprep.subr.bf16.mxu0 0
        %3973 = vmatpush1.bf16.xpose.msra.mxu0 0
        %3974 = vmatprep.mubr.bf16.mxu0 0
        %3975 = vmatmul.mubr.bf16.gmra.mrb[0].mxu0 %v3916
        %v3976 = vpop.f32.mrb[0].mxu0
        %v3977 = vadd.f32 0.0, %v3976
        %v3978 = vpop.f32.mrb[0].mxu0
        %v3979 = vpop.f32.mrb[0].mxu0
        %v3980 = vpop.f32.mrb[0].mxu0
        %3981 = vdwg.mxu0
        %v3998 = vunpack.c.l.b16 %v2681
        %v3999 = vunpack.c.l.b16 %v2682
        %v4000 = vunpack.c.l.b16 %v2683
        %v4001 = vunpack.c.l.b16 %v2684
        %v4002 = vunpack.c.l.b16 %v2685
        %v4003 = vunpack.c.l.b16 %v2686
        %v4004 = vunpack.c.l.b16 %v2687
        %v4005 = vunpack.c.l.b16 %v2688
        %v4006 = vunpack.c.l.b16 %v2689
        %v4007 = vunpack.c.l.b16 %v2690
        %v4008 = vunpack.c.l.b16 %v2691
        %v4009 = vunpack.c.l.b16 %v2692
        %v4010 = vunpack.c.l.b16 %v2693
        %v4011 = vunpack.c.l.b16 %v2694
        %v4012 = vunpack.c.l.b16 %v2695
        %v4013 = vunpack.c.l.b16 %v2696
        %v4014 = vpack.c.b16 %v3999, %v3998
        %v4015 = vpack.c.b16 %v4001, %v4000
        %v4016 = vpack.c.b16 %v4003, %v4002
        %v4017 = vpack.c.b16 %v4005, %v4004
        %v4018 = vpack.c.b16 %v4007, %v4006
        %v4019 = vpack.c.b16 %v4009, %v4008
        %v4020 = vpack.c.b16 %v4011, %v4010
        %v4021 = vpack.c.b16 %v4013, %v4012
        %v4023 = vsel %vm1777, %v3872, 0
        %v4026 = vsel %vm1777, %v4014, 0
        %v4029 = vsel %vm1777, %v4015, 0
        %v4032 = vsel %vm1777, %v4016, 0
        %v4035 = vsel %vm1777, %v4017, 0
        %v4038 = vsel %vm1777, %v4018, 0
        %v4041 = vsel %vm1777, %v4019, 0
        %v4044 = vsel %vm1777, %v4020, 0
        %v4047 = vsel %vm1777, %v4021, 0
        %4049 = vmatprep.subr.bf16.mxu0 0
        %4050 = vmatpush1.bf16.xpose.msra.mxu0 %v4026
        %4051 = vmatprep.subr.bf16.mxu0 0
        %4052 = vmatpush1.bf16.xpose.msra.mxu0 %v4029
        %4053 = vmatprep.subr.bf16.mxu0 0
        %4054 = vmatpush1.bf16.xpose.msra.mxu0 %v4032
        %4055 = vmatprep.subr.bf16.mxu0 0
        %4056 = vmatpush1.bf16.xpose.msra.mxu0 %v4035
        %4057 = vmatprep.subr.bf16.mxu0 0
        %4058 = vmatpush1.bf16.xpose.msra.mxu0 %v4038
        %4059 = vmatprep.subr.bf16.mxu0 0
        %4060 = vmatpush1.bf16.xpose.msra.mxu0 %v4041
        %4061 = vmatprep.subr.bf16.mxu0 0
        %4062 = vmatpush1.bf16.xpose.msra.mxu0 %v4044
        %4063 = vmatprep.subr.bf16.mxu0 0
        %4064 = vmatpush1.bf16.xpose.msra.mxu0 %v4047
        %4065 = vmatprep.subr.bf16.mxu0 0
        %4066 = vmatpush1.bf16.xpose.msra.mxu0 0
        %4067 = vmatprep.subr.bf16.mxu0 0
        %4068 = vmatpush1.bf16.xpose.msra.mxu0 0
        %4069 = vmatprep.subr.bf16.mxu0 0
        %4070 = vmatpush1.bf16.xpose.msra.mxu0 0
        %4071 = vmatprep.subr.bf16.mxu0 0
        %4072 = vmatpush1.bf16.xpose.msra.mxu0 0
        %4073 = vmatprep.subr.bf16.mxu0 0
        %4074 = vmatpush1.bf16.xpose.msra.mxu0 0
        %4075 = vmatprep.subr.bf16.mxu0 0
        %4076 = vmatpush1.bf16.xpose.msra.mxu0 0
        %4077 = vmatprep.subr.bf16.mxu0 0
        %4078 = vmatpush1.bf16.xpose.msra.mxu0 0
        %4079 = vmatprep.subr.bf16.mxu0 0
        %4080 = vmatpush1.bf16.xpose.msra.mxu0 0
        %4081 = vmatprep.mubr.bf16.mxu0 0
        %4082 = vmatmul.mubr.bf16.gmra.mrb[0].mxu0 %v4023
        %v4083 = vpop.f32.mrb[0].mxu0
        %v4084 = vadd.f32 0.0, %v4083
        %v4085 = vpop.f32.mrb[0].mxu0
        %v4086 = vpop.f32.mrb[0].mxu0
        %v4087 = vpop.f32.mrb[0].mxu0
        %4088 = vdwg.mxu0
        %v4105 = vunpack.c.l.b16 %v2697
        %v4106 = vunpack.c.l.b16 %v2698
        %v4107 = vunpack.c.l.b16 %v2699
        %v4108 = vunpack.c.l.b16 %v2700
        %v4109 = vunpack.c.l.b16 %v2701
        %v4110 = vunpack.c.l.b16 %v2702
        %v4111 = vunpack.c.l.b16 %v2703
        %v4112 = vunpack.c.l.b16 %v2704
        %v4113 = vunpack.c.l.b16 %v2705
        %v4114 = vunpack.c.l.b16 %v2706
        %v4115 = vunpack.c.l.b16 %v2707
        %v4116 = vunpack.c.l.b16 %v2708
        %v4117 = vunpack.c.l.b16 %v2709
        %v4118 = vunpack.c.l.b16 %v2710
        %v4119 = vunpack.c.l.b16 %v2711
        %v4120 = vunpack.c.l.b16 %v2712
        %v4121 = vpack.c.b16 %v4106, %v4105
        %v4122 = vpack.c.b16 %v4108, %v4107
        %v4123 = vpack.c.b16 %v4110, %v4109
        %v4124 = vpack.c.b16 %v4112, %v4111
        %v4125 = vpack.c.b16 %v4114, %v4113
        %v4126 = vpack.c.b16 %v4116, %v4115
        %v4127 = vpack.c.b16 %v4118, %v4117
        %v4128 = vpack.c.b16 %v4120, %v4119
        %v4130 = vsel %vm1777, %v3873, 0
        %v4133 = vsel %vm1777, %v4121, 0
        %v4136 = vsel %vm1777, %v4122, 0
        %v4139 = vsel %vm1777, %v4123, 0
        %v4142 = vsel %vm1777, %v4124, 0
        %v4145 = vsel %vm1777, %v4125, 0
        %v4148 = vsel %vm1777, %v4126, 0
        %v4151 = vsel %vm1777, %v4127, 0
        %v4154 = vsel %vm1777, %v4128, 0
        %4156 = vmatprep.subr.bf16.mxu0 0
        %4157 = vmatpush1.bf16.xpose.msra.mxu0 %v4133
        %4158 = vmatprep.subr.bf16.mxu0 0
        %4159 = vmatpush1.bf16.xpose.msra.mxu0 %v4136
        %4160 = vmatprep.subr.bf16.mxu0 0
        %4161 = vmatpush1.bf16.xpose.msra.mxu0 %v4139
        %4162 = vmatprep.subr.bf16.mxu0 0
        %4163 = vmatpush1.bf16.xpose.msra.mxu0 %v4142
        %4164 = vmatprep.subr.bf16.mxu0 0
        %4165 = vmatpush1.bf16.xpose.msra.mxu0 %v4145
        %4166 = vmatprep.subr.bf16.mxu0 0
        %4167 = vmatpush1.bf16.xpose.msra.mxu0 %v4148
        %4168 = vmatprep.subr.bf16.mxu0 0
        %4169 = vmatpush1.bf16.xpose.msra.mxu0 %v4151
        %4170 = vmatprep.subr.bf16.mxu0 0
        %4171 = vmatpush1.bf16.xpose.msra.mxu0 %v4154
        %4172 = vmatprep.subr.bf16.mxu0 0
        %4173 = vmatpush1.bf16.xpose.msra.mxu0 0
        %4174 = vmatprep.subr.bf16.mxu0 0
        %4175 = vmatpush1.bf16.xpose.msra.mxu0 0
        %4176 = vmatprep.subr.bf16.mxu0 0
        %4177 = vmatpush1.bf16.xpose.msra.mxu0 0
        %4178 = vmatprep.subr.bf16.mxu0 0
        %4179 = vmatpush1.bf16.xpose.msra.mxu0 0
        %4180 = vmatprep.subr.bf16.mxu0 0
        %4181 = vmatpush1.bf16.xpose.msra.mxu0 0
        %4182 = vmatprep.subr.bf16.mxu0 0
        %4183 = vmatpush1.bf16.xpose.msra.mxu0 0
        %4184 = vmatprep.subr.bf16.mxu0 0
        %4185 = vmatpush1.bf16.xpose.msra.mxu0 0
        %4186 = vmatprep.subr.bf16.mxu0 0
        %4187 = vmatpush1.bf16.xpose.msra.mxu0 0
        %4188 = vmatprep.mubr.bf16.mxu0 0
        %4189 = vmatmul.mubr.bf16.gmra.mrb[0].mxu0 %v4130
        %v4190 = vpop.f32.mrb[0].mxu0
        %v4191 = vadd.f32 0.0, %v4190
        %v4192 = vpop.f32.mrb[0].mxu0
        %v4193 = vpop.f32.mrb[0].mxu0
        %v4194 = vpop.f32.mrb[0].mxu0
        %4195 = vdwg.mxu0
        %v4212 = vunpack.c.l.b16 %v2713
        %v4213 = vunpack.c.l.b16 %v2714
        %v4214 = vunpack.c.l.b16 %v2715
        %v4215 = vunpack.c.l.b16 %v2716
        %v4216 = vunpack.c.l.b16 %v2717
        %v4217 = vunpack.c.l.b16 %v2718
        %v4218 = vunpack.c.l.b16 %v2719
        %v4219 = vunpack.c.l.b16 %v2720
        %v4220 = vunpack.c.l.b16 %v2721
        %v4221 = vunpack.c.l.b16 %v2722
        %v4222 = vunpack.c.l.b16 %v2723
        %v4223 = vunpack.c.l.b16 %v2724
        %v4224 = vunpack.c.l.b16 %v2725
        %v4225 = vunpack.c.l.b16 %v2726
        %v4226 = vunpack.c.l.b16 %v2727
        %v4227 = vunpack.c.l.b16 %v2728
        %v4228 = vpack.c.b16 %v4213, %v4212
        %v4229 = vpack.c.b16 %v4215, %v4214
        %v4230 = vpack.c.b16 %v4217, %v4216
        %v4231 = vpack.c.b16 %v4219, %v4218
        %v4232 = vpack.c.b16 %v4221, %v4220
        %v4233 = vpack.c.b16 %v4223, %v4222
        %v4234 = vpack.c.b16 %v4225, %v4224
        %v4235 = vpack.c.b16 %v4227, %v4226
        %v4237 = vsel %vm1777, %v3874, 0
        %v4240 = vsel %vm1777, %v4228, 0
        %v4243 = vsel %vm1777, %v4229, 0
        %v4246 = vsel %vm1777, %v4230, 0
        %v4249 = vsel %vm1777, %v4231, 0
        %v4252 = vsel %vm1777, %v4232, 0
        %v4255 = vsel %vm1777, %v4233, 0
        %v4258 = vsel %vm1777, %v4234, 0
        %v4261 = vsel %vm1777, %v4235, 0
        %4263 = vmatprep.subr.bf16.mxu0 0
        %4264 = vmatpush1.bf16.xpose.msra.mxu0 %v4240
        %4265 = vmatprep.subr.bf16.mxu0 0
        %4266 = vmatpush1.bf16.xpose.msra.mxu0 %v4243
        %4267 = vmatprep.subr.bf16.mxu0 0
        %4268 = vmatpush1.bf16.xpose.msra.mxu0 %v4246
        %4269 = vmatprep.subr.bf16.mxu0 0
        %4270 = vmatpush1.bf16.xpose.msra.mxu0 %v4249
        %4271 = vmatprep.subr.bf16.mxu0 0
        %4272 = vmatpush1.bf16.xpose.msra.mxu0 %v4252
        %4273 = vmatprep.subr.bf16.mxu0 0
        %4274 = vmatpush1.bf16.xpose.msra.mxu0 %v4255
        %4275 = vmatprep.subr.bf16.mxu0 0
        %4276 = vmatpush1.bf16.xpose.msra.mxu0 %v4258
        %4277 = vmatprep.subr.bf16.mxu0 0
        %4278 = vmatpush1.bf16.xpose.msra.mxu0 %v4261
        %4279 = vmatprep.subr.bf16.mxu0 0
        %4280 = vmatpush1.bf16.xpose.msra.mxu0 0
        %4281 = vmatprep.subr.bf16.mxu0 0
        %4282 = vmatpush1.bf16.xpose.msra.mxu0 0
        %4283 = vmatprep.subr.bf16.mxu0 0
        %4284 = vmatpush1.bf16.xpose.msra.mxu0 0
        %4285 = vmatprep.subr.bf16.mxu0 0
        %4286 = vmatpush1.bf16.xpose.msra.mxu0 0
        %4287 = vmatprep.subr.bf16.mxu0 0
        %4288 = vmatpush1.bf16.xpose.msra.mxu0 0
        %4289 = vmatprep.subr.bf16.mxu0 0
        %4290 = vmatpush1.bf16.xpose.msra.mxu0 0
        %4291 = vmatprep.subr.bf16.mxu0 0
        %4292 = vmatpush1.bf16.xpose.msra.mxu0 0
        %4293 = vmatprep.subr.bf16.mxu0 0
        %4294 = vmatpush1.bf16.xpose.msra.mxu0 0
        %4295 = vmatprep.mubr.bf16.mxu0 0
        %4296 = vmatmul.mubr.bf16.gmra.mrb[0].mxu0 %v4237
        %v4297 = vpop.f32.mrb[0].mxu0
        %v4298 = vadd.f32 0.0, %v4297
        %v4299 = vpop.f32.mrb[0].mxu0
        %v4300 = vpop.f32.mrb[0].mxu0
        %v4301 = vpop.f32.mrb[0].mxu0
        %4302 = vdwg.mxu0
        %v4303 = vadd.f32 %v3977, %v4084
        %v4304 = vadd.f32 %v4303, %v4191
        %v4305 = vadd.f32 %v4304, %v4298
        %v4306 = vadd.f32 %v2664, %v4305
        %4307 = vadd.xlane.f32.xlu0 %v4306
        %v4308 = vpop.xlane.xlu0 %4307
        %v4309 = vmul.f32 %v4308, %v2638
        %v4310 = vsub.f32 %v4306, %v4309
        %v4311 = vmul.f32 %v4310, %v4310
        %4312 = vadd.xlane.f32.xlu0 %v4311
        %v4313 = vpop.xlane.xlu0 %4312
        %v4314 = vmul.f32 %v4313, 0.007874016
        %v4315 = vrsqrt.pop %v4314
        %v4316 = vmul.f32 %v4314, %v4315
        %vm4317 = vcmp.eq.f32.partialorder %v4314, inf
        %v4318 = vsel %vm4317, %v4314, %v4316
        %vm4319 = vcmp.eq.f32.partialorder %v4314, 0.0
        %v4320 = vand.u32 %v4314, 2147483648
        %v4321 = vsel %vm4319, %v4320, %v4318
        %v4322 = vadd.f32 %v4321, 1e-06
        %v4323 = vrcp.pop %v4322
        %v4324 = vmul.f32 %v4310, %v4323
        %v4325 = vlaneseq
        %v4326 = vshrl.u32 %v4325, 7
        %v4327 = vsub.s32 1, %v4326
        %v4328 = vrot.slane %v691, %v4327
        %v4329 = vmul.f32 %v4328, %v4324
        %v4330 = vlaneseq
        %v4331 = vshrl.u32 %v4330, 7
        %v4332 = vsub.s32 1, %v4331
        %v4333 = vrot.slane %v692, %v4332
        %v4334 = vadd.f32 %v4329, %v4333
        %v4335 = vld [vmem:[#allocation14] sm:$0xf]
        %v4336 = vld [vmem:[#allocation14 + $0x4] sm:$0xf]
        %v4337 = vld [vmem:[#allocation14 + $0x8] sm:$0xf]
        %v4338 = vld [vmem:[#allocation14 + $0xc] sm:$0xf]
        %v4339 = vld [vmem:[#allocation14 + $0x10] sm:$0xf]
        %v4340 = vld [vmem:[#allocation14 + $0x14] sm:$0xf]
        %v4341 = vld [vmem:[#allocation14 + $0x18] sm:$0xf]
        %v4342 = vld [vmem:[#allocation14 + $0x1c] sm:$0xf]
        %v4343 = vld [vmem:[#allocation14 + $0x20] sm:$0xf]
        %v4344 = vld [vmem:[#allocation14 + $0x24] sm:$0xf]
        %v4345 = vld [vmem:[#allocation14 + $0x28] sm:$0xf]
        %v4346 = vld [vmem:[#allocation14 + $0x2c] sm:$0xf]
        %v4347 = vld [vmem:[#allocation14 + $0x30] sm:$0xf]
        %v4348 = vld [vmem:[#allocation14 + $0x34] sm:$0xf]
        %v4349 = vld [vmem:[#allocation14 + $0x38] sm:$0xf]
        %v4350 = vld [vmem:[#allocation14 + $0x3c] sm:$0xf]
        %v4351 = vld [vmem:[#allocation14 + $0x40] sm:$0xf]
        %v4352 = vld [vmem:[#allocation14 + $0x44] sm:$0xf]
        %v4353 = vld [vmem:[#allocation14 + $0x48] sm:$0xf]
        %v4354 = vld [vmem:[#allocation14 + $0x4c] sm:$0xf]
        %v4355 = vld [vmem:[#allocation14 + $0x50] sm:$0xf]
        %v4356 = vld [vmem:[#allocation14 + $0x54] sm:$0xf]
        %v4357 = vld [vmem:[#allocation14 + $0x58] sm:$0xf]
        %v4358 = vld [vmem:[#allocation14 + $0x5c] sm:$0xf]
        %v4359 = vld [vmem:[#allocation14 + $0x60] sm:$0xf]
        %v4360 = vld [vmem:[#allocation14 + $0x64] sm:$0xf]
        %v4361 = vld [vmem:[#allocation14 + $0x68] sm:$0xf]
        %v4362 = vld [vmem:[#allocation14 + $0x6c] sm:$0xf]
        %v4363 = vld [vmem:[#allocation14 + $0x70] sm:$0xf]
        %v4364 = vld [vmem:[#allocation14 + $0x74] sm:$0xf]
        %v4365 = vld [vmem:[#allocation14 + $0x78] sm:$0xf]
        %v4366 = vld [vmem:[#allocation14 + $0x7c] sm:$0xf]
        %v4367 = vpack.c.bf16 %v4334, %v4334
        %v4368 = vld [vmem:[#allocation16] sm:$0x3]
        %v4370 = vlaneseq
        %v4371 = vshrl.u32 %v4370, 7
        %v4372 = vsub.s32 0, %v4371
        %v4373 = vrot.slane %v4368, %v4372
        %v4374 = vlaneseq
        %v4375 = vshrl.u32 %v4374, 7
        %v4376 = vsub.s32 1, %v4375
        %v4377 = vrot.slane %v4368, %v4376
        %v4412 = vunpack.c.l.b16 %v4335
        %v4413 = vunpack.c.l.b16 %v4336
        %v4414 = vunpack.c.l.b16 %v4337
        %v4415 = vunpack.c.l.b16 %v4338
        %v4416 = vunpack.c.l.b16 %v4339
        %v4417 = vunpack.c.l.b16 %v4340
        %v4418 = vunpack.c.l.b16 %v4341
        %v4419 = vunpack.c.l.b16 %v4342
        %v4420 = vunpack.c.l.b16 %v4343
        %v4421 = vunpack.c.l.b16 %v4344
        %v4422 = vunpack.c.l.b16 %v4345
        %v4423 = vunpack.c.l.b16 %v4346
        %v4424 = vunpack.c.l.b16 %v4347
        %v4425 = vunpack.c.l.b16 %v4348
        %v4426 = vunpack.c.l.b16 %v4349
        %v4427 = vunpack.c.l.b16 %v4350
        %v4428 = vunpack.c.l.b16 %v4351
        %v4429 = vunpack.c.l.b16 %v4352
        %v4430 = vunpack.c.l.b16 %v4353
        %v4431 = vunpack.c.l.b16 %v4354
        %v4432 = vunpack.c.l.b16 %v4355
        %v4433 = vunpack.c.l.b16 %v4356
        %v4434 = vunpack.c.l.b16 %v4357
        %v4435 = vunpack.c.l.b16 %v4358
        %v4436 = vunpack.c.l.b16 %v4359
        %v4437 = vunpack.c.l.b16 %v4360
        %v4438 = vunpack.c.l.b16 %v4361
        %v4439 = vunpack.c.l.b16 %v4362
        %v4440 = vunpack.c.l.b16 %v4363
        %v4441 = vunpack.c.l.b16 %v4364
        %v4442 = vunpack.c.l.b16 %v4365
        %v4443 = vunpack.c.l.b16 %v4366
        %v4444 = vpack.c.b16 %v4413, %v4412
        %v4445 = vpack.c.b16 %v4415, %v4414
        %v4446 = vpack.c.b16 %v4417, %v4416
        %v4447 = vpack.c.b16 %v4419, %v4418
        %v4448 = vpack.c.b16 %v4421, %v4420
        %v4449 = vpack.c.b16 %v4423, %v4422
        %v4450 = vpack.c.b16 %v4425, %v4424
        %v4451 = vpack.c.b16 %v4427, %v4426
        %v4452 = vpack.c.b16 %v4429, %v4428
        %v4453 = vpack.c.b16 %v4431, %v4430
        %v4454 = vpack.c.b16 %v4433, %v4432
        %v4455 = vpack.c.b16 %v4435, %v4434
        %v4456 = vpack.c.b16 %v4437, %v4436
        %v4457 = vpack.c.b16 %v4439, %v4438
        %v4458 = vpack.c.b16 %v4441, %v4440
        %v4459 = vpack.c.b16 %v4443, %v4442
        %4476 = vmatprep.subr.bf16.mxu0 0
        %4477 = vmatpush1.bf16.xpose.msra.mxu0 %v4444
        %4478 = vmatprep.subr.bf16.mxu0 0
        %4479 = vmatpush1.bf16.xpose.msra.mxu0 %v4445
        %4480 = vmatprep.subr.bf16.mxu0 0
        %4481 = vmatpush1.bf16.xpose.msra.mxu0 %v4446
        %4482 = vmatprep.subr.bf16.mxu0 0
        %4483 = vmatpush1.bf16.xpose.msra.mxu0 %v4447
        %4484 = vmatprep.subr.bf16.mxu0 0
        %4485 = vmatpush1.bf16.xpose.msra.mxu0 %v4448
        %4486 = vmatprep.subr.bf16.mxu0 0
        %4487 = vmatpush1.bf16.xpose.msra.mxu0 %v4449
        %4488 = vmatprep.subr.bf16.mxu0 0
        %4489 = vmatpush1.bf16.xpose.msra.mxu0 %v4450
        %4490 = vmatprep.subr.bf16.mxu0 0
        %4491 = vmatpush1.bf16.xpose.msra.mxu0 %v4451
        %4492 = vmatprep.subr.bf16.mxu0 0
        %4493 = vmatpush1.bf16.xpose.msra.mxu0 %v4452
        %4494 = vmatprep.subr.bf16.mxu0 0
        %4495 = vmatpush1.bf16.xpose.msra.mxu0 %v4453
        %4496 = vmatprep.subr.bf16.mxu0 0
        %4497 = vmatpush1.bf16.xpose.msra.mxu0 %v4454
        %4498 = vmatprep.subr.bf16.mxu0 0
        %4499 = vmatpush1.bf16.xpose.msra.mxu0 %v4455
        %4500 = vmatprep.subr.bf16.mxu0 0
        %4501 = vmatpush1.bf16.xpose.msra.mxu0 %v4456
        %4502 = vmatprep.subr.bf16.mxu0 0
        %4503 = vmatpush1.bf16.xpose.msra.mxu0 %v4457
        %4504 = vmatprep.subr.bf16.mxu0 0
        %4505 = vmatpush1.bf16.xpose.msra.mxu0 %v4458
        %4506 = vmatprep.subr.bf16.mxu0 0
        %4507 = vmatpush1.bf16.xpose.msra.mxu0 %v4459
        %4508 = vmatprep.mubr.bf16.mxu0 0
        %4509 = vmatmul.mubr.bf16.gmra.mrb[0].mxu0 %v4367
        %v4510 = vpop.f32.mrb[0].mxu0
        %v4511 = vadd.f32 %v4373, %v4510
        %v4512 = vpop.f32.mrb[0].mxu0
        %v4513 = vadd.f32 %v4377, %v4512
        %v4514 = vpop.f32.mrb[0].mxu0
        %v4515 = vpop.f32.mrb[0].mxu0
        %4516 = vdwg.mxu0
        %v4517 = vmax.f32 %v4511, 0.0
        %v4518 = vmax.f32 %v4513, 0.0
        %v4519 = vld [vmem:[#allocation17] sm:$0xff]
        %v4520 = vld [vmem:[#allocation17 + $0x8] sm:$0xff]
        %v4521 = vld [vmem:[#allocation17 + $0x10] sm:$0xff]
        %v4522 = vld [vmem:[#allocation17 + $0x18] sm:$0xff]
        %v4523 = vld [vmem:[#allocation17 + $0x20] sm:$0xff]
        %v4524 = vld [vmem:[#allocation17 + $0x28] sm:$0xff]
        %v4525 = vld [vmem:[#allocation17 + $0x30] sm:$0xff]
        %v4526 = vld [vmem:[#allocation17 + $0x38] sm:$0xff]
        %v4527 = vld [vmem:[#allocation17 + $0x40] sm:$0xff]
        %v4528 = vld [vmem:[#allocation17 + $0x48] sm:$0xff]
        %v4529 = vld [vmem:[#allocation17 + $0x50] sm:$0xff]
        %v4530 = vld [vmem:[#allocation17 + $0x58] sm:$0xff]
        %v4531 = vld [vmem:[#allocation17 + $0x60] sm:$0xff]
        %v4532 = vld [vmem:[#allocation17 + $0x68] sm:$0xff]
        %v4533 = vld [vmem:[#allocation17 + $0x70] sm:$0xff]
        %v4534 = vld [vmem:[#allocation17 + $0x78] sm:$0xff]
        %v4535 = vpack.c.bf16 %v4517, %v4517
        %v4536 = vpack.c.bf16 %v4518, %v4518
        %v4537 = vld [vmem:[#allocation19] sm:$0x1]
        %v4539 = vlaneseq
        %v4540 = vshrl.u32 %v4539, 7
        %v4541 = vsub.s32 0, %v4540
        %v4542 = vrot.slane %v4537, %v4541
        %v4560 = vunpack.c.l.b16 %v4519
        %v4561 = vunpack.c.h.b16 %v4519
        %v4562 = vunpack.c.l.b16 %v4520
        %v4563 = vunpack.c.h.b16 %v4520
        %v4564 = vunpack.c.l.b16 %v4521
        %v4565 = vunpack.c.h.b16 %v4521
        %v4566 = vunpack.c.l.b16 %v4522
        %v4567 = vunpack.c.h.b16 %v4522
        %v4568 = vunpack.c.l.b16 %v4523
        %v4569 = vunpack.c.h.b16 %v4523
        %v4570 = vunpack.c.l.b16 %v4524
        %v4571 = vunpack.c.h.b16 %v4524
        %v4572 = vunpack.c.l.b16 %v4525
        %v4573 = vunpack.c.h.b16 %v4525
        %v4574 = vunpack.c.l.b16 %v4526
        %v4575 = vunpack.c.h.b16 %v4526
        %v4576 = vunpack.c.l.b16 %v4527
        %v4577 = vunpack.c.h.b16 %v4527
        %v4578 = vunpack.c.l.b16 %v4528
        %v4579 = vunpack.c.h.b16 %v4528
        %v4580 = vunpack.c.l.b16 %v4529
        %v4581 = vunpack.c.h.b16 %v4529
        %v4582 = vunpack.c.l.b16 %v4530
        %v4583 = vunpack.c.h.b16 %v4530
        %v4584 = vunpack.c.l.b16 %v4531
        %v4585 = vunpack.c.h.b16 %v4531
        %v4586 = vunpack.c.l.b16 %v4532
        %v4587 = vunpack.c.h.b16 %v4532
        %v4588 = vunpack.c.l.b16 %v4533
        %v4589 = vunpack.c.h.b16 %v4533
        %v4590 = vunpack.c.l.b16 %v4534
        %v4591 = vunpack.c.h.b16 %v4534
        %v4592 = vpack.c.b16 %v4562, %v4560
        %v4593 = vpack.c.b16 %v4563, %v4561
        %v4594 = vpack.c.b16 %v4566, %v4564
        %v4595 = vpack.c.b16 %v4567, %v4565
        %v4596 = vpack.c.b16 %v4570, %v4568
        %v4597 = vpack.c.b16 %v4571, %v4569
        %v4598 = vpack.c.b16 %v4574, %v4572
        %v4599 = vpack.c.b16 %v4575, %v4573
        %v4600 = vpack.c.b16 %v4578, %v4576
        %v4601 = vpack.c.b16 %v4579, %v4577
        %v4602 = vpack.c.b16 %v4582, %v4580
        %v4603 = vpack.c.b16 %v4583, %v4581
        %v4604 = vpack.c.b16 %v4586, %v4584
        %v4605 = vpack.c.b16 %v4587, %v4585
        %v4606 = vpack.c.b16 %v4590, %v4588
        %v4607 = vpack.c.b16 %v4591, %v4589
        %4624 = vmatprep.subr.bf16.mxu0 %v4593
        %4625 = vmatpush1.bf16.xpose.msra.mxu0 %v4592
        %4626 = vmatprep.subr.bf16.mxu0 %v4595
        %4627 = vmatpush1.bf16.xpose.msra.mxu0 %v4594
        %4628 = vmatprep.subr.bf16.mxu0 %v4597
        %4629 = vmatpush1.bf16.xpose.msra.mxu0 %v4596
        %4630 = vmatprep.subr.bf16.mxu0 %v4599
        %4631 = vmatpush1.bf16.xpose.msra.mxu0 %v4598
        %4632 = vmatprep.subr.bf16.mxu0 %v4601
        %4633 = vmatpush1.bf16.xpose.msra.mxu0 %v4600
        %4634 = vmatprep.subr.bf16.mxu0 %v4603
        %4635 = vmatpush1.bf16.xpose.msra.mxu0 %v4602
        %4636 = vmatprep.subr.bf16.mxu0 %v4605
        %4637 = vmatpush1.bf16.xpose.msra.mxu0 %v4604
        %4638 = vmatprep.subr.bf16.mxu0 %v4607
        %4639 = vmatpush1.bf16.xpose.msra.mxu0 %v4606
        %4640 = vmatprep.subr.bf16.mxu0 0
        %4641 = vmatpush1.bf16.xpose.msra.mxu0 0
        %4642 = vmatprep.subr.bf16.mxu0 0
        %4643 = vmatpush1.bf16.xpose.msra.mxu0 0
        %4644 = vmatprep.subr.bf16.mxu0 0
        %4645 = vmatpush1.bf16.xpose.msra.mxu0 0
        %4646 = vmatprep.subr.bf16.mxu0 0
        %4647 = vmatpush1.bf16.xpose.msra.mxu0 0
        %4648 = vmatprep.subr.bf16.mxu0 0
        %4649 = vmatpush1.bf16.xpose.msra.mxu0 0
        %4650 = vmatprep.subr.bf16.mxu0 0
        %4651 = vmatpush1.bf16.xpose.msra.mxu0 0
        %4652 = vmatprep.subr.bf16.mxu0 0
        %4653 = vmatpush1.bf16.xpose.msra.mxu0 0
        %4654 = vmatprep.subr.bf16.mxu0 0
        %4655 = vmatpush1.bf16.xpose.msra.mxu0 0
        %4656 = vmatprep.mubr.bf16.mxu0 %v4536
        %4657 = vmatmul.mubr.bf16.gmra.mrb[0].mxu0 %v4535
        %v4658 = vpop.f32.mrb[0].mxu0
        %v4659 = vadd.f32 %v4542, %v4658
        %v4660 = vpop.f32.mrb[0].mxu0
        %v4661 = vpop.f32.mrb[0].mxu0
        %v4662 = vpop.f32.mrb[0].mxu0
        %4663 = vdwg.mxu0
        %v4664 = vadd.f32 %v4334, %v4659
        %4665 = vadd.xlane.f32.xlu0 %v4664
        %v4666 = vpop.xlane.xlu0 %4665
        %v4667 = vmul.f32 %v4666, %v2638
        %v4668 = vsub.f32 %v4664, %v4667
        %v4669 = vmul.f32 %v4668, %v4668
        %4670 = vadd.xlane.f32.xlu0 %v4669
        %v4671 = vpop.xlane.xlu0 %4670
        %v4672 = vmul.f32 %v4671, 0.007874016
        %v4673 = vrsqrt.pop %v4672
        %v4674 = vmul.f32 %v4672, %v4673
        %vm4675 = vcmp.eq.f32.partialorder %v4672, inf
        %v4676 = vsel %vm4675, %v4672, %v4674
        %vm4677 = vcmp.eq.f32.partialorder %v4672, 0.0
        %v4678 = vand.u32 %v4672, 2147483648
        %v4679 = vsel %vm4677, %v4678, %v4676
        %v4680 = vadd.f32 %v4679, 1e-06
        %v4681 = vrcp.pop %v4680
        %v4682 = vmul.f32 %v4668, %v4681
        %v4683 = vlaneseq
        %v4684 = vshrl.u32 %v4683, 7
        %v4685 = vsub.s32 2, %v4684
        %v4686 = vrot.slane %v691, %v4685
        %v4687 = vmul.f32 %v4686, %v4682
        %v4688 = vlaneseq
        %v4689 = vshrl.u32 %v4688, 7
        %v4690 = vsub.s32 2, %v4689
        %v4691 = vrot.slane %v692, %v4690
        %v4692 = vadd.f32 %v4687, %v4691
        %4693 = vst [vmem:[%s684] sm:$0xff] %v4692
        %s4694 = sand.u32 %s350, 1
        %s4695 = scalar_lea.sflag [#allocation4], %s4694
        %s4696 = sand.u32 %s350, 1
        %s4697 = smul.addr %s4696, 8
        %s4698 = scalar_lea.vmem [#allocation23], %s4697
        // Predicated region
        $region125: #{decoder_layer.1} parent=71 // pred_check
          %p4699 = pneg %p360
        $region126: #{decoder_layer.1} parent=71 // pred_check_branch
          %4701 = sbr.rel (%p4699) target = $region128
        $region127: #{decoder_layer.1} parent=71 // pred_region
          %s4703 = ssub.s32 128, 128
          %4704 = vsyncadd %s4695, %s4703
          %s4705 = smul.addr %s42, 2
          %s4706 = sadd.s32 %s43, %s4705
          %s4707 = smul.addr %s4706, 128
          %s4708 = scalar_lea.hbm %s13, %s4707
          %s4710 = sshll.u32 %s4698, 4
          %s4711 = int_to_ptr.vmem [resolvable:$true] %s4710
          %4713 = dma.vmem_to_hbm [thread:$0]  %s4711, 128, %s4708, %s4695
        $region128: #{decoder_layer.1} parent=71 // pred_fallthru
          _
      $region72: #{decoder_layer.1} parent=5 // pred_fallthru
        _
      %p4714 = scmp.le.s32.totalorder 2, %s33
      // Predicated region
      $region129: #{decoder_layer.1} parent=5 // pred_check
        %p4715 = pneg %p4714
      $region130: #{decoder_layer.1} parent=5 // pred_check_branch
        %4717 = sbr.rel (%p4715) target = $region132
      $region131: #{decoder_layer.1} parent=5 // pred_region
        %s4718 = ssub.s32 %s33, 2
        // Predicated region
        $region133: #{decoder_layer.1} parent=131 // pred_check
          %p4719 = pneg %p366
        $region134: #{decoder_layer.1} parent=131 // pred_check_branch
          %4721 = sbr.rel (%p4719) target = $region136
        $region135: #{decoder_layer.1} parent=131 // pred_region
          %s4722 = sand.u32 %s351, 1
          %s4723 = scalar_lea.sflag [#allocation4], %s4722
          %s4724 = sand.u32 %s351, 1
          %s4725 = smul.addr %s4724, 8
          %s4726 = scalar_lea.vmem [#allocation23], %s4725
          %4727 = dma.done %s4723, 128
        $region136: #{decoder_layer.1} parent=131 // pred_fallthru
          _
      $region132: #{decoder_layer.1} parent=5 // pred_fallthru
        _
    $region6: #{decoder_layer.1} parent=1 // loop_footer
      %s37 = sadd.s32 1, %s33
    $region7: #{decoder_layer.1} parent=1 // loop_footer_branch
      %32 = sbr.rel target = $region3
    $region8: #{decoder_layer.1} parent=1 // loop_exit
      _
    %4728 = vsyncpa [#allocation3], 1
    %s4729 = scalar_lea.sflag [#allocation3], 1
    %4730 = vsyncpa %s4729, 1
    %4731 = vsyncpa [#allocation6], 1
    %s4732 = scalar_lea.sflag [#allocation6], 1
    %4733 = vsyncpa %s4732, 1
    %4734 = vsyncpa [#allocation9], 1
    %4735 = vsyncpa [#allocation12], 1
    %4736 = vsyncpa [#allocation15], 1
    %4737 = vsyncpa [#allocation18], 1
    %4738 = vsyncpa [#allocation21], 1
    %4739 = vsyncpa [#allocation4], 1
    %s4740 = scalar_lea.sflag [#allocation4], 1
    %4741 = vsyncpa %s4740, 1

</llo_original>
